<compile_context>
chip_gen: v7x
topology: tpu7x:2x2x1
jax: 0.10.0
libtpu: 0.0.40
codegen_flags: <defaults>
</compile_context>

<pallas_src>
import functools

import jax
import jax.numpy as jnp
from jax import lax
from jax.experimental import pallas as pl
from jax.experimental.pallas import tpu as pltpu


# ---------------------------------------------------------------------------
# kernel 1: qkv 1x1 (no bias) fused with qkv_dwconv's depthwise 3x3.
# Only the middle depth slice of the 3x3x3 kernel contributes because the depth
# dim is 1 with zero padding 1 (the module's unsqueeze(2) usage).
# Input rows are zero-padded by W+1 on each side; tap (ky, kx) is the static row
# slice [ky*W+kx : ky*W+kx+H*W] plus a mask killing column wrap-around.
# Padding the *input* is equivalent to padding the qkv output (qkv has no bias).
# ---------------------------------------------------------------------------
def _make_qkv_dwconv_kernel(H, W, C):
    HW = H * W
    C3 = 3 * C

    def kernel(x_ref, wq_ref, wdw_ref, o_ref, qkv_ref):
        # x_ref   : (1, R, C)   zero-row-padded NHWC-flat input, R = HW + 2*(W+1)
        # wq_ref  : (C, 3C)     bf16 qkv weight (transposed)
        # wdw_ref : (9, 1, 3C)  f32 depthwise taps (tap = ky*3 + kx)
        # o_ref   : (1, HW, 3C)
        # qkv_ref : VMEM scratch (R, 3C) f32
        qkv_ref[...] = jnp.dot(x_ref[0].astype(jnp.bfloat16), wq_ref[...],
                               preferred_element_type=jnp.float32)
        col = lax.broadcasted_iota(jnp.int32, (HW, 1), 0) % W
        mask_l = (col != 0).astype(jnp.float32)
        mask_r = (col != W - 1).astype(jnp.float32)
        acc = jnp.zeros((HW, C3), jnp.float32)
        for ky in range(3):
            for kx in range(3):
                start = ky * W + kx
                contrib = qkv_ref[start:start + HW, :] * wdw_ref[ky * 3 + kx]
                if kx == 0:
                    contrib = contrib * mask_l
                elif kx == 2:
                    contrib = contrib * mask_r
                acc = acc + contrib
        o_ref[0] = acc

    return kernel


def pallas_qkv_dwconv(x_flat_pad, w_qkv_t, w_dw_taps, H, W, C):
    B, R, _ = x_flat_pad.shape
    HW = H * W
    return pl.pallas_call(
        _make_qkv_dwconv_kernel(H, W, C),
        out_shape=jax.ShapeDtypeStruct((B, HW, 3 * C), jnp.float32),
        grid=(B,),
        in_specs=[pl.BlockSpec((1, R, C), lambda b: (b, 0, 0)),
                  pl.BlockSpec((C, 3 * C), lambda b: (0, 0)),
                  pl.BlockSpec((9, 1, 3 * C), lambda b: (0, 0, 0))],
        out_specs=pl.BlockSpec((1, HW, 3 * C), lambda b: (b, 0, 0)),
        scratch_shapes=[pltpu.VMEM((R, 3 * C), jnp.float32)],
        compiler_params=pltpu.CompilerParams(
            dimension_semantics=("parallel",),
            vmem_limit_bytes=48 * 1024 * 1024),
    )(x_flat_pad, w_qkv_t, w_dw_taps)


# ---------------------------------------------------------------------------
# kernel 2: multi-head channel attention fused with project_out (1x1, no bias).
# Processes all heads of one batch element per grid step (amortises grid
# overhead vs. a (B*heads,) grid of tiny blocks).
# ---------------------------------------------------------------------------
def _make_attn_proj_kernel(C, heads, HW):
    cH = C // heads

    def kernel(t_ref, qkv_ref, wp_ref, o_ref):
        # t_ref  : (heads, 1) temperature
        # qkv_ref: (1, 3C, HW) NCHW-flat qkv
        # wp_ref : (C, C) project_out weight
        # o_ref  : (1, C, HW) project_out(attention)
        acc = jnp.zeros((C, HW), jnp.float32)
        for hd in range(heads):
            q = qkv_ref[0, hd * cH:(hd + 1) * cH, :]
            k = qkv_ref[0, C + hd * cH:C + (hd + 1) * cH, :]
            v = qkv_ref[0, 2 * C + hd * cH:2 * C + (hd + 1) * cH, :]
            # F.normalize(dim=-1), eps = 1e-12
            qn = q / jnp.maximum(jnp.sqrt(jnp.sum(q * q, axis=-1, keepdims=True)), 1e-12)
            kn = k / jnp.maximum(jnp.sqrt(jnp.sum(k * k, axis=-1, keepdims=True)), 1e-12)
            attn = lax.dot_general(qn, kn, (((1,), (1,)), ((), ())),
                                   preferred_element_type=jnp.float32)        # (cH, cH)
            attn = attn * t_ref[hd:hd + 1, :]
            attn = attn - jnp.max(attn, axis=-1, keepdims=True)
            e = jnp.exp(attn)
            pr = e / jnp.sum(e, axis=-1, keepdims=True)
            out_h = jnp.dot(pr, v, preferred_element_type=jnp.float32)        # (cH, HW)
            # fused project_out: acc += Wp[:, head block] @ out_h
            acc = acc + jnp.dot(wp_ref[:, hd * cH:(hd + 1) * cH], out_h,
                                preferred_element_type=jnp.float32)
        o_ref[0] = acc

    return kernel


def pallas_attention_proj(qkv_nchw, w_proj, temperature, heads):
    B, C3, HW = qkv_nchw.shape
    C = C3 // 3
    return pl.pallas_call(
        _make_attn_proj_kernel(C, heads, HW),
        out_shape=jax.ShapeDtypeStruct((B, C, HW), jnp.float32),
        grid=(B,),
        in_specs=[pl.BlockSpec((heads, 1), lambda b: (0, 0)),
                  pl.BlockSpec((1, C3, HW), lambda b: (b, 0, 0)),
                  pl.BlockSpec((C, C), lambda b: (0, 0))],
        out_specs=pl.BlockSpec((1, C, HW), lambda b: (b, 0, 0)),
        compiler_params=pltpu.CompilerParams(dimension_semantics=("parallel",)),
    )(temperature, qkv_nchw, w_proj)


# ---------------------------------------------------------------------------
# kernel 3: fc (1x1 over the 3*heads dim) fused with the grouped 3x3 dep_conv
# (middle depth slice) and the "+ project_out(attention)" residual.
# The fc is pre-expanded to a block-diagonal (3C, 9*cH) weight so its output is
# already in dep_conv's channel layout c*9 + t; dep_conv taps are block-diagonal
# (9*cH, C) matmuls on shifted row slices of the in-VMEM fc result (no im2col).
# ---------------------------------------------------------------------------
def _make_fc_depconv_kernel(H, W, C, heads, R):
    HW = H * W
    cH = C // heads
    Cin = 9 * cH
    PAD = W + 1

    def kernel(f_ref, pr_ref, wfc_ref, bfc_ref, wd_ref, bd_ref, o_ref, s_ref):
        # f_ref  : (1, R, 3C)   zero-row-padded torch-reshape rows of qkv (NCHW flat)
        # pr_ref : (1, HW, C)   project_out(attention) in NHWC-flat layout
        # wfc_ref: (3C, Cin) bf16 ; bfc_ref: (1, Cin) f32
        # wd_ref : (9, Cin, C) bf16 ; bd_ref: (1, C) f32
        # o_ref  : (1, HW, C)   pattn1 (NHWC flat)
        # s_ref  : VMEM scratch (R, Cin) f32
        rows = lax.broadcasted_iota(jnp.int32, (R, 1), 0)
        valid = ((rows >= PAD) & (rows < PAD + HW)).astype(jnp.float32)
        # fc; padded rows are forced to 0 to reproduce dep_conv's zero padding of f_conv
        s_ref[...] = (jnp.dot(f_ref[0].astype(jnp.bfloat16), wfc_ref[...],
                              preferred_element_type=jnp.float32)
                      + bfc_ref[...]) * valid
        col = lax.broadcasted_iota(jnp.int32, (HW, 1), 0) % W
        mask_l = (col != 0).astype(jnp.float32)
        mask_r = (col != W - 1).astype(jnp.float32)
        acc = pr_ref[0] + bd_ref[...]
        for ky in range(3):
            for kx in range(3):
                start = ky * W + kx
                contrib = jnp.dot(s_ref[start:start + HW, :].astype(jnp.bfloat16),
                                  wd_ref[ky * 3 + kx],
                                  preferred_element_type=jnp.float32)
                if kx == 0:
                    contrib = contrib * mask_l
                elif kx == 2:
                    contrib = contrib * mask_r
                acc = acc + contrib
        o_ref[0] = acc

    return kernel


def pallas_fc_depconv(fcin_pad, proj_nhwc, w_fc_big, b_fc_big, w_dep_taps, b_dep,
                      H, W, C, heads):
    B, R, C3 = fcin_pad.shape
    HW = H * W
    Cin = 9 * (C // heads)
    return pl.pallas_call(
        _make_fc_depconv_kernel(H, W, C, heads, R),
        out_shape=jax.ShapeDtypeStruct((B, HW, C), jnp.float32),
        grid=(B,),
        in_specs=[pl.BlockSpec((1, R, C3), lambda b: (b, 0, 0)),
                  pl.BlockSpec((1, HW, C), lambda b: (b, 0, 0)),
                  pl.BlockSpec((C3, Cin), lambda b: (0, 0)),
                  pl.BlockSpec((1, Cin), lambda b: (0, 0)),
                  pl.BlockSpec((9, Cin, C), lambda b: (0, 0, 0)),
                  pl.BlockSpec((1, C), lambda b: (0, 0))],
        out_specs=pl.BlockSpec((1, HW, C), lambda b: (b, 0, 0)),
        scratch_shapes=[pltpu.VMEM((R, Cin), jnp.float32)],
        compiler_params=pltpu.CompilerParams(
            dimension_semantics=("parallel",),
            vmem_limit_bytes=48 * 1024 * 1024),
    )(fcin_pad, proj_nhwc, w_fc_big, b_fc_big, w_dep_taps, b_dep)


# ---------------------------------------------------------------------------
# kernel 4: PixelAttention pa2 (grouped 7x7, reflect padded) fused with both
# sigmoids (the reference really applies sigmoid twice) and the x/y blend.
# ---------------------------------------------------------------------------
def _make_pa_blend_kernel(H, W):
    def kernel(xp_ref, pp_ref, x_ref, y_ref, w0_ref, w1_ref, b_ref, o_ref):
        # xp_ref/pp_ref: (1, H+6, W+6, C) reflect-padded initial / pattn1
        # x_ref/y_ref  : (1, H, W, C); w0/w1: (7, 7, 1, C); b: (1, 1, 1, C)
        acc = jnp.zeros(o_ref.shape, jnp.float32)
        for ky in range(7):
            for kx in range(7):
                acc = acc + xp_ref[:, ky:ky + H, kx:kx + W, :] * w0_ref[ky, kx]
                acc = acc + pp_ref[:, ky:ky + H, kx:kx + W, :] * w1_ref[ky, kx]
        # PixelAttention_CGA's own sigmoid + CAFMFusion's outer sigmoid
        p2 = jax.nn.sigmoid(jax.nn.sigmoid(acc + b_ref[...]))
        init = xp_ref[:, 3:3 + H, 3:3 + W, :]   # interior of reflect pad == initial
        o_ref[...] = init + p2 * x_ref[...] + (1.0 - p2) * y_ref[...]

    return kernel


def pallas_pa_blend(init_pad, p1_pad, x_nhwc, y_nhwc, w0, w1, b2, H, W):
    B, _, _, C = x_nhwc.shape
    Hp, Wp = H + 6, W + 6
    return pl.pallas_call(
        _make_pa_blend_kernel(H, W),
        out_shape=jax.ShapeDtypeStruct((B, H, W, C), jnp.float32),
        grid=(B,),
        in_specs=[pl.BlockSpec((1, Hp, Wp, C), lambda b: (b, 0, 0, 0)),
                  pl.BlockSpec((1, Hp, Wp, C), lambda b: (b, 0, 0, 0)),
                  pl.BlockSpec((1, H, W, C), lambda b: (b, 0, 0, 0)),
                  pl.BlockSpec((1, H, W, C), lambda b: (b, 0, 0, 0)),
                  pl.BlockSpec((7, 7, 1, C), lambda b: (0, 0, 0, 0)),
                  pl.BlockSpec((7, 7, 1, C), lambda b: (0, 0, 0, 0)),
                  pl.BlockSpec((1, 1, 1, C), lambda b: (0, 0, 0, 0))],
        out_specs=pl.BlockSpec((1, H, W, C), lambda b: (b, 0, 0, 0)),
        compiler_params=pltpu.CompilerParams(
            dimension_semantics=("parallel",),
            vmem_limit_bytes=48 * 1024 * 1024),
    )(init_pad, p1_pad, x_nhwc, y_nhwc, w0, w1, b2)


# ---------------------------------------------------------------------------
# kernel 5: M-tiled matmul + bias (final 1x1 conv), bf16 MXU operands, f32 acc.
# ---------------------------------------------------------------------------
def _matmul_bias_kernel(a_ref, b_ref, bias_ref, o_ref):
    o_ref[...] = (jnp.dot(a_ref[...].astype(jnp.bfloat16), b_ref[...],
                          preferred_element_type=jnp.float32) + bias_ref[...])


def pallas_matmul_bias(a, b_bf16, bias, tile_m=256):
    M, K = a.shape
    N = b_bf16.shape[1]
    tm = min(tile_m, M)
    Mp = ((M + tm - 1) // tm) * tm
    a_p = a if Mp == M else jnp.pad(a, ((0, Mp - M), (0, 0)))
    out = pl.pallas_call(
        _matmul_bias_kernel,
        out_shape=jax.ShapeDtypeStruct((Mp, N), jnp.float32),
        grid=(Mp // tm,),
        in_specs=[pl.BlockSpec((tm, K), lambda i: (i, 0)),
                  pl.BlockSpec((K, N), lambda i: (0, 0)),
                  pl.BlockSpec((1, N), lambda i: (0, 0))],
        out_specs=pl.BlockSpec((tm, N), lambda i: (i, 0)),
        compiler_params=pltpu.CompilerParams(dimension_semantics=("parallel",)),
    )(a_p, b_bf16, bias)
    return out if Mp == M else out[:M]


# ------------------------------ weight prep --------------------------------

def _build_fc_weight(w_fc, b_fc, C, heads):
    # Block-diagonal expansion of the fc 1x1 conv so that it maps the torch-reshape
    # row layout (index q*cH + c) directly to dep_conv's channel layout (c*9 + t):
    #   W_big[q*cH + c, c*9 + t] = w_fc[t, q]
    cH = C // heads
    eye = jnp.eye(cH, dtype=jnp.float32)
    big = (w_fc.T[:, None, None, :] * eye[None, :, :, None]).reshape(3 * C, 9 * cH)
    bias = jnp.tile(b_fc, cH).reshape(1, 9 * cH)
    return big.astype(jnp.bfloat16), bias.astype(jnp.float32)


def _build_dep_weight(w_dep, C, heads):
    # Per-tap block-diagonal grouped-conv weights (middle depth slice only, since the
    # depth dim is 1 with zero padding):
    #   W_tap[c*9 + kin, c*heads + oo] = w_dep[c*heads + oo, kin, 1, ky, kx]
    cH = C // heads
    wd = w_dep[:, :, 1, :, :].reshape(cH, heads, 9, 3, 3)      # (c, oo, kin, ky, kx)
    wd = jnp.transpose(wd, (3, 4, 0, 2, 1))                    # (ky, kx, c, kin, oo)
    eye = jnp.eye(cH, dtype=jnp.float32)
    full = wd[:, :, :, :, None, :] * eye[None, None, :, None, :, None]
    return full.reshape(9, 9 * cH, C).astype(jnp.bfloat16)


# ------------------------------ parameters ---------------------------------

def init_params(key, dim, heads):
    ks = jax.random.split(key, 11)
    s = 0.1
    p = {}
    p['temperature'] = jnp.ones((heads, 1, 1), jnp.float32)                        # CAFM.temperature
    p['w_qkv'] = jax.random.normal(ks[0], (3 * dim, dim), jnp.float32) * s         # Conv3d 1x1x1, no bias
    p['w_qkv_dw'] = jax.random.normal(ks[1], (3 * dim, 3, 3, 3), jnp.float32) * s  # depthwise 3x3x3
    p['w_proj'] = jax.random.normal(ks[2], (dim, dim), jnp.float32) * s            # project_out 1x1x1
    p['w_fc'] = jax.random.normal(ks[3], (9, 3 * heads), jnp.float32) * s          # fc 1x1x1
    p['b_fc'] = jax.random.normal(ks[4], (9,), jnp.float32) * s
    p['w_dep'] = jax.random.normal(ks[5], (dim, 9, 3, 3, 3), jnp.float32) * s      # dep_conv (grouped)
    p['b_dep'] = jax.random.normal(ks[6], (dim,), jnp.float32) * s
    p['w_pa2'] = jax.random.normal(ks[7], (dim, 2, 7, 7), jnp.float32) * s         # pa2 grouped 7x7
    p['b_pa2'] = jax.random.normal(ks[8], (dim,), jnp.float32) * s
    p['w_conv'] = jax.random.normal(ks[9], (dim, dim), jnp.float32) * s            # final 1x1 conv
    p['b_conv'] = jax.random.normal(ks[10], (dim,), jnp.float32) * s
    return p


# ------------------------------- forward -----------------------------------

def cafm_fusion_forward(x_nchw, y_nchw, p, heads):
    B, C, H, W = x_nchw.shape
    HW = H * W
    PAD = W + 1

    x_nhwc = jnp.transpose(x_nchw, (0, 2, 3, 1))
    y_nhwc = jnp.transpose(y_nchw, (0, 2, 3, 1))
    init_nhwc = x_nhwc + y_nhwc

    # ---------------- CAFM(initial) -> pattn1 ----------------
    init_flat_pad = jnp.pad(init_nhwc.reshape(B, HW, C), ((0, 0), (PAD, PAD), (0, 0)))
    w_qkv_t = p['w_qkv'].T.astype(jnp.bfloat16)                                    # (C, 3C)
    w_dw = jnp.transpose(p['w_qkv_dw'][:, 1, :, :], (1, 2, 0)).reshape(9, 1, 3 * C)
    qkv_nhwc = pallas_qkv_dwconv(init_flat_pad, w_qkv_t, w_dw, H, W, C)            # (B, HW, 3C)

    # single layout change required by the reference's memory reinterpretation
    qkv_nchw = jnp.transpose(qkv_nhwc, (0, 2, 1))                                  # (B, 3C, HW)

    # multi-head channel attention fused with project_out
    temp = p['temperature'].reshape(heads, 1)
    attn_proj = pallas_attention_proj(qkv_nchw, p['w_proj'], temp, heads)          # (B, C, HW)
    attn_proj_nhwc = jnp.transpose(attn_proj, (0, 2, 1))                           # (B, HW, C)

    # fc 1x1 + grouped 3x3 dep_conv + residual add (pattn1, NHWC-flat)
    fcin = qkv_nchw.reshape(B, HW, 3 * C)      # torch reshape(b, h*w, 3*heads, cH) semantics
    fcin_pad = jnp.pad(fcin, ((0, 0), (PAD, PAD), (0, 0)))
    w_fc_big, b_fc_big = _build_fc_weight(p['w_fc'], p['b_fc'], C, heads)
    w_dep_taps = _build_dep_weight(p['w_dep'], C, heads)
    pattn1 = pallas_fc_depconv(fcin_pad, attn_proj_nhwc, w_fc_big, b_fc_big,
                               w_dep_taps, p['b_dep'].reshape(1, C), H, W, C, heads)

    # ------------- PixelAttention_CGA + fusion + final 1x1 conv -------------
    pad7 = ((0, 0), (3, 3), (3, 3), (0, 0))
    init_pad = jnp.pad(init_nhwc, pad7, mode='reflect')
    p1_pad = jnp.pad(pattn1.reshape(B, H, W, C), pad7, mode='reflect')
    # group c of pa2 sees input channels (2c, 2c+1) == (initial_c, pattn1_c)
    w0 = jnp.transpose(p['w_pa2'][:, 0], (1, 2, 0)).reshape(7, 7, 1, C)
    w1 = jnp.transpose(p['w_pa2'][:, 1], (1, 2, 0)).reshape(7, 7, 1, C)
    fused = pallas_pa_blend(init_pad, p1_pad, x_nhwc, y_nhwc, w0, w1,
                            p['b_pa2'].reshape(1, 1, 1, C), H, W)                  # (B, H, W, C)

    res = pallas_matmul_bias(fused.reshape(B * HW, C),
                             p['w_conv'].T.astype(jnp.bfloat16),
                             p['b_conv'].reshape(1, C))
    return jnp.transpose(res.reshape(B, H, W, C), (0, 3, 1, 2))                    # NCHW


# --------------------------------- main -------------------------------------

if __name__ == "__main__":
    dim, heads = 16, 4
    B, H, W = 2, 16, 16

    key = jax.random.PRNGKey(0)
    k_x, k_y, k_p = jax.random.split(key, 3)
    x = jax.random.normal(k_x, (B, dim, H, W), jnp.float32)
    y = jax.random.normal(k_y, (B, dim, H, W), jnp.float32)
    params = init_params(k_p, dim, heads)

    fwd = jax.jit(functools.partial(cafm_fusion_forward, heads=heads))
    out = jax.block_until_ready(fwd(x, y, params))
    assert out.shape == (B, dim, H, W)
    print("KERNEL_OK")
</pallas_src>

<mosaic_0001>
module attributes {stable_mosaic.version = 11 : i64} {
  func.func @kernel(%arg0: i32, %arg1: memref<1x290x16xf32, #tpu.memory_space<vmem>>, %arg2: memref<16x48xbf16, #tpu.memory_space<vmem>>, %arg3: memref<9x1x48xf32, #tpu.memory_space<vmem>>, %arg4: memref<1x256x48xf32, #tpu.memory_space<vmem>>, %arg5: memref<290x48xf32, #tpu.memory_space<vmem>>) attributes {dimension_semantics = [#tpu.dimension_semantics<parallel>], iteration_bounds = array<i64: 2>, scalar_prefetch = 0 : i64, scratch_operands = 1 : i64, tpu.core_type = #tpu.core_type<tc>, window_params = [{transform_indices = @transform_0, window_bounds = array<i64: 1, 290, 16>}, {pipeline_mode = #tpu.pipeline_mode<synchronous>, transform_indices = @transform_1, window_bounds = array<i64: 16, 48>}, {pipeline_mode = #tpu.pipeline_mode<synchronous>, transform_indices = @transform_2, window_bounds = array<i64: 9, 1, 48>}, {transform_indices = @transform_3, window_bounds = array<i64: 1, 256, 48>}]} {
    %c0 = arith.constant 0 : index
    %c0_0 = arith.constant 0 : index
    %c0_1 = arith.constant 0 : index
    %0 = vector.load %arg1[%c0, %c0_0, %c0_1] : memref<1x290x16xf32, #tpu.memory_space<vmem>>, vector<1x290x16xf32>
    %1 = vector.shape_cast %0 : vector<1x290x16xf32> to vector<290x16xf32>
    %2 = arith.truncf %1 : vector<290x16xf32> to vector<290x16xbf16>
    %c0_2 = arith.constant 0 : index
    %c0_3 = arith.constant 0 : index
    %3 = vector.load %arg2[%c0_2, %c0_3] : memref<16x48xbf16, #tpu.memory_space<vmem>>, vector<16x48xbf16>
    %cst = arith.constant dense<0.000000e+00> : vector<290x48xf32>
    %4 = tpu.matmul %2, %3, %cst {dimension_numbers = #tpu.dot_dimension_numbers<[1], [0], [0], [1], [0, 0, 1, 1], [], []>} : vector<290x16xbf16>, vector<16x48xbf16>, vector<290x48xf32> -> vector<290x48xf32>
    %c0_4 = arith.constant 0 : index
    %c0_5 = arith.constant 0 : index
    %5 = vector.load %arg5[%c0_4, %c0_5] : memref<290x48xf32, #tpu.memory_space<vmem>>, vector<290x48xf32>
    tpu.vector_store %arg5[%c0_4, %c0_5], %4 {strides = array<i32>} : memref<290x48xf32, #tpu.memory_space<vmem>>, vector<290x48xf32>,
    %6 = tpu.iota {dimensions = array<i32: 0>} : vector<256x1xi32>
    %c16_i32 = arith.constant 16 : i32
    %c0_i32 = arith.constant 0 : i32
    %7 = arith.cmpi eq, %c16_i32, %c0_i32 : i32
    %c1_i32 = arith.constant 1 : i32
    %8 = arith.select %7, %c1_i32, %c16_i32 : i32
    %9 = vector.broadcast %8 : i32 to vector<256x1xi32>
    %10 = arith.remsi %6, %9 : vector<256x1xi32>
    %c0_i32_6 = arith.constant 0 : i32
    %11 = vector.broadcast %c0_i32_6 : i32 to vector<256x1xi32>
    %12 = arith.cmpi ne, %10, %11 : vector<256x1xi32>
    %c0_i32_7 = arith.constant 0 : i32
    %13 = vector.broadcast %c0_i32_7 : i32 to vector<256x1xi32>
    %14 = arith.cmpi slt, %10, %13 : vector<256x1xi32>
    %c0_i32_8 = arith.constant 0 : i32
    %15 = arith.cmpi slt, %8, %c0_i32_8 : i32
    %16 = vector.broadcast %15 : i1 to vector<256x1xi1>
    %17 = vector.broadcast %16 : vector<256x1xi1> to vector<256x1xi1>
    %18 = arith.xori %14, %17 : vector<256x1xi1>
    %19 = arith.andi %18, %12 : vector<256x1xi1>
    %20 = vector.broadcast %8 : i32 to vector<256x1xi32>
    %21 = arith.addi %10, %20 : vector<256x1xi32>
    %22 = arith.select %19, %21, %10 : vector<256x1xi1>, vector<256x1xi32>
    %c0_i32_9 = arith.constant 0 : i32
    %23 = vector.broadcast %c0_i32_9 : i32 to vector<256x1xi32>
    %24 = arith.cmpi ne, %22, %23 : vector<256x1xi32>
    %25 = arith.extui %24 : vector<256x1xi1> to vector<256x1xi32>
    %26 = arith.sitofp %25 : vector<256x1xi32> to vector<256x1xf32>
    %c15_i32 = arith.constant 15 : i32
    %27 = vector.broadcast %c15_i32 : i32 to vector<256x1xi32>
    %28 = arith.cmpi ne, %22, %27 : vector<256x1xi32>
    %29 = arith.extui %28 : vector<256x1xi1> to vector<256x1xi32>
    %30 = arith.sitofp %29 : vector<256x1xi32> to vector<256x1xf32>
    %cst_10 = arith.constant 0.000000e+00 : f32
    %31 = vector.broadcast %cst_10 : f32 to vector<256x48xf32>
    %c0_11 = arith.constant 0 : index
    %c0_12 = arith.constant 0 : index
    %32 = vector.load %arg5[%c0_11, %c0_12] : memref<290x48xf32, #tpu.memory_space<vmem>>, vector<256x48xf32>
    %c0_13 = arith.constant 0 : index
    %c0_14 = arith.constant 0 : index
    %c0_15 = arith.constant 0 : index
    %33 = vector.load %arg3[%c0_13, %c0_14, %c0_15] : memref<9x1x48xf32, #tpu.memory_space<vmem>>, vector<1x1x48xf32>
    %34 = vector.shape_cast %33 : vector<1x1x48xf32> to vector<1x48xf32>
    %35 = vector.broadcast %34 : vector<1x48xf32> to vector<256x48xf32>
    %36 = arith.mulf %32, %35 : vector<256x48xf32>
    %37 = vector.broadcast %26 : vector<256x1xf32> to vector<256x48xf32>
    %38 = arith.mulf %36, %37 : vector<256x48xf32>
    %39 = arith.addf %31, %38 : vector<256x48xf32>
    %c1 = arith.constant 1 : index
    %c0_16 = arith.constant 0 : index
    %40 = vector.load %arg5[%c1, %c0_16] : memref<290x48xf32, #tpu.memory_space<vmem>>, vector<256x48xf32>
    %c1_17 = arith.constant 1 : index
    %c0_18 = arith.constant 0 : index
    %c0_19 = arith.constant 0 : index
    %41 = vector.load %arg3[%c1_17, %c0_18, %c0_19] : memref<9x1x48xf32, #tpu.memory_space<vmem>>, vector<1x1x48xf32>
    %42 = vector.shape_cast %41 : vector<1x1x48xf32> to vector<1x48xf32>
    %43 = vector.broadcast %42 : vector<1x48xf32> to vector<256x48xf32>
    %44 = arith.mulf %40, %43 : vector<256x48xf32>
    %45 = arith.addf %39, %44 : vector<256x48xf32>
    %c2 = arith.constant 2 : index
    %c0_20 = arith.constant 0 : index
    %46 = vector.load %arg5[%c2, %c0_20] : memref<290x48xf32, #tpu.memory_space<vmem>>, vector<256x48xf32>
    %c2_21 = arith.constant 2 : index
    %c0_22 = arith.constant 0 : index
    %c0_23 = arith.constant 0 : index
    %47 = vector.load %arg3[%c2_21, %c0_22, %c0_23] : memref<9x1x48xf32, #tpu.memory_space<vmem>>, vector<1x1x48xf32>
    %48 = vector.shape_cast %47 : vector<1x1x48xf32> to vector<1x48xf32>
    %49 = vector.broadcast %48 : vector<1x48xf32> to vector<256x48xf32>
    %50 = arith.mulf %46, %49 : vector<256x48xf32>
    %51 = vector.broadcast %30 : vector<256x1xf32> to vector<256x48xf32>
    %52 = arith.mulf %50, %51 : vector<256x48xf32>
    %53 = arith.addf %45, %52 : vector<256x48xf32>
    %c16 = arith.constant 16 : index
    %c0_24 = arith.constant 0 : index
    %54 = vector.load %arg5[%c16, %c0_24] : memref<290x48xf32, #tpu.memory_space<vmem>>, vector<256x48xf32>
    %c3 = arith.constant 3 : index
    %c0_25 = arith.constant 0 : index
    %c0_26 = arith.constant 0 : index
    %55 = vector.load %arg3[%c3, %c0_25, %c0_26] : memref<9x1x48xf32, #tpu.memory_space<vmem>>, vector<1x1x48xf32>
    %56 = vector.shape_cast %55 : vector<1x1x48xf32> to vector<1x48xf32>
    %57 = vector.broadcast %56 : vector<1x48xf32> to vector<256x48xf32>
    %58 = arith.mulf %54, %57 : vector<256x48xf32>
    %59 = vector.broadcast %26 : vector<256x1xf32> to vector<256x48xf32>
    %60 = arith.mulf %58, %59 : vector<256x48xf32>
    %61 = arith.addf %53, %60 : vector<256x48xf32>
    %c17 = arith.constant 17 : index
    %c0_27 = arith.constant 0 : index
    %62 = vector.load %arg5[%c17, %c0_27] : memref<290x48xf32, #tpu.memory_space<vmem>>, vector<256x48xf32>
    %c4 = arith.constant 4 : index
    %c0_28 = arith.constant 0 : index
    %c0_29 = arith.constant 0 : index
    %63 = vector.load %arg3[%c4, %c0_28, %c0_29] : memref<9x1x48xf32, #tpu.memory_space<vmem>>, vector<1x1x48xf32>
    %64 = vector.shape_cast %63 : vector<1x1x48xf32> to vector<1x48xf32>
    %65 = vector.broadcast %64 : vector<1x48xf32> to vector<256x48xf32>
    %66 = arith.mulf %62, %65 : vector<256x48xf32>
    %67 = arith.addf %61, %66 : vector<256x48xf32>
    %c18 = arith.constant 18 : index
    %c0_30 = arith.constant 0 : index
    %68 = vector.load %arg5[%c18, %c0_30] : memref<290x48xf32, #tpu.memory_space<vmem>>, vector<256x48xf32>
    %c5 = arith.constant 5 : index
    %c0_31 = arith.constant 0 : index
    %c0_32 = arith.constant 0 : index
    %69 = vector.load %arg3[%c5, %c0_31, %c0_32] : memref<9x1x48xf32, #tpu.memory_space<vmem>>, vector<1x1x48xf32>
    %70 = vector.shape_cast %69 : vector<1x1x48xf32> to vector<1x48xf32>
    %71 = vector.broadcast %70 : vector<1x48xf32> to vector<256x48xf32>
    %72 = arith.mulf %68, %71 : vector<256x48xf32>
    %73 = vector.broadcast %30 : vector<256x1xf32> to vector<256x48xf32>
    %74 = arith.mulf %72, %73 : vector<256x48xf32>
    %75 = arith.addf %67, %74 : vector<256x48xf32>
    %c32 = arith.constant 32 : index
    %c0_33 = arith.constant 0 : index
    %76 = vector.load %arg5[%c32, %c0_33] : memref<290x48xf32, #tpu.memory_space<vmem>>, vector<256x48xf32>
    %c6 = arith.constant 6 : index
    %c0_34 = arith.constant 0 : index
    %c0_35 = arith.constant 0 : index
    %77 = vector.load %arg3[%c6, %c0_34, %c0_35] : memref<9x1x48xf32, #tpu.memory_space<vmem>>, vector<1x1x48xf32>
    %78 = vector.shape_cast %77 : vector<1x1x48xf32> to vector<1x48xf32>
    %79 = vector.broadcast %78 : vector<1x48xf32> to vector<256x48xf32>
    %80 = arith.mulf %76, %79 : vector<256x48xf32>
    %81 = vector.broadcast %26 : vector<256x1xf32> to vector<256x48xf32>
    %82 = arith.mulf %80, %81 : vector<256x48xf32>
    %83 = arith.addf %75, %82 : vector<256x48xf32>
    %c33 = arith.constant 33 : index
    %c0_36 = arith.constant 0 : index
    %84 = vector.load %arg5[%c33, %c0_36] : memref<290x48xf32, #tpu.memory_space<vmem>>, vector<256x48xf32>
    %c7 = arith.constant 7 : index
    %c0_37 = arith.constant 0 : index
    %c0_38 = arith.constant 0 : index
    %85 = vector.load %arg3[%c7, %c0_37, %c0_38] : memref<9x1x48xf32, #tpu.memory_space<vmem>>, vector<1x1x48xf32>
    %86 = vector.shape_cast %85 : vector<1x1x48xf32> to vector<1x48xf32>
    %87 = vector.broadcast %86 : vector<1x48xf32> to vector<256x48xf32>
    %88 = arith.mulf %84, %87 : vector<256x48xf32>
    %89 = arith.addf %83, %88 : vector<256x48xf32>
    %c34 = arith.constant 34 : index
    %c0_39 = arith.constant 0 : index
    %90 = vector.load %arg5[%c34, %c0_39] : memref<290x48xf32, #tpu.memory_space<vmem>>, vector<256x48xf32>
    %c8 = arith.constant 8 : index
    %c0_40 = arith.constant 0 : index
    %c0_41 = arith.constant 0 : index
    %91 = vector.load %arg3[%c8, %c0_40, %c0_41] : memref<9x1x48xf32, #tpu.memory_space<vmem>>, vector<1x1x48xf32>
    %92 = vector.shape_cast %91 : vector<1x1x48xf32> to vector<1x48xf32>
    %93 = vector.broadcast %92 : vector<1x48xf32> to vector<256x48xf32>
    %94 = arith.mulf %90, %93 : vector<256x48xf32>
    %95 = vector.broadcast %30 : vector<256x1xf32> to vector<256x48xf32>
    %96 = arith.mulf %94, %95 : vector<256x48xf32>
    %97 = arith.addf %89, %96 : vector<256x48xf32>
    %c0_42 = arith.constant 0 : index
    %c0_43 = arith.constant 0 : index
    %c0_44 = arith.constant 0 : index
    %98 = vector.load %arg4[%c0_42, %c0_43, %c0_44] : memref<1x256x48xf32, #tpu.memory_space<vmem>>, vector<1x256x48xf32>
    %99 = vector.shape_cast %98 : vector<1x256x48xf32> to vector<256x48xf32>
    %100 = vector.shape_cast %97 : vector<256x48xf32> to vector<1x256x48xf32>
    tpu.vector_store %arg4[%c0_42, %c0_43, %c0_44], %100 {strides = array<i32>} : memref<1x256x48xf32, #tpu.memory_space<vmem>>, vector<1x256x48xf32>,
    return
  }
  func.func @transform_0(%arg0: i32) -> (i32, i32, i32) {
    %c0_i32 = arith.constant 0 : i32
    %c0_i32_0 = arith.constant 0 : i32
    %c0_i32_1 = arith.constant 0 : i32
    return %arg0, %c0_i32, %c0_i32_0 : i32, i32, i32
  }
  func.func @transform_1(%arg0: i32) -> (i32, i32) {
    %c0_i32 = arith.constant 0 : i32
    %c0_i32_0 = arith.constant 0 : i32
    %c0_i32_1 = arith.constant 0 : i32
    return %c0_i32, %c0_i32_0 : i32, i32
  }
  func.func @transform_2(%arg0: i32) -> (i32, i32, i32) {
    %c0_i32 = arith.constant 0 : i32
    %c0_i32_0 = arith.constant 0 : i32
    %c0_i32_1 = arith.constant 0 : i32
    %c0_i32_2 = arith.constant 0 : i32
    return %c0_i32, %c0_i32_0, %c0_i32_1 : i32, i32, i32
  }
  func.func @transform_3(%arg0: i32) -> (i32, i32, i32) {
    %c0_i32 = arith.constant 0 : i32
    %c0_i32_0 = arith.constant 0 : i32
    %c0_i32_1 = arith.constant 0 : i32
    return %arg0, %c0_i32, %c0_i32_0 : i32, i32, i32
  }
}

module attributes {stable_mosaic.version = 11 : i64} {
  func.func @kernel(%arg0: i32, %arg1: memref<4x1xf32, #tpu.memory_space<vmem>>, %arg2: memref<1x48x256xf32, #tpu.memory_space<vmem>>, %arg3: memref<16x16xf32, #tpu.memory_space<vmem>>, %arg4: memref<1x16x256xf32, #tpu.memory_space<vmem>>) attributes {dimension_semantics = [#tpu.dimension_semantics<parallel>], iteration_bounds = array<i64: 2>, scalar_prefetch = 0 : i64, scratch_operands = 0 : i64, tpu.core_type = #tpu.core_type<tc>, window_params = [{pipeline_mode = #tpu.pipeline_mode<synchronous>, transform_indices = @transform_0, window_bounds = array<i64: 4, 1>}, {transform_indices = @transform_1, window_bounds = array<i64: 1, 48, 256>}, {pipeline_mode = #tpu.pipeline_mode<synchronous>, transform_indices = @transform_2, window_bounds = array<i64: 16, 16>}, {transform_indices = @transform_3, window_bounds = array<i64: 1, 16, 256>}]} {
    %cst = arith.constant 0.000000e+00 : f32
    %0 = vector.broadcast %cst : f32 to vector<16x256xf32>
    %c0 = arith.constant 0 : index
    %c0_0 = arith.constant 0 : index
    %c0_1 = arith.constant 0 : index
    %1 = vector.load %arg2[%c0, %c0_0, %c0_1] : memref<1x48x256xf32, #tpu.memory_space<vmem>>, vector<1x4x256xf32>
    %2 = vector.shape_cast %1 : vector<1x4x256xf32> to vector<4x256xf32>
    %c0_2 = arith.constant 0 : index
    %c16 = arith.constant 16 : index
    %c0_3 = arith.constant 0 : index
    %3 = vector.load %arg2[%c0_2, %c16, %c0_3] : memref<1x48x256xf32, #tpu.memory_space<vmem>>, vector<1x4x256xf32>
    %4 = vector.shape_cast %3 : vector<1x4x256xf32> to vector<4x256xf32>
    %c0_4 = arith.constant 0 : index
    %c32 = arith.constant 32 : index
    %c0_5 = arith.constant 0 : index
    %5 = vector.load %arg2[%c0_4, %c32, %c0_5] : memref<1x48x256xf32, #tpu.memory_space<vmem>>, vector<1x4x256xf32>
    %6 = vector.shape_cast %5 : vector<1x4x256xf32> to vector<4x256xf32>
    %7 = arith.mulf %2, %2 : vector<4x256xf32>
    %cst_6 = arith.constant dense<0.000000e+00> : vector<4xf32>
    %8 = vector.multi_reduction <add>, %7, %cst_6 [1] : vector<4x256xf32> to vector<4xf32>
    %9 = vector.shape_cast %8 : vector<4xf32> to vector<4x1xf32>
    %10 = math.sqrt %9 : vector<4x1xf32>
    %cst_7 = arith.constant 9.99999996E-13 : f32
    %11 = vector.broadcast %cst_7 : f32 to vector<4x1xf32>
    %12 = arith.maximumf %10, %11 : vector<4x1xf32>
    %13 = vector.broadcast %12 : vector<4x1xf32> to vector<4x256xf32>
    %14 = arith.divf %2, %13 : vector<4x256xf32>
    %15 = arith.mulf %4, %4 : vector<4x256xf32>
    %cst_8 = arith.constant dense<0.000000e+00> : vector<4xf32>
    %16 = vector.multi_reduction <add>, %15, %cst_8 [1] : vector<4x256xf32> to vector<4xf32>
    %17 = vector.shape_cast %16 : vector<4xf32> to vector<4x1xf32>
    %18 = math.sqrt %17 : vector<4x1xf32>
    %cst_9 = arith.constant 9.99999996E-13 : f32
    %19 = vector.broadcast %cst_9 : f32 to vector<4x1xf32>
    %20 = arith.maximumf %18, %19 : vector<4x1xf32>
    %21 = vector.broadcast %20 : vector<4x1xf32> to vector<4x256xf32>
    %22 = arith.divf %4, %21 : vector<4x256xf32>
    %cst_10 = arith.constant dense<0.000000e+00> : vector<4x4xf32>
    %23 = tpu.matmul %14, %22, %cst_10 {dimension_numbers = #tpu.dot_dimension_numbers<[1], [1], [0], [0], [0, 0, 1, 0], [], []>} : vector<4x256xf32>, vector<4x256xf32>, vector<4x4xf32> -> vector<4x4xf32>
    %c0_11 = arith.constant 0 : index
    %c0_12 = arith.constant 0 : index
    %24 = vector.load %arg1[%c0_11, %c0_12] : memref<4x1xf32, #tpu.memory_space<vmem>>, vector<1x1xf32>
    %25 = vector.broadcast %24 : vector<1x1xf32> to vector<4x4xf32>
    %26 = arith.mulf %23, %25 : vector<4x4xf32>
    %cst_13 = arith.constant dense<0xFF800000> : vector<4xf32>
    %27 = vector.multi_reduction <maximumf>, %26, %cst_13 [1] : vector<4x4xf32> to vector<4xf32>
    %28 = vector.shape_cast %27 : vector<4xf32> to vector<4x1xf32>
    %29 = vector.broadcast %28 : vector<4x1xf32> to vector<4x4xf32>
    %30 = arith.subf %26, %29 : vector<4x4xf32>
    %31 = math.exp %30 : vector<4x4xf32>
    %cst_14 = arith.constant dense<0.000000e+00> : vector<4xf32>
    %32 = vector.multi_reduction <add>, %31, %cst_14 [1] : vector<4x4xf32> to vector<4xf32>
    %33 = vector.shape_cast %32 : vector<4xf32> to vector<4x1xf32>
    %34 = vector.broadcast %33 : vector<4x1xf32> to vector<4x4xf32>
    %35 = arith.divf %31, %34 : vector<4x4xf32>
    %cst_15 = arith.constant dense<0.000000e+00> : vector<4x256xf32>
    %36 = tpu.matmul %35, %6, %cst_15 {dimension_numbers = #tpu.dot_dimension_numbers<[1], [0], [0], [1], [0, 0, 1, 1], [], []>} : vector<4x4xf32>, vector<4x256xf32>, vector<4x256xf32> -> vector<4x256xf32>
    %c0_16 = arith.constant 0 : index
    %c0_17 = arith.constant 0 : index
    %37 = vector.load %arg3[%c0_16, %c0_17] : memref<16x16xf32, #tpu.memory_space<vmem>>, vector<16x4xf32>
    %cst_18 = arith.constant dense<0.000000e+00> : vector<16x256xf32>
    %38 = tpu.matmul %37, %36, %cst_18 {dimension_numbers = #tpu.dot_dimension_numbers<[1], [0], [0], [1], [0, 0, 1, 1], [], []>} : vector<16x4xf32>, vector<4x256xf32>, vector<16x256xf32> -> vector<16x256xf32>
    %39 = arith.addf %0, %38 : vector<16x256xf32>
    %c0_19 = arith.constant 0 : index
    %c4 = arith.constant 4 : index
    %c0_20 = arith.constant 0 : index
    %40 = vector.load %arg2[%c0_19, %c4, %c0_20] : memref<1x48x256xf32, #tpu.memory_space<vmem>>, vector<1x4x256xf32>
    %41 = vector.shape_cast %40 : vector<1x4x256xf32> to vector<4x256xf32>
    %c0_21 = arith.constant 0 : index
    %c20 = arith.constant 20 : index
    %c0_22 = arith.constant 0 : index
    %42 = vector.load %arg2[%c0_21, %c20, %c0_22] : memref<1x48x256xf32, #tpu.memory_space<vmem>>, vector<1x4x256xf32>
    %43 = vector.shape_cast %42 : vector<1x4x256xf32> to vector<4x256xf32>
    %c0_23 = arith.constant 0 : index
    %c36 = arith.constant 36 : index
    %c0_24 = arith.constant 0 : index
    %44 = vector.load %arg2[%c0_23, %c36, %c0_24] : memref<1x48x256xf32, #tpu.memory_space<vmem>>, vector<1x4x256xf32>
    %45 = vector.shape_cast %44 : vector<1x4x256xf32> to vector<4x256xf32>
    %46 = arith.mulf %41, %41 : vector<4x256xf32>
    %cst_25 = arith.constant dense<0.000000e+00> : vector<4xf32>
    %47 = vector.multi_reduction <add>, %46, %cst_25 [1] : vector<4x256xf32> to vector<4xf32>
    %48 = vector.shape_cast %47 : vector<4xf32> to vector<4x1xf32>
    %49 = math.sqrt %48 : vector<4x1xf32>
    %cst_26 = arith.constant 9.99999996E-13 : f32
    %50 = vector.broadcast %cst_26 : f32 to vector<4x1xf32>
    %51 = arith.maximumf %49, %50 : vector<4x1xf32>
    %52 = vector.broadcast %51 : vector<4x1xf32> to vector<4x256xf32>
    %53 = arith.divf %41, %52 : vector<4x256xf32>
    %54 = arith.mulf %43, %43 : vector<4x256xf32>
    %cst_27 = arith.constant dense<0.000000e+00> : vector<4xf32>
    %55 = vector.multi_reduction <add>, %54, %cst_27 [1] : vector<4x256xf32> to vector<4xf32>
    %56 = vector.shape_cast %55 : vector<4xf32> to vector<4x1xf32>
    %57 = math.sqrt %56 : vector<4x1xf32>
    %cst_28 = arith.constant 9.99999996E-13 : f32
    %58 = vector.broadcast %cst_28 : f32 to vector<4x1xf32>
    %59 = arith.maximumf %57, %58 : vector<4x1xf32>
    %60 = vector.broadcast %59 : vector<4x1xf32> to vector<4x256xf32>
    %61 = arith.divf %43, %60 : vector<4x256xf32>
    %cst_29 = arith.constant dense<0.000000e+00> : vector<4x4xf32>
    %62 = tpu.matmul %53, %61, %cst_29 {dimension_numbers = #tpu.dot_dimension_numbers<[1], [1], [0], [0], [0, 0, 1, 0], [], []>} : vector<4x256xf32>, vector<4x256xf32>, vector<4x4xf32> -> vector<4x4xf32>
    %c1 = arith.constant 1 : index
    %c0_30 = arith.constant 0 : index
    %63 = vector.load %arg1[%c1, %c0_30] : memref<4x1xf32, #tpu.memory_space<vmem>>, vector<1x1xf32>
    %64 = vector.broadcast %63 : vector<1x1xf32> to vector<4x4xf32>
    %65 = arith.mulf %62, %64 : vector<4x4xf32>
    %cst_31 = arith.constant dense<0xFF800000> : vector<4xf32>
    %66 = vector.multi_reduction <maximumf>, %65, %cst_31 [1] : vector<4x4xf32> to vector<4xf32>
    %67 = vector.shape_cast %66 : vector<4xf32> to vector<4x1xf32>
    %68 = vector.broadcast %67 : vector<4x1xf32> to vector<4x4xf32>
    %69 = arith.subf %65, %68 : vector<4x4xf32>
    %70 = math.exp %69 : vector<4x4xf32>
    %cst_32 = arith.constant dense<0.000000e+00> : vector<4xf32>
    %71 = vector.multi_reduction <add>, %70, %cst_32 [1] : vector<4x4xf32> to vector<4xf32>
    %72 = vector.shape_cast %71 : vector<4xf32> to vector<4x1xf32>
    %73 = vector.broadcast %72 : vector<4x1xf32> to vector<4x4xf32>
    %74 = arith.divf %70, %73 : vector<4x4xf32>
    %cst_33 = arith.constant dense<0.000000e+00> : vector<4x256xf32>
    %75 = tpu.matmul %74, %45, %cst_33 {dimension_numbers = #tpu.dot_dimension_numbers<[1], [0], [0], [1], [0, 0, 1, 1], [], []>} : vector<4x4xf32>, vector<4x256xf32>, vector<4x256xf32> -> vector<4x256xf32>
    %c0_34 = arith.constant 0 : index
    %c4_35 = arith.constant 4 : index
    %76 = vector.load %arg3[%c0_34, %c4_35] : memref<16x16xf32, #tpu.memory_space<vmem>>, vector<16x4xf32>
    %cst_36 = arith.constant dense<0.000000e+00> : vector<16x256xf32>
    %77 = tpu.matmul %76, %75, %cst_36 {dimension_numbers = #tpu.dot_dimension_numbers<[1], [0], [0], [1], [0, 0, 1, 1], [], []>} : vector<16x4xf32>, vector<4x256xf32>, vector<16x256xf32> -> vector<16x256xf32>
    %78 = arith.addf %39, %77 : vector<16x256xf32>
    %c0_37 = arith.constant 0 : index
    %c8 = arith.constant 8 : index
    %c0_38 = arith.constant 0 : index
    %79 = vector.load %arg2[%c0_37, %c8, %c0_38] : memref<1x48x256xf32, #tpu.memory_space<vmem>>, vector<1x4x256xf32>
    %80 = vector.shape_cast %79 : vector<1x4x256xf32> to vector<4x256xf32>
    %c0_39 = arith.constant 0 : index
    %c24 = arith.constant 24 : index
    %c0_40 = arith.constant 0 : index
    %81 = vector.load %arg2[%c0_39, %c24, %c0_40] : memref<1x48x256xf32, #tpu.memory_space<vmem>>, vector<1x4x256xf32>
    %82 = vector.shape_cast %81 : vector<1x4x256xf32> to vector<4x256xf32>
    %c0_41 = arith.constant 0 : index
    %c40 = arith.constant 40 : index
    %c0_42 = arith.constant 0 : index
    %83 = vector.load %arg2[%c0_41, %c40, %c0_42] : memref<1x48x256xf32, #tpu.memory_space<vmem>>, vector<1x4x256xf32>
    %84 = vector.shape_cast %83 : vector<1x4x256xf32> to vector<4x256xf32>
    %85 = arith.mulf %80, %80 : vector<4x256xf32>
    %cst_43 = arith.constant dense<0.000000e+00> : vector<4xf32>
    %86 = vector.multi_reduction <add>, %85, %cst_43 [1] : vector<4x256xf32> to vector<4xf32>
    %87 = vector.shape_cast %86 : vector<4xf32> to vector<4x1xf32>
    %88 = math.sqrt %87 : vector<4x1xf32>
    %cst_44 = arith.constant 9.99999996E-13 : f32
    %89 = vector.broadcast %cst_44 : f32 to vector<4x1xf32>
    %90 = arith.maximumf %88, %89 : vector<4x1xf32>
    %91 = vector.broadcast %90 : vector<4x1xf32> to vector<4x256xf32>
    %92 = arith.divf %80, %91 : vector<4x256xf32>
    %93 = arith.mulf %82, %82 : vector<4x256xf32>
    %cst_45 = arith.constant dense<0.000000e+00> : vector<4xf32>
    %94 = vector.multi_reduction <add>, %93, %cst_45 [1] : vector<4x256xf32> to vector<4xf32>
    %95 = vector.shape_cast %94 : vector<4xf32> to vector<4x1xf32>
    %96 = math.sqrt %95 : vector<4x1xf32>
    %cst_46 = arith.constant 9.99999996E-13 : f32
    %97 = vector.broadcast %cst_46 : f32 to vector<4x1xf32>
    %98 = arith.maximumf %96, %97 : vector<4x1xf32>
    %99 = vector.broadcast %98 : vector<4x1xf32> to vector<4x256xf32>
    %100 = arith.divf %82, %99 : vector<4x256xf32>
    %cst_47 = arith.constant dense<0.000000e+00> : vector<4x4xf32>
    %101 = tpu.matmul %92, %100, %cst_47 {dimension_numbers = #tpu.dot_dimension_numbers<[1], [1], [0], [0], [0, 0, 1, 0], [], []>} : vector<4x256xf32>, vector<4x256xf32>, vector<4x4xf32> -> vector<4x4xf32>
    %c2 = arith.constant 2 : index
    %c0_48 = arith.constant 0 : index
    %102 = vector.load %arg1[%c2, %c0_48] : memref<4x1xf32, #tpu.memory_space<vmem>>, vector<1x1xf32>
    %103 = vector.broadcast %102 : vector<1x1xf32> to vector<4x4xf32>
    %104 = arith.mulf %101, %103 : vector<4x4xf32>
    %cst_49 = arith.constant dense<0xFF800000> : vector<4xf32>
    %105 = vector.multi_reduction <maximumf>, %104, %cst_49 [1] : vector<4x4xf32> to vector<4xf32>
    %106 = vector.shape_cast %105 : vector<4xf32> to vector<4x1xf32>
    %107 = vector.broadcast %106 : vector<4x1xf32> to vector<4x4xf32>
    %108 = arith.subf %104, %107 : vector<4x4xf32>
    %109 = math.exp %108 : vector<4x4xf32>
    %cst_50 = arith.constant dense<0.000000e+00> : vector<4xf32>
    %110 = vector.multi_reduction <add>, %109, %cst_50 [1] : vector<4x4xf32> to vector<4xf32>
    %111 = vector.shape_cast %110 : vector<4xf32> to vector<4x1xf32>
    %112 = vector.broadcast %111 : vector<4x1xf32> to vector<4x4xf32>
    %113 = arith.divf %109, %112 : vector<4x4xf32>
    %cst_51 = arith.constant dense<0.000000e+00> : vector<4x256xf32>
    %114 = tpu.matmul %113, %84, %cst_51 {dimension_numbers = #tpu.dot_dimension_numbers<[1], [0], [0], [1], [0, 0, 1, 1], [], []>} : vector<4x4xf32>, vector<4x256xf32>, vector<4x256xf32> -> vector<4x256xf32>
    %c0_52 = arith.constant 0 : index
    %c8_53 = arith.constant 8 : index
    %115 = vector.load %arg3[%c0_52, %c8_53] : memref<16x16xf32, #tpu.memory_space<vmem>>, vector<16x4xf32>
    %cst_54 = arith.constant dense<0.000000e+00> : vector<16x256xf32>
    %116 = tpu.matmul %115, %114, %cst_54 {dimension_numbers = #tpu.dot_dimension_numbers<[1], [0], [0], [1], [0, 0, 1, 1], [], []>} : vector<16x4xf32>, vector<4x256xf32>, vector<16x256xf32> -> vector<16x256xf32>
    %117 = arith.addf %78, %116 : vector<16x256xf32>
    %c0_55 = arith.constant 0 : index
    %c12 = arith.constant 12 : index
    %c0_56 = arith.constant 0 : index
    %118 = vector.load %arg2[%c0_55, %c12, %c0_56] : memref<1x48x256xf32, #tpu.memory_space<vmem>>, vector<1x4x256xf32>
    %119 = vector.shape_cast %118 : vector<1x4x256xf32> to vector<4x256xf32>
    %c0_57 = arith.constant 0 : index
    %c28 = arith.constant 28 : index
    %c0_58 = arith.constant 0 : index
    %120 = vector.load %arg2[%c0_57, %c28, %c0_58] : memref<1x48x256xf32, #tpu.memory_space<vmem>>, vector<1x4x256xf32>
    %121 = vector.shape_cast %120 : vector<1x4x256xf32> to vector<4x256xf32>
    %c0_59 = arith.constant 0 : index
    %c44 = arith.constant 44 : index
    %c0_60 = arith.constant 0 : index
    %122 = vector.load %arg2[%c0_59, %c44, %c0_60] : memref<1x48x256xf32, #tpu.memory_space<vmem>>, vector<1x4x256xf32>
    %123 = vector.shape_cast %122 : vector<1x4x256xf32> to vector<4x256xf32>
    %124 = arith.mulf %119, %119 : vector<4x256xf32>
    %cst_61 = arith.constant dense<0.000000e+00> : vector<4xf32>
    %125 = vector.multi_reduction <add>, %124, %cst_61 [1] : vector<4x256xf32> to vector<4xf32>
    %126 = vector.shape_cast %125 : vector<4xf32> to vector<4x1xf32>
    %127 = math.sqrt %126 : vector<4x1xf32>
    %cst_62 = arith.constant 9.99999996E-13 : f32
    %128 = vector.broadcast %cst_62 : f32 to vector<4x1xf32>
    %129 = arith.maximumf %127, %128 : vector<4x1xf32>
    %130 = vector.broadcast %129 : vector<4x1xf32> to vector<4x256xf32>
    %131 = arith.divf %119, %130 : vector<4x256xf32>
    %132 = arith.mulf %121, %121 : vector<4x256xf32>
    %cst_63 = arith.constant dense<0.000000e+00> : vector<4xf32>
    %133 = vector.multi_reduction <add>, %132, %cst_63 [1] : vector<4x256xf32> to vector<4xf32>
    %134 = vector.shape_cast %133 : vector<4xf32> to vector<4x1xf32>
    %135 = math.sqrt %134 : vector<4x1xf32>
    %cst_64 = arith.constant 9.99999996E-13 : f32
    %136 = vector.broadcast %cst_64 : f32 to vector<4x1xf32>
    %137 = arith.maximumf %135, %136 : vector<4x1xf32>
    %138 = vector.broadcast %137 : vector<4x1xf32> to vector<4x256xf32>
    %139 = arith.divf %121, %138 : vector<4x256xf32>
    %cst_65 = arith.constant dense<0.000000e+00> : vector<4x4xf32>
    %140 = tpu.matmul %131, %139, %cst_65 {dimension_numbers = #tpu.dot_dimension_numbers<[1], [1], [0], [0], [0, 0, 1, 0], [], []>} : vector<4x256xf32>, vector<4x256xf32>, vector<4x4xf32> -> vector<4x4xf32>
    %c3 = arith.constant 3 : index
    %c0_66 = arith.constant 0 : index
    %141 = vector.load %arg1[%c3, %c0_66] : memref<4x1xf32, #tpu.memory_space<vmem>>, vector<1x1xf32>
    %142 = vector.broadcast %141 : vector<1x1xf32> to vector<4x4xf32>
    %143 = arith.mulf %140, %142 : vector<4x4xf32>
    %cst_67 = arith.constant dense<0xFF800000> : vector<4xf32>
    %144 = vector.multi_reduction <maximumf>, %143, %cst_67 [1] : vector<4x4xf32> to vector<4xf32>
    %145 = vector.shape_cast %144 : vector<4xf32> to vector<4x1xf32>
    %146 = vector.broadcast %145 : vector<4x1xf32> to vector<4x4xf32>
    %147 = arith.subf %143, %146 : vector<4x4xf32>
    %148 = math.exp %147 : vector<4x4xf32>
    %cst_68 = arith.constant dense<0.000000e+00> : vector<4xf32>
    %149 = vector.multi_reduction <add>, %148, %cst_68 [1] : vector<4x4xf32> to vector<4xf32>
    %150 = vector.shape_cast %149 : vector<4xf32> to vector<4x1xf32>
    %151 = vector.broadcast %150 : vector<4x1xf32> to vector<4x4xf32>
    %152 = arith.divf %148, %151 : vector<4x4xf32>
    %cst_69 = arith.constant dense<0.000000e+00> : vector<4x256xf32>
    %153 = tpu.matmul %152, %123, %cst_69 {dimension_numbers = #tpu.dot_dimension_numbers<[1], [0], [0], [1], [0, 0, 1, 1], [], []>} : vector<4x4xf32>, vector<4x256xf32>, vector<4x256xf32> -> vector<4x256xf32>
    %c0_70 = arith.constant 0 : index
    %c12_71 = arith.constant 12 : index
    %154 = vector.load %arg3[%c0_70, %c12_71] : memref<16x16xf32, #tpu.memory_space<vmem>>, vector<16x4xf32>
    %cst_72 = arith.constant dense<0.000000e+00> : vector<16x256xf32>
    %155 = tpu.matmul %154, %153, %cst_72 {dimension_numbers = #tpu.dot_dimension_numbers<[1], [0], [0], [1], [0, 0, 1, 1], [], []>} : vector<16x4xf32>, vector<4x256xf32>, vector<16x256xf32> -> vector<16x256xf32>
    %156 = arith.addf %117, %155 : vector<16x256xf32>
    %c0_73 = arith.constant 0 : index
    %c0_74 = arith.constant 0 : index
    %c0_75 = arith.constant 0 : index
    %157 = vector.load %arg4[%c0_73, %c0_74, %c0_75] : memref<1x16x256xf32, #tpu.memory_space<vmem>>, vector<1x16x256xf32>
    %158 = vector.shape_cast %157 : vector<1x16x256xf32> to vector<16x256xf32>
    %159 = vector.shape_cast %156 : vector<16x256xf32> to vector<1x16x256xf32>
    tpu.vector_store %arg4[%c0_73, %c0_74, %c0_75], %159 {strides = array<i32>} : memref<1x16x256xf32, #tpu.memory_space<vmem>>, vector<1x16x256xf32>,
    return
  }
  func.func @transform_0(%arg0: i32) -> (i32, i32) {
    %c0_i32 = arith.constant 0 : i32
    %c0_i32_0 = arith.constant 0 : i32
    %c0_i32_1 = arith.constant 0 : i32
    return %c0_i32, %c0_i32_0 : i32, i32
  }
  func.func @transform_1(%arg0: i32) -> (i32, i32, i32) {
    %c0_i32 = arith.constant 0 : i32
    %c0_i32_0 = arith.constant 0 : i32
    %c0_i32_1 = arith.constant 0 : i32
    return %arg0, %c0_i32, %c0_i32_0 : i32, i32, i32
  }
  func.func @transform_2(%arg0: i32) -> (i32, i32) {
    %c0_i32 = arith.constant 0 : i32
    %c0_i32_0 = arith.constant 0 : i32
    %c0_i32_1 = arith.constant 0 : i32
    return %c0_i32, %c0_i32_0 : i32, i32
  }
  func.func @transform_3(%arg0: i32) -> (i32, i32, i32) {
    %c0_i32 = arith.constant 0 : i32
    %c0_i32_0 = arith.constant 0 : i32
    %c0_i32_1 = arith.constant 0 : i32
    return %arg0, %c0_i32, %c0_i32_0 : i32, i32, i32
  }
}

module attributes {stable_mosaic.version = 11 : i64} {
  func.func @kernel(%arg0: i32, %arg1: memref<1x290x48xf32, #tpu.memory_space<vmem>>, %arg2: memref<1x256x16xf32, #tpu.memory_space<vmem>>, %arg3: memref<48x36xbf16, #tpu.memory_space<vmem>>, %arg4: memref<1x36xf32, #tpu.memory_space<vmem>>, %arg5: memref<9x36x16xbf16, #tpu.memory_space<vmem>>, %arg6: memref<1x16xf32, #tpu.memory_space<vmem>>, %arg7: memref<1x256x16xf32, #tpu.memory_space<vmem>>, %arg8: memref<290x36xf32, #tpu.memory_space<vmem>>) attributes {dimension_semantics = [#tpu.dimension_semantics<parallel>], iteration_bounds = array<i64: 2>, scalar_prefetch = 0 : i64, scratch_operands = 1 : i64, tpu.core_type = #tpu.core_type<tc>, window_params = [{transform_indices = @transform_0, window_bounds = array<i64: 1, 290, 48>}, {transform_indices = @transform_1, window_bounds = array<i64: 1, 256, 16>}, {pipeline_mode = #tpu.pipeline_mode<synchronous>, transform_indices = @transform_2, window_bounds = array<i64: 48, 36>}, {pipeline_mode = #tpu.pipeline_mode<synchronous>, transform_indices = @transform_3, window_bounds = array<i64: 1, 36>}, {pipeline_mode = #tpu.pipeline_mode<synchronous>, transform_indices = @transform_4, window_bounds = array<i64: 9, 36, 16>}, {pipeline_mode = #tpu.pipeline_mode<synchronous>, transform_indices = @transform_5, window_bounds = array<i64: 1, 16>}, {transform_indices = @transform_6, window_bounds = array<i64: 1, 256, 16>}]} {
    %0 = tpu.iota {dimensions = array<i32: 0>} : vector<290x1xi32>
    %c17_i32 = arith.constant 17 : i32
    %1 = vector.broadcast %c17_i32 : i32 to vector<290x1xi32>
    %2 = arith.cmpi sge, %0, %1 : vector<290x1xi32>
    %c273_i32 = arith.constant 273 : i32
    %3 = vector.broadcast %c273_i32 : i32 to vector<290x1xi32>
    %4 = arith.cmpi slt, %0, %3 : vector<290x1xi32>
    %5 = arith.andi %2, %4 : vector<290x1xi1>
    %6 = arith.extui %5 : vector<290x1xi1> to vector<290x1xi32>
    %7 = arith.sitofp %6 : vector<290x1xi32> to vector<290x1xf32>
    %c0 = arith.constant 0 : index
    %c0_0 = arith.constant 0 : index
    %c0_1 = arith.constant 0 : index
    %8 = vector.load %arg1[%c0, %c0_0, %c0_1] : memref<1x290x48xf32, #tpu.memory_space<vmem>>, vector<1x290x48xf32>
    %9 = vector.shape_cast %8 : vector<1x290x48xf32> to vector<290x48xf32>
    %10 = arith.truncf %9 : vector<290x48xf32> to vector<290x48xbf16>
    %c0_2 = arith.constant 0 : index
    %c0_3 = arith.constant 0 : index
    %11 = vector.load %arg3[%c0_2, %c0_3] : memref<48x36xbf16, #tpu.memory_space<vmem>>, vector<48x36xbf16>
    %cst = arith.constant dense<0.000000e+00> : vector<290x36xf32>
    %12 = tpu.matmul %10, %11, %cst {dimension_numbers = #tpu.dot_dimension_numbers<[1], [0], [0], [1], [0, 0, 1, 1], [], []>} : vector<290x48xbf16>, vector<48x36xbf16>, vector<290x36xf32> -> vector<290x36xf32>
    %c0_4 = arith.constant 0 : index
    %c0_5 = arith.constant 0 : index
    %13 = vector.load %arg4[%c0_4, %c0_5] : memref<1x36xf32, #tpu.memory_space<vmem>>, vector<1x36xf32>
    %14 = vector.broadcast %13 : vector<1x36xf32> to vector<290x36xf32>
    %15 = arith.addf %12, %14 : vector<290x36xf32>
    %16 = vector.broadcast %7 : vector<290x1xf32> to vector<290x36xf32>
    %17 = arith.mulf %15, %16 : vector<290x36xf32>
    %c0_6 = arith.constant 0 : index
    %c0_7 = arith.constant 0 : index
    %18 = vector.load %arg8[%c0_6, %c0_7] : memref<290x36xf32, #tpu.memory_space<vmem>>, vector<290x36xf32>
    tpu.vector_store %arg8[%c0_6, %c0_7], %17 {strides = array<i32>} : memref<290x36xf32, #tpu.memory_space<vmem>>, vector<290x36xf32>,
    %19 = tpu.iota {dimensions = array<i32: 0>} : vector<256x1xi32>
    %c16_i32 = arith.constant 16 : i32
    %c0_i32 = arith.constant 0 : i32
    %20 = arith.cmpi eq, %c16_i32, %c0_i32 : i32
    %c1_i32 = arith.constant 1 : i32
    %21 = arith.select %20, %c1_i32, %c16_i32 : i32
    %22 = vector.broadcast %21 : i32 to vector<256x1xi32>
    %23 = arith.remsi %19, %22 : vector<256x1xi32>
    %c0_i32_8 = arith.constant 0 : i32
    %24 = vector.broadcast %c0_i32_8 : i32 to vector<256x1xi32>
    %25 = arith.cmpi ne, %23, %24 : vector<256x1xi32>
    %c0_i32_9 = arith.constant 0 : i32
    %26 = vector.broadcast %c0_i32_9 : i32 to vector<256x1xi32>
    %27 = arith.cmpi slt, %23, %26 : vector<256x1xi32>
    %c0_i32_10 = arith.constant 0 : i32
    %28 = arith.cmpi slt, %21, %c0_i32_10 : i32
    %29 = vector.broadcast %28 : i1 to vector<256x1xi1>
    %30 = vector.broadcast %29 : vector<256x1xi1> to vector<256x1xi1>
    %31 = arith.xori %27, %30 : vector<256x1xi1>
    %32 = arith.andi %31, %25 : vector<256x1xi1>
    %33 = vector.broadcast %21 : i32 to vector<256x1xi32>
    %34 = arith.addi %23, %33 : vector<256x1xi32>
    %35 = arith.select %32, %34, %23 : vector<256x1xi1>, vector<256x1xi32>
    %c0_i32_11 = arith.constant 0 : i32
    %36 = vector.broadcast %c0_i32_11 : i32 to vector<256x1xi32>
    %37 = arith.cmpi ne, %35, %36 : vector<256x1xi32>
    %38 = arith.extui %37 : vector<256x1xi1> to vector<256x1xi32>
    %39 = arith.sitofp %38 : vector<256x1xi32> to vector<256x1xf32>
    %c15_i32 = arith.constant 15 : i32
    %40 = vector.broadcast %c15_i32 : i32 to vector<256x1xi32>
    %41 = arith.cmpi ne, %35, %40 : vector<256x1xi32>
    %42 = arith.extui %41 : vector<256x1xi1> to vector<256x1xi32>
    %43 = arith.sitofp %42 : vector<256x1xi32> to vector<256x1xf32>
    %c0_12 = arith.constant 0 : index
    %c0_13 = arith.constant 0 : index
    %c0_14 = arith.constant 0 : index
    %44 = vector.load %arg2[%c0_12, %c0_13, %c0_14] : memref<1x256x16xf32, #tpu.memory_space<vmem>>, vector<1x256x16xf32>
    %45 = vector.shape_cast %44 : vector<1x256x16xf32> to vector<256x16xf32>
    %c0_15 = arith.constant 0 : index
    %c0_16 = arith.constant 0 : index
    %46 = vector.load %arg6[%c0_15, %c0_16] : memref<1x16xf32, #tpu.memory_space<vmem>>, vector<1x16xf32>
    %47 = vector.broadcast %46 : vector<1x16xf32> to vector<256x16xf32>
    %48 = arith.addf %45, %47 : vector<256x16xf32>
    %c0_17 = arith.constant 0 : index
    %c0_18 = arith.constant 0 : index
    %49 = vector.load %arg8[%c0_17, %c0_18] : memref<290x36xf32, #tpu.memory_space<vmem>>, vector<256x36xf32>
    %50 = arith.truncf %49 : vector<256x36xf32> to vector<256x36xbf16>
    %c0_19 = arith.constant 0 : index
    %c0_20 = arith.constant 0 : index
    %c0_21 = arith.constant 0 : index
    %51 = vector.load %arg5[%c0_19, %c0_20, %c0_21] : memref<9x36x16xbf16, #tpu.memory_space<vmem>>, vector<1x36x16xbf16>
    %52 = vector.shape_cast %51 : vector<1x36x16xbf16> to vector<36x16xbf16>
    %cst_22 = arith.constant dense<0.000000e+00> : vector<256x16xf32>
    %53 = tpu.matmul %50, %52, %cst_22 {dimension_numbers = #tpu.dot_dimension_numbers<[1], [0], [0], [1], [0, 0, 1, 1], [], []>} : vector<256x36xbf16>, vector<36x16xbf16>, vector<256x16xf32> -> vector<256x16xf32>
    %54 = vector.broadcast %39 : vector<256x1xf32> to vector<256x16xf32>
    %55 = arith.mulf %53, %54 : vector<256x16xf32>
    %56 = arith.addf %48, %55 : vector<256x16xf32>
    %c1 = arith.constant 1 : index
    %c0_23 = arith.constant 0 : index
    %57 = vector.load %arg8[%c1, %c0_23] : memref<290x36xf32, #tpu.memory_space<vmem>>, vector<256x36xf32>
    %58 = arith.truncf %57 : vector<256x36xf32> to vector<256x36xbf16>
    %c1_24 = arith.constant 1 : index
    %c0_25 = arith.constant 0 : index
    %c0_26 = arith.constant 0 : index
    %59 = vector.load %arg5[%c1_24, %c0_25, %c0_26] : memref<9x36x16xbf16, #tpu.memory_space<vmem>>, vector<1x36x16xbf16>
    %60 = vector.shape_cast %59 : vector<1x36x16xbf16> to vector<36x16xbf16>
    %cst_27 = arith.constant dense<0.000000e+00> : vector<256x16xf32>
    %61 = tpu.matmul %58, %60, %cst_27 {dimension_numbers = #tpu.dot_dimension_numbers<[1], [0], [0], [1], [0, 0, 1, 1], [], []>} : vector<256x36xbf16>, vector<36x16xbf16>, vector<256x16xf32> -> vector<256x16xf32>
    %62 = arith.addf %56, %61 : vector<256x16xf32>
    %c2 = arith.constant 2 : index
    %c0_28 = arith.constant 0 : index
    %63 = vector.load %arg8[%c2, %c0_28] : memref<290x36xf32, #tpu.memory_space<vmem>>, vector<256x36xf32>
    %64 = arith.truncf %63 : vector<256x36xf32> to vector<256x36xbf16>
    %c2_29 = arith.constant 2 : index
    %c0_30 = arith.constant 0 : index
    %c0_31 = arith.constant 0 : index
    %65 = vector.load %arg5[%c2_29, %c0_30, %c0_31] : memref<9x36x16xbf16, #tpu.memory_space<vmem>>, vector<1x36x16xbf16>
    %66 = vector.shape_cast %65 : vector<1x36x16xbf16> to vector<36x16xbf16>
    %cst_32 = arith.constant dense<0.000000e+00> : vector<256x16xf32>
    %67 = tpu.matmul %64, %66, %cst_32 {dimension_numbers = #tpu.dot_dimension_numbers<[1], [0], [0], [1], [0, 0, 1, 1], [], []>} : vector<256x36xbf16>, vector<36x16xbf16>, vector<256x16xf32> -> vector<256x16xf32>
    %68 = vector.broadcast %43 : vector<256x1xf32> to vector<256x16xf32>
    %69 = arith.mulf %67, %68 : vector<256x16xf32>
    %70 = arith.addf %62, %69 : vector<256x16xf32>
    %c16 = arith.constant 16 : index
    %c0_33 = arith.constant 0 : index
    %71 = vector.load %arg8[%c16, %c0_33] : memref<290x36xf32, #tpu.memory_space<vmem>>, vector<256x36xf32>
    %72 = arith.truncf %71 : vector<256x36xf32> to vector<256x36xbf16>
    %c3 = arith.constant 3 : index
    %c0_34 = arith.constant 0 : index
    %c0_35 = arith.constant 0 : index
    %73 = vector.load %arg5[%c3, %c0_34, %c0_35] : memref<9x36x16xbf16, #tpu.memory_space<vmem>>, vector<1x36x16xbf16>
    %74 = vector.shape_cast %73 : vector<1x36x16xbf16> to vector<36x16xbf16>
    %cst_36 = arith.constant dense<0.000000e+00> : vector<256x16xf32>
    %75 = tpu.matmul %72, %74, %cst_36 {dimension_numbers = #tpu.dot_dimension_numbers<[1], [0], [0], [1], [0, 0, 1, 1], [], []>} : vector<256x36xbf16>, vector<36x16xbf16>, vector<256x16xf32> -> vector<256x16xf32>
    %76 = vector.broadcast %39 : vector<256x1xf32> to vector<256x16xf32>
    %77 = arith.mulf %75, %76 : vector<256x16xf32>
    %78 = arith.addf %70, %77 : vector<256x16xf32>
    %c17 = arith.constant 17 : index
    %c0_37 = arith.constant 0 : index
    %79 = vector.load %arg8[%c17, %c0_37] : memref<290x36xf32, #tpu.memory_space<vmem>>, vector<256x36xf32>
    %80 = arith.truncf %79 : vector<256x36xf32> to vector<256x36xbf16>
    %c4 = arith.constant 4 : index
    %c0_38 = arith.constant 0 : index
    %c0_39 = arith.constant 0 : index
    %81 = vector.load %arg5[%c4, %c0_38, %c0_39] : memref<9x36x16xbf16, #tpu.memory_space<vmem>>, vector<1x36x16xbf16>
    %82 = vector.shape_cast %81 : vector<1x36x16xbf16> to vector<36x16xbf16>
    %cst_40 = arith.constant dense<0.000000e+00> : vector<256x16xf32>
    %83 = tpu.matmul %80, %82, %cst_40 {dimension_numbers = #tpu.dot_dimension_numbers<[1], [0], [0], [1], [0, 0, 1, 1], [], []>} : vector<256x36xbf16>, vector<36x16xbf16>, vector<256x16xf32> -> vector<256x16xf32>
    %84 = arith.addf %78, %83 : vector<256x16xf32>
    %c18 = arith.constant 18 : index
    %c0_41 = arith.constant 0 : index
    %85 = vector.load %arg8[%c18, %c0_41] : memref<290x36xf32, #tpu.memory_space<vmem>>, vector<256x36xf32>
    %86 = arith.truncf %85 : vector<256x36xf32> to vector<256x36xbf16>
    %c5 = arith.constant 5 : index
    %c0_42 = arith.constant 0 : index
    %c0_43 = arith.constant 0 : index
    %87 = vector.load %arg5[%c5, %c0_42, %c0_43] : memref<9x36x16xbf16, #tpu.memory_space<vmem>>, vector<1x36x16xbf16>
    %88 = vector.shape_cast %87 : vector<1x36x16xbf16> to vector<36x16xbf16>
    %cst_44 = arith.constant dense<0.000000e+00> : vector<256x16xf32>
    %89 = tpu.matmul %86, %88, %cst_44 {dimension_numbers = #tpu.dot_dimension_numbers<[1], [0], [0], [1], [0, 0, 1, 1], [], []>} : vector<256x36xbf16>, vector<36x16xbf16>, vector<256x16xf32> -> vector<256x16xf32>
    %90 = vector.broadcast %43 : vector<256x1xf32> to vector<256x16xf32>
    %91 = arith.mulf %89, %90 : vector<256x16xf32>
    %92 = arith.addf %84, %91 : vector<256x16xf32>
    %c32 = arith.constant 32 : index
    %c0_45 = arith.constant 0 : index
    %93 = vector.load %arg8[%c32, %c0_45] : memref<290x36xf32, #tpu.memory_space<vmem>>, vector<256x36xf32>
    %94 = arith.truncf %93 : vector<256x36xf32> to vector<256x36xbf16>
    %c6 = arith.constant 6 : index
    %c0_46 = arith.constant 0 : index
    %c0_47 = arith.constant 0 : index
    %95 = vector.load %arg5[%c6, %c0_46, %c0_47] : memref<9x36x16xbf16, #tpu.memory_space<vmem>>, vector<1x36x16xbf16>
    %96 = vector.shape_cast %95 : vector<1x36x16xbf16> to vector<36x16xbf16>
    %cst_48 = arith.constant dense<0.000000e+00> : vector<256x16xf32>
    %97 = tpu.matmul %94, %96, %cst_48 {dimension_numbers = #tpu.dot_dimension_numbers<[1], [0], [0], [1], [0, 0, 1, 1], [], []>} : vector<256x36xbf16>, vector<36x16xbf16>, vector<256x16xf32> -> vector<256x16xf32>
    %98 = vector.broadcast %39 : vector<256x1xf32> to vector<256x16xf32>
    %99 = arith.mulf %97, %98 : vector<256x16xf32>
    %100 = arith.addf %92, %99 : vector<256x16xf32>
    %c33 = arith.constant 33 : index
    %c0_49 = arith.constant 0 : index
    %101 = vector.load %arg8[%c33, %c0_49] : memref<290x36xf32, #tpu.memory_space<vmem>>, vector<256x36xf32>
    %102 = arith.truncf %101 : vector<256x36xf32> to vector<256x36xbf16>
    %c7 = arith.constant 7 : index
    %c0_50 = arith.constant 0 : index
    %c0_51 = arith.constant 0 : index
    %103 = vector.load %arg5[%c7, %c0_50, %c0_51] : memref<9x36x16xbf16, #tpu.memory_space<vmem>>, vector<1x36x16xbf16>
    %104 = vector.shape_cast %103 : vector<1x36x16xbf16> to vector<36x16xbf16>
    %cst_52 = arith.constant dense<0.000000e+00> : vector<256x16xf32>
    %105 = tpu.matmul %102, %104, %cst_52 {dimension_numbers = #tpu.dot_dimension_numbers<[1], [0], [0], [1], [0, 0, 1, 1], [], []>} : vector<256x36xbf16>, vector<36x16xbf16>, vector<256x16xf32> -> vector<256x16xf32>
    %106 = arith.addf %100, %105 : vector<256x16xf32>
    %c34 = arith.constant 34 : index
    %c0_53 = arith.constant 0 : index
    %107 = vector.load %arg8[%c34, %c0_53] : memref<290x36xf32, #tpu.memory_space<vmem>>, vector<256x36xf32>
    %108 = arith.truncf %107 : vector<256x36xf32> to vector<256x36xbf16>
    %c8 = arith.constant 8 : index
    %c0_54 = arith.constant 0 : index
    %c0_55 = arith.constant 0 : index
    %109 = vector.load %arg5[%c8, %c0_54, %c0_55] : memref<9x36x16xbf16, #tpu.memory_space<vmem>>, vector<1x36x16xbf16>
    %110 = vector.shape_cast %109 : vector<1x36x16xbf16> to vector<36x16xbf16>
    %cst_56 = arith.constant dense<0.000000e+00> : vector<256x16xf32>
    %111 = tpu.matmul %108, %110, %cst_56 {dimension_numbers = #tpu.dot_dimension_numbers<[1], [0], [0], [1], [0, 0, 1, 1], [], []>} : vector<256x36xbf16>, vector<36x16xbf16>, vector<256x16xf32> -> vector<256x16xf32>
    %112 = vector.broadcast %43 : vector<256x1xf32> to vector<256x16xf32>
    %113 = arith.mulf %111, %112 : vector<256x16xf32>
    %114 = arith.addf %106, %113 : vector<256x16xf32>
    %c0_57 = arith.constant 0 : index
    %c0_58 = arith.constant 0 : index
    %c0_59 = arith.constant 0 : index
    %115 = vector.load %arg7[%c0_57, %c0_58, %c0_59] : memref<1x256x16xf32, #tpu.memory_space<vmem>>, vector<1x256x16xf32>
    %116 = vector.shape_cast %115 : vector<1x256x16xf32> to vector<256x16xf32>
    %117 = vector.shape_cast %114 : vector<256x16xf32> to vector<1x256x16xf32>
    tpu.vector_store %arg7[%c0_57, %c0_58, %c0_59], %117 {strides = array<i32>} : memref<1x256x16xf32, #tpu.memory_space<vmem>>, vector<1x256x16xf32>,
    return
  }
  func.func @transform_0(%arg0: i32) -> (i32, i32, i32) {
    %c0_i32 = arith.constant 0 : i32
    %c0_i32_0 = arith.constant 0 : i32
    %c0_i32_1 = arith.constant 0 : i32
    return %arg0, %c0_i32, %c0_i32_0 : i32, i32, i32
  }
  func.func @transform_1(%arg0: i32) -> (i32, i32, i32) {
    %c0_i32 = arith.constant 0 : i32
    %c0_i32_0 = arith.constant 0 : i32
    %c0_i32_1 = arith.constant 0 : i32
    return %arg0, %c0_i32, %c0_i32_0 : i32, i32, i32
  }
  func.func @transform_2(%arg0: i32) -> (i32, i32) {
    %c0_i32 = arith.constant 0 : i32
    %c0_i32_0 = arith.constant 0 : i32
    %c0_i32_1 = arith.constant 0 : i32
    return %c0_i32, %c0_i32_0 : i32, i32
  }
  func.func @transform_3(%arg0: i32) -> (i32, i32) {
    %c0_i32 = arith.constant 0 : i32
    %c0_i32_0 = arith.constant 0 : i32
    %c0_i32_1 = arith.constant 0 : i32
    return %c0_i32, %c0_i32_0 : i32, i32
  }
  func.func @transform_4(%arg0: i32) -> (i32, i32, i32) {
    %c0_i32 = arith.constant 0 : i32
    %c0_i32_0 = arith.constant 0 : i32
    %c0_i32_1 = arith.constant 0 : i32
    %c0_i32_2 = arith.constant 0 : i32
    return %c0_i32, %c0_i32_0, %c0_i32_1 : i32, i32, i32
  }
  func.func @transform_5(%arg0: i32) -> (i32, i32) {
    %c0_i32 = arith.constant 0 : i32
    %c0_i32_0 = arith.constant 0 : i32
    %c0_i32_1 = arith.constant 0 : i32
    return %c0_i32, %c0_i32_0 : i32, i32
  }
  func.func @transform_6(%arg0: i32) -> (i32, i32, i32) {
    %c0_i32 = arith.constant 0 : i32
    %c0_i32_0 = arith.constant 0 : i32
    %c0_i32_1 = arith.constant 0 : i32
    return %arg0, %c0_i32, %c0_i32_0 : i32, i32, i32
  }
}

module attributes {stable_mosaic.version = 11 : i64} {
  func.func @_matmul_bias_kernel(%arg0: i32, %arg1: memref<256x16xf32, #tpu.memory_space<vmem>>, %arg2: memref<16x16xbf16, #tpu.memory_space<vmem>>, %arg3: memref<1x16xf32, #tpu.memory_space<vmem>>, %arg4: memref<256x16xf32, #tpu.memory_space<vmem>>) attributes {dimension_semantics = [#tpu.dimension_semantics<parallel>], iteration_bounds = array<i64: 2>, scalar_prefetch = 0 : i64, scratch_operands = 0 : i64, tpu.core_type = #tpu.core_type<tc>, window_params = [{transform_indices = @transform_0, window_bounds = array<i64: 256, 16>}, {pipeline_mode = #tpu.pipeline_mode<synchronous>, transform_indices = @transform_1, window_bounds = array<i64: 16, 16>}, {pipeline_mode = #tpu.pipeline_mode<synchronous>, transform_indices = @transform_2, window_bounds = array<i64: 1, 16>}, {transform_indices = @transform_3, window_bounds = array<i64: 256, 16>}]} {
    %c0 = arith.constant 0 : index
    %c0_0 = arith.constant 0 : index
    %0 = vector.load %arg1[%c0, %c0_0] : memref<256x16xf32, #tpu.memory_space<vmem>>, vector<256x16xf32>
    %1 = arith.truncf %0 : vector<256x16xf32> to vector<256x16xbf16>
    %c0_1 = arith.constant 0 : index
    %c0_2 = arith.constant 0 : index
    %2 = vector.load %arg2[%c0_1, %c0_2] : memref<16x16xbf16, #tpu.memory_space<vmem>>, vector<16x16xbf16>
    %cst = arith.constant dense<0.000000e+00> : vector<256x16xf32>
    %3 = tpu.matmul %1, %2, %cst {dimension_numbers = #tpu.dot_dimension_numbers<[1], [0], [0], [1], [0, 0, 1, 1], [], []>} : vector<256x16xbf16>, vector<16x16xbf16>, vector<256x16xf32> -> vector<256x16xf32>
    %c0_3 = arith.constant 0 : index
    %c0_4 = arith.constant 0 : index
    %4 = vector.load %arg3[%c0_3, %c0_4] : memref<1x16xf32, #tpu.memory_space<vmem>>, vector<1x16xf32>
    %5 = vector.broadcast %4 : vector<1x16xf32> to vector<256x16xf32>
    %6 = arith.addf %3, %5 : vector<256x16xf32>
    %c0_5 = arith.constant 0 : index
    %c0_6 = arith.constant 0 : index
    %7 = vector.load %arg4[%c0_5, %c0_6] : memref<256x16xf32, #tpu.memory_space<vmem>>, vector<256x16xf32>
    tpu.vector_store %arg4[%c0_5, %c0_6], %6 {strides = array<i32>} : memref<256x16xf32, #tpu.memory_space<vmem>>, vector<256x16xf32>,
    return
  }
  func.func @transform_0(%arg0: i32) -> (i32, i32) {
    %c0_i32 = arith.constant 0 : i32
    %c0_i32_0 = arith.constant 0 : i32
    return %arg0, %c0_i32 : i32, i32
  }
  func.func @transform_1(%arg0: i32) -> (i32, i32) {
    %c0_i32 = arith.constant 0 : i32
    %c0_i32_0 = arith.constant 0 : i32
    %c0_i32_1 = arith.constant 0 : i32
    return %c0_i32, %c0_i32_0 : i32, i32
  }
  func.func @transform_2(%arg0: i32) -> (i32, i32) {
    %c0_i32 = arith.constant 0 : i32
    %c0_i32_0 = arith.constant 0 : i32
    %c0_i32_1 = arith.constant 0 : i32
    return %c0_i32, %c0_i32_0 : i32, i32
  }
  func.func @transform_3(%arg0: i32) -> (i32, i32) {
    %c0_i32 = arith.constant 0 : i32
    %c0_i32_0 = arith.constant 0 : i32
    return %arg0, %c0_i32 : i32, i32
  }
}

module attributes {stable_mosaic.version = 11 : i64} {
  func.func @kernel(%arg0: i32, %arg1: memref<1x22x22x16xf32, #tpu.memory_space<vmem>>, %arg2: memref<1x22x22x16xf32, #tpu.memory_space<vmem>>, %arg3: memref<1x16x16x16xf32, #tpu.memory_space<vmem>>, %arg4: memref<1x16x16x16xf32, #tpu.memory_space<vmem>>, %arg5: memref<7x7x1x16xf32, #tpu.memory_space<vmem>>, %arg6: memref<7x7x1x16xf32, #tpu.memory_space<vmem>>, %arg7: memref<1x1x1x16xf32, #tpu.memory_space<vmem>>, %arg8: memref<1x16x16x16xf32, #tpu.memory_space<vmem>>) attributes {dimension_semantics = [#tpu.dimension_semantics<parallel>], iteration_bounds = array<i64: 2>, scalar_prefetch = 0 : i64, scratch_operands = 0 : i64, tpu.core_type = #tpu.core_type<tc>, window_params = [{transform_indices = @transform_0, window_bounds = array<i64: 1, 22, 22, 16>}, {transform_indices = @transform_1, window_bounds = array<i64: 1, 22, 22, 16>}, {transform_indices = @transform_2, window_bounds = array<i64: 1, 16, 16, 16>}, {transform_indices = @transform_3, window_bounds = array<i64: 1, 16, 16, 16>}, {pipeline_mode = #tpu.pipeline_mode<synchronous>, transform_indices = @transform_4, window_bounds = array<i64: 7, 7, 1, 16>}, {pipeline_mode = #tpu.pipeline_mode<synchronous>, transform_indices = @transform_5, window_bounds = array<i64: 7, 7, 1, 16>}, {pipeline_mode = #tpu.pipeline_mode<synchronous>, transform_indices = @transform_6, window_bounds = array<i64: 1, 1, 1, 16>}, {transform_indices = @transform_7, window_bounds = array<i64: 1, 16, 16, 16>}]} {
    %cst = arith.constant 0.000000e+00 : f32
    %0 = vector.broadcast %cst : f32 to vector<1x16x16x16xf32>
    %c0 = arith.constant 0 : index
    %c0_0 = arith.constant 0 : index
    %c0_1 = arith.constant 0 : index
    %c0_2 = arith.constant 0 : index
    %1 = vector.load %arg1[%c0, %c0_0, %c0_1, %c0_2] : memref<1x22x22x16xf32, #tpu.memory_space<vmem>>, vector<1x16x16x16xf32>
    %c0_3 = arith.constant 0 : index
    %c0_4 = arith.constant 0 : index
    %c0_5 = arith.constant 0 : index
    %c0_6 = arith.constant 0 : index
    %2 = vector.load %arg5[%c0_3, %c0_4, %c0_5, %c0_6] : memref<7x7x1x16xf32, #tpu.memory_space<vmem>>, vector<1x1x1x16xf32>
    %3 = vector.shape_cast %2 : vector<1x1x1x16xf32> to vector<1x16xf32>
    %4 = vector.shape_cast %3 : vector<1x16xf32> to vector<1x1x1x16xf32>
    %5 = vector.broadcast %4 : vector<1x1x1x16xf32> to vector<1x16x16x16xf32>
    %6 = arith.mulf %1, %5 : vector<1x16x16x16xf32>
    %7 = arith.addf %0, %6 : vector<1x16x16x16xf32>
    %c0_7 = arith.constant 0 : index
    %c0_8 = arith.constant 0 : index
    %c0_9 = arith.constant 0 : index
    %c0_10 = arith.constant 0 : index
    %8 = vector.load %arg2[%c0_7, %c0_8, %c0_9, %c0_10] : memref<1x22x22x16xf32, #tpu.memory_space<vmem>>, vector<1x16x16x16xf32>
    %c0_11 = arith.constant 0 : index
    %c0_12 = arith.constant 0 : index
    %c0_13 = arith.constant 0 : index
    %c0_14 = arith.constant 0 : index
    %9 = vector.load %arg6[%c0_11, %c0_12, %c0_13, %c0_14] : memref<7x7x1x16xf32, #tpu.memory_space<vmem>>, vector<1x1x1x16xf32>
    %10 = vector.shape_cast %9 : vector<1x1x1x16xf32> to vector<1x16xf32>
    %11 = vector.shape_cast %10 : vector<1x16xf32> to vector<1x1x1x16xf32>
    %12 = vector.broadcast %11 : vector<1x1x1x16xf32> to vector<1x16x16x16xf32>
    %13 = arith.mulf %8, %12 : vector<1x16x16x16xf32>
    %14 = arith.addf %7, %13 : vector<1x16x16x16xf32>
    %c0_15 = arith.constant 0 : index
    %c0_16 = arith.constant 0 : index
    %c1 = arith.constant 1 : index
    %c0_17 = arith.constant 0 : index
    %15 = vector.load %arg1[%c0_15, %c0_16, %c1, %c0_17] : memref<1x22x22x16xf32, #tpu.memory_space<vmem>>, vector<1x16x16x16xf32>
    %c0_18 = arith.constant 0 : index
    %c1_19 = arith.constant 1 : index
    %c0_20 = arith.constant 0 : index
    %c0_21 = arith.constant 0 : index
    %16 = vector.load %arg5[%c0_18, %c1_19, %c0_20, %c0_21] : memref<7x7x1x16xf32, #tpu.memory_space<vmem>>, vector<1x1x1x16xf32>
    %17 = vector.shape_cast %16 : vector<1x1x1x16xf32> to vector<1x16xf32>
    %18 = vector.shape_cast %17 : vector<1x16xf32> to vector<1x1x1x16xf32>
    %19 = vector.broadcast %18 : vector<1x1x1x16xf32> to vector<1x16x16x16xf32>
    %20 = arith.mulf %15, %19 : vector<1x16x16x16xf32>
    %21 = arith.addf %14, %20 : vector<1x16x16x16xf32>
    %c0_22 = arith.constant 0 : index
    %c0_23 = arith.constant 0 : index
    %c1_24 = arith.constant 1 : index
    %c0_25 = arith.constant 0 : index
    %22 = vector.load %arg2[%c0_22, %c0_23, %c1_24, %c0_25] : memref<1x22x22x16xf32, #tpu.memory_space<vmem>>, vector<1x16x16x16xf32>
    %c0_26 = arith.constant 0 : index
    %c1_27 = arith.constant 1 : index
    %c0_28 = arith.constant 0 : index
    %c0_29 = arith.constant 0 : index
    %23 = vector.load %arg6[%c0_26, %c1_27, %c0_28, %c0_29] : memref<7x7x1x16xf32, #tpu.memory_space<vmem>>, vector<1x1x1x16xf32>
    %24 = vector.shape_cast %23 : vector<1x1x1x16xf32> to vector<1x16xf32>
    %25 = vector.shape_cast %24 : vector<1x16xf32> to vector<1x1x1x16xf32>
    %26 = vector.broadcast %25 : vector<1x1x1x16xf32> to vector<1x16x16x16xf32>
    %27 = arith.mulf %22, %26 : vector<1x16x16x16xf32>
    %28 = arith.addf %21, %27 : vector<1x16x16x16xf32>
    %c0_30 = arith.constant 0 : index
    %c0_31 = arith.constant 0 : index
    %c2 = arith.constant 2 : index
    %c0_32 = arith.constant 0 : index
    %29 = vector.load %arg1[%c0_30, %c0_31, %c2, %c0_32] : memref<1x22x22x16xf32, #tpu.memory_space<vmem>>, vector<1x16x16x16xf32>
    %c0_33 = arith.constant 0 : index
    %c2_34 = arith.constant 2 : index
    %c0_35 = arith.constant 0 : index
    %c0_36 = arith.constant 0 : index
    %30 = vector.load %arg5[%c0_33, %c2_34, %c0_35, %c0_36] : memref<7x7x1x16xf32, #tpu.memory_space<vmem>>, vector<1x1x1x16xf32>
    %31 = vector.shape_cast %30 : vector<1x1x1x16xf32> to vector<1x16xf32>
    %32 = vector.shape_cast %31 : vector<1x16xf32> to vector<1x1x1x16xf32>
    %33 = vector.broadcast %32 : vector<1x1x1x16xf32> to vector<1x16x16x16xf32>
    %34 = arith.mulf %29, %33 : vector<1x16x16x16xf32>
    %35 = arith.addf %28, %34 : vector<1x16x16x16xf32>
    %c0_37 = arith.constant 0 : index
    %c0_38 = arith.constant 0 : index
    %c2_39 = arith.constant 2 : index
    %c0_40 = arith.constant 0 : index
    %36 = vector.load %arg2[%c0_37, %c0_38, %c2_39, %c0_40] : memref<1x22x22x16xf32, #tpu.memory_space<vmem>>, vector<1x16x16x16xf32>
    %c0_41 = arith.constant 0 : index
    %c2_42 = arith.constant 2 : index
    %c0_43 = arith.constant 0 : index
    %c0_44 = arith.constant 0 : index
    %37 = vector.load %arg6[%c0_41, %c2_42, %c0_43, %c0_44] : memref<7x7x1x16xf32, #tpu.memory_space<vmem>>, vector<1x1x1x16xf32>
    %38 = vector.shape_cast %37 : vector<1x1x1x16xf32> to vector<1x16xf32>
    %39 = vector.shape_cast %38 : vector<1x16xf32> to vector<1x1x1x16xf32>
    %40 = vector.broadcast %39 : vector<1x1x1x16xf32> to vector<1x16x16x16xf32>
    %41 = arith.mulf %36, %40 : vector<1x16x16x16xf32>
    %42 = arith.addf %35, %41 : vector<1x16x16x16xf32>
    %c0_45 = arith.constant 0 : index
    %c0_46 = arith.constant 0 : index
    %c3 = arith.constant 3 : index
    %c0_47 = arith.constant 0 : index
    %43 = vector.load %arg1[%c0_45, %c0_46, %c3, %c0_47] : memref<1x22x22x16xf32, #tpu.memory_space<vmem>>, vector<1x16x16x16xf32>
    %c0_48 = arith.constant 0 : index
    %c3_49 = arith.constant 3 : index
    %c0_50 = arith.constant 0 : index
    %c0_51 = arith.constant 0 : index
    %44 = vector.load %arg5[%c0_48, %c3_49, %c0_50, %c0_51] : memref<7x7x1x16xf32, #tpu.memory_space<vmem>>, vector<1x1x1x16xf32>
    %45 = vector.shape_cast %44 : vector<1x1x1x16xf32> to vector<1x16xf32>
    %46 = vector.shape_cast %45 : vector<1x16xf32> to vector<1x1x1x16xf32>
    %47 = vector.broadcast %46 : vector<1x1x1x16xf32> to vector<1x16x16x16xf32>
    %48 = arith.mulf %43, %47 : vector<1x16x16x16xf32>
    %49 = arith.addf %42, %48 : vector<1x16x16x16xf32>
    %c0_52 = arith.constant 0 : index
    %c0_53 = arith.constant 0 : index
    %c3_54 = arith.constant 3 : index
    %c0_55 = arith.constant 0 : index
    %50 = vector.load %arg2[%c0_52, %c0_53, %c3_54, %c0_55] : memref<1x22x22x16xf32, #tpu.memory_space<vmem>>, vector<1x16x16x16xf32>
    %c0_56 = arith.constant 0 : index
    %c3_57 = arith.constant 3 : index
    %c0_58 = arith.constant 0 : index
    %c0_59 = arith.constant 0 : index
    %51 = vector.load %arg6[%c0_56, %c3_57, %c0_58, %c0_59] : memref<7x7x1x16xf32, #tpu.memory_space<vmem>>, vector<1x1x1x16xf32>
    %52 = vector.shape_cast %51 : vector<1x1x1x16xf32> to vector<1x16xf32>
    %53 = vector.shape_cast %52 : vector<1x16xf32> to vector<1x1x1x16xf32>
    %54 = vector.broadcast %53 : vector<1x1x1x16xf32> to vector<1x16x16x16xf32>
    %55 = arith.mulf %50, %54 : vector<1x16x16x16xf32>
    %56 = arith.addf %49, %55 : vector<1x16x16x16xf32>
    %c0_60 = arith.constant 0 : index
    %c0_61 = arith.constant 0 : index
    %c4 = arith.constant 4 : index
    %c0_62 = arith.constant 0 : index
    %57 = vector.load %arg1[%c0_60, %c0_61, %c4, %c0_62] : memref<1x22x22x16xf32, #tpu.memory_space<vmem>>, vector<1x16x16x16xf32>
    %c0_63 = arith.constant 0 : index
    %c4_64 = arith.constant 4 : index
    %c0_65 = arith.constant 0 : index
    %c0_66 = arith.constant 0 : index
    %58 = vector.load %arg5[%c0_63, %c4_64, %c0_65, %c0_66] : memref<7x7x1x16xf32, #tpu.memory_space<vmem>>, vector<1x1x1x16xf32>
    %59 = vector.shape_cast %58 : vector<1x1x1x16xf32> to vector<1x16xf32>
    %60 = vector.shape_cast %59 : vector<1x16xf32> to vector<1x1x1x16xf32>
    %61 = vector.broadcast %60 : vector<1x1x1x16xf32> to vector<1x16x16x16xf32>
    %62 = arith.mulf %57, %61 : vector<1x16x16x16xf32>
    %63 = arith.addf %56, %62 : vector<1x16x16x16xf32>
    %c0_67 = arith.constant 0 : index
    %c0_68 = arith.constant 0 : index
    %c4_69 = arith.constant 4 : index
    %c0_70 = arith.constant 0 : index
    %64 = vector.load %arg2[%c0_67, %c0_68, %c4_69, %c0_70] : memref<1x22x22x16xf32, #tpu.memory_space<vmem>>, vector<1x16x16x16xf32>
    %c0_71 = arith.constant 0 : index
    %c4_72 = arith.constant 4 : index
    %c0_73 = arith.constant 0 : index
    %c0_74 = arith.constant 0 : index
    %65 = vector.load %arg6[%c0_71, %c4_72, %c0_73, %c0_74] : memref<7x7x1x16xf32, #tpu.memory_space<vmem>>, vector<1x1x1x16xf32>
    %66 = vector.shape_cast %65 : vector<1x1x1x16xf32> to vector<1x16xf32>
    %67 = vector.shape_cast %66 : vector<1x16xf32> to vector<1x1x1x16xf32>
    %68 = vector.broadcast %67 : vector<1x1x1x16xf32> to vector<1x16x16x16xf32>
    %69 = arith.mulf %64, %68 : vector<1x16x16x16xf32>
    %70 = arith.addf %63, %69 : vector<1x16x16x16xf32>
    %c0_75 = arith.constant 0 : index
    %c0_76 = arith.constant 0 : index
    %c5 = arith.constant 5 : index
    %c0_77 = arith.constant 0 : index
    %71 = vector.load %arg1[%c0_75, %c0_76, %c5, %c0_77] : memref<1x22x22x16xf32, #tpu.memory_space<vmem>>, vector<1x16x16x16xf32>
    %c0_78 = arith.constant 0 : index
    %c5_79 = arith.constant 5 : index
    %c0_80 = arith.constant 0 : index
    %c0_81 = arith.constant 0 : index
    %72 = vector.load %arg5[%c0_78, %c5_79, %c0_80, %c0_81] : memref<7x7x1x16xf32, #tpu.memory_space<vmem>>, vector<1x1x1x16xf32>
    %73 = vector.shape_cast %72 : vector<1x1x1x16xf32> to vector<1x16xf32>
    %74 = vector.shape_cast %73 : vector<1x16xf32> to vector<1x1x1x16xf32>
    %75 = vector.broadcast %74 : vector<1x1x1x16xf32> to vector<1x16x16x16xf32>
    %76 = arith.mulf %71, %75 : vector<1x16x16x16xf32>
    %77 = arith.addf %70, %76 : vector<1x16x16x16xf32>
    %c0_82 = arith.constant 0 : index
    %c0_83 = arith.constant 0 : index
    %c5_84 = arith.constant 5 : index
    %c0_85 = arith.constant 0 : index
    %78 = vector.load %arg2[%c0_82, %c0_83, %c5_84, %c0_85] : memref<1x22x22x16xf32, #tpu.memory_space<vmem>>, vector<1x16x16x16xf32>
    %c0_86 = arith.constant 0 : index
    %c5_87 = arith.constant 5 : index
    %c0_88 = arith.constant 0 : index
    %c0_89 = arith.constant 0 : index
    %79 = vector.load %arg6[%c0_86, %c5_87, %c0_88, %c0_89] : memref<7x7x1x16xf32, #tpu.memory_space<vmem>>, vector<1x1x1x16xf32>
    %80 = vector.shape_cast %79 : vector<1x1x1x16xf32> to vector<1x16xf32>
    %81 = vector.shape_cast %80 : vector<1x16xf32> to vector<1x1x1x16xf32>
    %82 = vector.broadcast %81 : vector<1x1x1x16xf32> to vector<1x16x16x16xf32>
    %83 = arith.mulf %78, %82 : vector<1x16x16x16xf32>
    %84 = arith.addf %77, %83 : vector<1x16x16x16xf32>
    %c0_90 = arith.constant 0 : index
    %c0_91 = arith.constant 0 : index
    %c6 = arith.constant 6 : index
    %c0_92 = arith.constant 0 : index
    %85 = vector.load %arg1[%c0_90, %c0_91, %c6, %c0_92] : memref<1x22x22x16xf32, #tpu.memory_space<vmem>>, vector<1x16x16x16xf32>
    %c0_93 = arith.constant 0 : index
    %c6_94 = arith.constant 6 : index
    %c0_95 = arith.constant 0 : index
    %c0_96 = arith.constant 0 : index
    %86 = vector.load %arg5[%c0_93, %c6_94, %c0_95, %c0_96] : memref<7x7x1x16xf32, #tpu.memory_space<vmem>>, vector<1x1x1x16xf32>
    %87 = vector.shape_cast %86 : vector<1x1x1x16xf32> to vector<1x16xf32>
    %88 = vector.shape_cast %87 : vector<1x16xf32> to vector<1x1x1x16xf32>
    %89 = vector.broadcast %88 : vector<1x1x1x16xf32> to vector<1x16x16x16xf32>
    %90 = arith.mulf %85, %89 : vector<1x16x16x16xf32>
    %91 = arith.addf %84, %90 : vector<1x16x16x16xf32>
    %c0_97 = arith.constant 0 : index
    %c0_98 = arith.constant 0 : index
    %c6_99 = arith.constant 6 : index
    %c0_100 = arith.constant 0 : index
    %92 = vector.load %arg2[%c0_97, %c0_98, %c6_99, %c0_100] : memref<1x22x22x16xf32, #tpu.memory_space<vmem>>, vector<1x16x16x16xf32>
    %c0_101 = arith.constant 0 : index
    %c6_102 = arith.constant 6 : index
    %c0_103 = arith.constant 0 : index
    %c0_104 = arith.constant 0 : index
    %93 = vector.load %arg6[%c0_101, %c6_102, %c0_103, %c0_104] : memref<7x7x1x16xf32, #tpu.memory_space<vmem>>, vector<1x1x1x16xf32>
    %94 = vector.shape_cast %93 : vector<1x1x1x16xf32> to vector<1x16xf32>
    %95 = vector.shape_cast %94 : vector<1x16xf32> to vector<1x1x1x16xf32>
    %96 = vector.broadcast %95 : vector<1x1x1x16xf32> to vector<1x16x16x16xf32>
    %97 = arith.mulf %92, %96 : vector<1x16x16x16xf32>
    %98 = arith.addf %91, %97 : vector<1x16x16x16xf32>
    %c0_105 = arith.constant 0 : index
    %c1_106 = arith.constant 1 : index
    %c0_107 = arith.constant 0 : index
    %c0_108 = arith.constant 0 : index
    %99 = vector.load %arg1[%c0_105, %c1_106, %c0_107, %c0_108] : memref<1x22x22x16xf32, #tpu.memory_space<vmem>>, vector<1x16x16x16xf32>
    %c1_109 = arith.constant 1 : index
    %c0_110 = arith.constant 0 : index
    %c0_111 = arith.constant 0 : index
    %c0_112 = arith.constant 0 : index
    %100 = vector.load %arg5[%c1_109, %c0_110, %c0_111, %c0_112] : memref<7x7x1x16xf32, #tpu.memory_space<vmem>>, vector<1x1x1x16xf32>
    %101 = vector.shape_cast %100 : vector<1x1x1x16xf32> to vector<1x16xf32>
    %102 = vector.shape_cast %101 : vector<1x16xf32> to vector<1x1x1x16xf32>
    %103 = vector.broadcast %102 : vector<1x1x1x16xf32> to vector<1x16x16x16xf32>
    %104 = arith.mulf %99, %103 : vector<1x16x16x16xf32>
    %105 = arith.addf %98, %104 : vector<1x16x16x16xf32>
    %c0_113 = arith.constant 0 : index
    %c1_114 = arith.constant 1 : index
    %c0_115 = arith.constant 0 : index
    %c0_116 = arith.constant 0 : index
    %106 = vector.load %arg2[%c0_113, %c1_114, %c0_115, %c0_116] : memref<1x22x22x16xf32, #tpu.memory_space<vmem>>, vector<1x16x16x16xf32>
    %c1_117 = arith.constant 1 : index
    %c0_118 = arith.constant 0 : index
    %c0_119 = arith.constant 0 : index
    %c0_120 = arith.constant 0 : index
    %107 = vector.load %arg6[%c1_117, %c0_118, %c0_119, %c0_120] : memref<7x7x1x16xf32, #tpu.memory_space<vmem>>, vector<1x1x1x16xf32>
    %108 = vector.shape_cast %107 : vector<1x1x1x16xf32> to vector<1x16xf32>
    %109 = vector.shape_cast %108 : vector<1x16xf32> to vector<1x1x1x16xf32>
    %110 = vector.broadcast %109 : vector<1x1x1x16xf32> to vector<1x16x16x16xf32>
    %111 = arith.mulf %106, %110 : vector<1x16x16x16xf32>
    %112 = arith.addf %105, %111 : vector<1x16x16x16xf32>
    %c0_121 = arith.constant 0 : index
    %c1_122 = arith.constant 1 : index
    %c1_123 = arith.constant 1 : index
    %c0_124 = arith.constant 0 : index
    %113 = vector.load %arg1[%c0_121, %c1_122, %c1_123, %c0_124] : memref<1x22x22x16xf32, #tpu.memory_space<vmem>>, vector<1x16x16x16xf32>
    %c1_125 = arith.constant 1 : index
    %c1_126 = arith.constant 1 : index
    %c0_127 = arith.constant 0 : index
    %c0_128 = arith.constant 0 : index
    %114 = vector.load %arg5[%c1_125, %c1_126, %c0_127, %c0_128] : memref<7x7x1x16xf32, #tpu.memory_space<vmem>>, vector<1x1x1x16xf32>
    %115 = vector.shape_cast %114 : vector<1x1x1x16xf32> to vector<1x16xf32>
    %116 = vector.shape_cast %115 : vector<1x16xf32> to vector<1x1x1x16xf32>
    %117 = vector.broadcast %116 : vector<1x1x1x16xf32> to vector<1x16x16x16xf32>
    %118 = arith.mulf %113, %117 : vector<1x16x16x16xf32>
    %119 = arith.addf %112, %118 : vector<1x16x16x16xf32>
    %c0_129 = arith.constant 0 : index
    %c1_130 = arith.constant 1 : index
    %c1_131 = arith.constant 1 : index
    %c0_132 = arith.constant 0 : index
    %120 = vector.load %arg2[%c0_129, %c1_130, %c1_131, %c0_132] : memref<1x22x22x16xf32, #tpu.memory_space<vmem>>, vector<1x16x16x16xf32>
    %c1_133 = arith.constant 1 : index
    %c1_134 = arith.constant 1 : index
    %c0_135 = arith.constant 0 : index
    %c0_136 = arith.constant 0 : index
    %121 = vector.load %arg6[%c1_133, %c1_134, %c0_135, %c0_136] : memref<7x7x1x16xf32, #tpu.memory_space<vmem>>, vector<1x1x1x16xf32>
    %122 = vector.shape_cast %121 : vector<1x1x1x16xf32> to vector<1x16xf32>
    %123 = vector.shape_cast %122 : vector<1x16xf32> to vector<1x1x1x16xf32>
    %124 = vector.broadcast %123 : vector<1x1x1x16xf32> to vector<1x16x16x16xf32>
    %125 = arith.mulf %120, %124 : vector<1x16x16x16xf32>
    %126 = arith.addf %119, %125 : vector<1x16x16x16xf32>
    %c0_137 = arith.constant 0 : index
    %c1_138 = arith.constant 1 : index
    %c2_139 = arith.constant 2 : index
    %c0_140 = arith.constant 0 : index
    %127 = vector.load %arg1[%c0_137, %c1_138, %c2_139, %c0_140] : memref<1x22x22x16xf32, #tpu.memory_space<vmem>>, vector<1x16x16x16xf32>
    %c1_141 = arith.constant 1 : index
    %c2_142 = arith.constant 2 : index
    %c0_143 = arith.constant 0 : index
    %c0_144 = arith.constant 0 : index
    %128 = vector.load %arg5[%c1_141, %c2_142, %c0_143, %c0_144] : memref<7x7x1x16xf32, #tpu.memory_space<vmem>>, vector<1x1x1x16xf32>
    %129 = vector.shape_cast %128 : vector<1x1x1x16xf32> to vector<1x16xf32>
    %130 = vector.shape_cast %129 : vector<1x16xf32> to vector<1x1x1x16xf32>
    %131 = vector.broadcast %130 : vector<1x1x1x16xf32> to vector<1x16x16x16xf32>
    %132 = arith.mulf %127, %131 : vector<1x16x16x16xf32>
    %133 = arith.addf %126, %132 : vector<1x16x16x16xf32>
    %c0_145 = arith.constant 0 : index
    %c1_146 = arith.constant 1 : index
    %c2_147 = arith.constant 2 : index
    %c0_148 = arith.constant 0 : index
    %134 = vector.load %arg2[%c0_145, %c1_146, %c2_147, %c0_148] : memref<1x22x22x16xf32, #tpu.memory_space<vmem>>, vector<1x16x16x16xf32>
    %c1_149 = arith.constant 1 : index
    %c2_150 = arith.constant 2 : index
    %c0_151 = arith.constant 0 : index
    %c0_152 = arith.constant 0 : index
    %135 = vector.load %arg6[%c1_149, %c2_150, %c0_151, %c0_152] : memref<7x7x1x16xf32, #tpu.memory_space<vmem>>, vector<1x1x1x16xf32>
    %136 = vector.shape_cast %135 : vector<1x1x1x16xf32> to vector<1x16xf32>
    %137 = vector.shape_cast %136 : vector<1x16xf32> to vector<1x1x1x16xf32>
    %138 = vector.broadcast %137 : vector<1x1x1x16xf32> to vector<1x16x16x16xf32>
    %139 = arith.mulf %134, %138 : vector<1x16x16x16xf32>
    %140 = arith.addf %133, %139 : vector<1x16x16x16xf32>
    %c0_153 = arith.constant 0 : index
    %c1_154 = arith.constant 1 : index
    %c3_155 = arith.constant 3 : index
    %c0_156 = arith.constant 0 : index
    %141 = vector.load %arg1[%c0_153, %c1_154, %c3_155, %c0_156] : memref<1x22x22x16xf32, #tpu.memory_space<vmem>>, vector<1x16x16x16xf32>
    %c1_157 = arith.constant 1 : index
    %c3_158 = arith.constant 3 : index
    %c0_159 = arith.constant 0 : index
    %c0_160 = arith.constant 0 : index
    %142 = vector.load %arg5[%c1_157, %c3_158, %c0_159, %c0_160] : memref<7x7x1x16xf32, #tpu.memory_space<vmem>>, vector<1x1x1x16xf32>
    %143 = vector.shape_cast %142 : vector<1x1x1x16xf32> to vector<1x16xf32>
    %144 = vector.shape_cast %143 : vector<1x16xf32> to vector<1x1x1x16xf32>
    %145 = vector.broadcast %144 : vector<1x1x1x16xf32> to vector<1x16x16x16xf32>
    %146 = arith.mulf %141, %145 : vector<1x16x16x16xf32>
    %147 = arith.addf %140, %146 : vector<1x16x16x16xf32>
    %c0_161 = arith.constant 0 : index
    %c1_162 = arith.constant 1 : index
    %c3_163 = arith.constant 3 : index
    %c0_164 = arith.constant 0 : index
    %148 = vector.load %arg2[%c0_161, %c1_162, %c3_163, %c0_164] : memref<1x22x22x16xf32, #tpu.memory_space<vmem>>, vector<1x16x16x16xf32>
    %c1_165 = arith.constant 1 : index
    %c3_166 = arith.constant 3 : index
    %c0_167 = arith.constant 0 : index
    %c0_168 = arith.constant 0 : index
    %149 = vector.load %arg6[%c1_165, %c3_166, %c0_167, %c0_168] : memref<7x7x1x16xf32, #tpu.memory_space<vmem>>, vector<1x1x1x16xf32>
    %150 = vector.shape_cast %149 : vector<1x1x1x16xf32> to vector<1x16xf32>
    %151 = vector.shape_cast %150 : vector<1x16xf32> to vector<1x1x1x16xf32>
    %152 = vector.broadcast %151 : vector<1x1x1x16xf32> to vector<1x16x16x16xf32>
    %153 = arith.mulf %148, %152 : vector<1x16x16x16xf32>
    %154 = arith.addf %147, %153 : vector<1x16x16x16xf32>
    %c0_169 = arith.constant 0 : index
    %c1_170 = arith.constant 1 : index
    %c4_171 = arith.constant 4 : index
    %c0_172 = arith.constant 0 : index
    %155 = vector.load %arg1[%c0_169, %c1_170, %c4_171, %c0_172] : memref<1x22x22x16xf32, #tpu.memory_space<vmem>>, vector<1x16x16x16xf32>
    %c1_173 = arith.constant 1 : index
    %c4_174 = arith.constant 4 : index
    %c0_175 = arith.constant 0 : index
    %c0_176 = arith.constant 0 : index
    %156 = vector.load %arg5[%c1_173, %c4_174, %c0_175, %c0_176] : memref<7x7x1x16xf32, #tpu.memory_space<vmem>>, vector<1x1x1x16xf32>
    %157 = vector.shape_cast %156 : vector<1x1x1x16xf32> to vector<1x16xf32>
    %158 = vector.shape_cast %157 : vector<1x16xf32> to vector<1x1x1x16xf32>
    %159 = vector.broadcast %158 : vector<1x1x1x16xf32> to vector<1x16x16x16xf32>
    %160 = arith.mulf %155, %159 : vector<1x16x16x16xf32>
    %161 = arith.addf %154, %160 : vector<1x16x16x16xf32>
    %c0_177 = arith.constant 0 : index
    %c1_178 = arith.constant 1 : index
    %c4_179 = arith.constant 4 : index
    %c0_180 = arith.constant 0 : index
    %162 = vector.load %arg2[%c0_177, %c1_178, %c4_179, %c0_180] : memref<1x22x22x16xf32, #tpu.memory_space<vmem>>, vector<1x16x16x16xf32>
    %c1_181 = arith.constant 1 : index
    %c4_182 = arith.constant 4 : index
    %c0_183 = arith.constant 0 : index
    %c0_184 = arith.constant 0 : index
    %163 = vector.load %arg6[%c1_181, %c4_182, %c0_183, %c0_184] : memref<7x7x1x16xf32, #tpu.memory_space<vmem>>, vector<1x1x1x16xf32>
    %164 = vector.shape_cast %163 : vector<1x1x1x16xf32> to vector<1x16xf32>
    %165 = vector.shape_cast %164 : vector<1x16xf32> to vector<1x1x1x16xf32>
    %166 = vector.broadcast %165 : vector<1x1x1x16xf32> to vector<1x16x16x16xf32>
    %167 = arith.mulf %162, %166 : vector<1x16x16x16xf32>
    %168 = arith.addf %161, %167 : vector<1x16x16x16xf32>
    %c0_185 = arith.constant 0 : index
    %c1_186 = arith.constant 1 : index
    %c5_187 = arith.constant 5 : index
    %c0_188 = arith.constant 0 : index
    %169 = vector.load %arg1[%c0_185, %c1_186, %c5_187, %c0_188] : memref<1x22x22x16xf32, #tpu.memory_space<vmem>>, vector<1x16x16x16xf32>
    %c1_189 = arith.constant 1 : index
    %c5_190 = arith.constant 5 : index
    %c0_191 = arith.constant 0 : index
    %c0_192 = arith.constant 0 : index
    %170 = vector.load %arg5[%c1_189, %c5_190, %c0_191, %c0_192] : memref<7x7x1x16xf32, #tpu.memory_space<vmem>>, vector<1x1x1x16xf32>
    %171 = vector.shape_cast %170 : vector<1x1x1x16xf32> to vector<1x16xf32>
    %172 = vector.shape_cast %171 : vector<1x16xf32> to vector<1x1x1x16xf32>
    %173 = vector.broadcast %172 : vector<1x1x1x16xf32> to vector<1x16x16x16xf32>
    %174 = arith.mulf %169, %173 : vector<1x16x16x16xf32>
    %175 = arith.addf %168, %174 : vector<1x16x16x16xf32>
    %c0_193 = arith.constant 0 : index
    %c1_194 = arith.constant 1 : index
    %c5_195 = arith.constant 5 : index
    %c0_196 = arith.constant 0 : index
    %176 = vector.load %arg2[%c0_193, %c1_194, %c5_195, %c0_196] : memref<1x22x22x16xf32, #tpu.memory_space<vmem>>, vector<1x16x16x16xf32>
    %c1_197 = arith.constant 1 : index
    %c5_198 = arith.constant 5 : index
    %c0_199 = arith.constant 0 : index
    %c0_200 = arith.constant 0 : index
    %177 = vector.load %arg6[%c1_197, %c5_198, %c0_199, %c0_200] : memref<7x7x1x16xf32, #tpu.memory_space<vmem>>, vector<1x1x1x16xf32>
    %178 = vector.shape_cast %177 : vector<1x1x1x16xf32> to vector<1x16xf32>
    %179 = vector.shape_cast %178 : vector<1x16xf32> to vector<1x1x1x16xf32>
    %180 = vector.broadcast %179 : vector<1x1x1x16xf32> to vector<1x16x16x16xf32>
    %181 = arith.mulf %176, %180 : vector<1x16x16x16xf32>
    %182 = arith.addf %175, %181 : vector<1x16x16x16xf32>
    %c0_201 = arith.constant 0 : index
    %c1_202 = arith.constant 1 : index
    %c6_203 = arith.constant 6 : index
    %c0_204 = arith.constant 0 : index
    %183 = vector.load %arg1[%c0_201, %c1_202, %c6_203, %c0_204] : memref<1x22x22x16xf32, #tpu.memory_space<vmem>>, vector<1x16x16x16xf32>
    %c1_205 = arith.constant 1 : index
    %c6_206 = arith.constant 6 : index
    %c0_207 = arith.constant 0 : index
    %c0_208 = arith.constant 0 : index
    %184 = vector.load %arg5[%c1_205, %c6_206, %c0_207, %c0_208] : memref<7x7x1x16xf32, #tpu.memory_space<vmem>>, vector<1x1x1x16xf32>
    %185 = vector.shape_cast %184 : vector<1x1x1x16xf32> to vector<1x16xf32>
    %186 = vector.shape_cast %185 : vector<1x16xf32> to vector<1x1x1x16xf32>
    %187 = vector.broadcast %186 : vector<1x1x1x16xf32> to vector<1x16x16x16xf32>
    %188 = arith.mulf %183, %187 : vector<1x16x16x16xf32>
    %189 = arith.addf %182, %188 : vector<1x16x16x16xf32>
    %c0_209 = arith.constant 0 : index
    %c1_210 = arith.constant 1 : index
    %c6_211 = arith.constant 6 : index
    %c0_212 = arith.constant 0 : index
    %190 = vector.load %arg2[%c0_209, %c1_210, %c6_211, %c0_212] : memref<1x22x22x16xf32, #tpu.memory_space<vmem>>, vector<1x16x16x16xf32>
    %c1_213 = arith.constant 1 : index
    %c6_214 = arith.constant 6 : index
    %c0_215 = arith.constant 0 : index
    %c0_216 = arith.constant 0 : index
    %191 = vector.load %arg6[%c1_213, %c6_214, %c0_215, %c0_216] : memref<7x7x1x16xf32, #tpu.memory_space<vmem>>, vector<1x1x1x16xf32>
    %192 = vector.shape_cast %191 : vector<1x1x1x16xf32> to vector<1x16xf32>
    %193 = vector.shape_cast %192 : vector<1x16xf32> to vector<1x1x1x16xf32>
    %194 = vector.broadcast %193 : vector<1x1x1x16xf32> to vector<1x16x16x16xf32>
    %195 = arith.mulf %190, %194 : vector<1x16x16x16xf32>
    %196 = arith.addf %189, %195 : vector<1x16x16x16xf32>
    %c0_217 = arith.constant 0 : index
    %c2_218 = arith.constant 2 : index
    %c0_219 = arith.constant 0 : index
    %c0_220 = arith.constant 0 : index
    %197 = vector.load %arg1[%c0_217, %c2_218, %c0_219, %c0_220] : memref<1x22x22x16xf32, #tpu.memory_space<vmem>>, vector<1x16x16x16xf32>
    %c2_221 = arith.constant 2 : index
    %c0_222 = arith.constant 0 : index
    %c0_223 = arith.constant 0 : index
    %c0_224 = arith.constant 0 : index
    %198 = vector.load %arg5[%c2_221, %c0_222, %c0_223, %c0_224] : memref<7x7x1x16xf32, #tpu.memory_space<vmem>>, vector<1x1x1x16xf32>
    %199 = vector.shape_cast %198 : vector<1x1x1x16xf32> to vector<1x16xf32>
    %200 = vector.shape_cast %199 : vector<1x16xf32> to vector<1x1x1x16xf32>
    %201 = vector.broadcast %200 : vector<1x1x1x16xf32> to vector<1x16x16x16xf32>
    %202 = arith.mulf %197, %201 : vector<1x16x16x16xf32>
    %203 = arith.addf %196, %202 : vector<1x16x16x16xf32>
    %c0_225 = arith.constant 0 : index
    %c2_226 = arith.constant 2 : index
    %c0_227 = arith.constant 0 : index
    %c0_228 = arith.constant 0 : index
    %204 = vector.load %arg2[%c0_225, %c2_226, %c0_227, %c0_228] : memref<1x22x22x16xf32, #tpu.memory_space<vmem>>, vector<1x16x16x16xf32>
    %c2_229 = arith.constant 2 : index
    %c0_230 = arith.constant 0 : index
    %c0_231 = arith.constant 0 : index
    %c0_232 = arith.constant 0 : index
    %205 = vector.load %arg6[%c2_229, %c0_230, %c0_231, %c0_232] : memref<7x7x1x16xf32, #tpu.memory_space<vmem>>, vector<1x1x1x16xf32>
    %206 = vector.shape_cast %205 : vector<1x1x1x16xf32> to vector<1x16xf32>
    %207 = vector.shape_cast %206 : vector<1x16xf32> to vector<1x1x1x16xf32>
    %208 = vector.broadcast %207 : vector<1x1x1x16xf32> to vector<1x16x16x16xf32>
    %209 = arith.mulf %204, %208 : vector<1x16x16x16xf32>
    %210 = arith.addf %203, %209 : vector<1x16x16x16xf32>
    %c0_233 = arith.constant 0 : index
    %c2_234 = arith.constant 2 : index
    %c1_235 = arith.constant 1 : index
    %c0_236 = arith.constant 0 : index
    %211 = vector.load %arg1[%c0_233, %c2_234, %c1_235, %c0_236] : memref<1x22x22x16xf32, #tpu.memory_space<vmem>>, vector<1x16x16x16xf32>
    %c2_237 = arith.constant 2 : index
    %c1_238 = arith.constant 1 : index
    %c0_239 = arith.constant 0 : index
    %c0_240 = arith.constant 0 : index
    %212 = vector.load %arg5[%c2_237, %c1_238, %c0_239, %c0_240] : memref<7x7x1x16xf32, #tpu.memory_space<vmem>>, vector<1x1x1x16xf32>
    %213 = vector.shape_cast %212 : vector<1x1x1x16xf32> to vector<1x16xf32>
    %214 = vector.shape_cast %213 : vector<1x16xf32> to vector<1x1x1x16xf32>
    %215 = vector.broadcast %214 : vector<1x1x1x16xf32> to vector<1x16x16x16xf32>
    %216 = arith.mulf %211, %215 : vector<1x16x16x16xf32>
    %217 = arith.addf %210, %216 : vector<1x16x16x16xf32>
    %c0_241 = arith.constant 0 : index
    %c2_242 = arith.constant 2 : index
    %c1_243 = arith.constant 1 : index
    %c0_244 = arith.constant 0 : index
    %218 = vector.load %arg2[%c0_241, %c2_242, %c1_243, %c0_244] : memref<1x22x22x16xf32, #tpu.memory_space<vmem>>, vector<1x16x16x16xf32>
    %c2_245 = arith.constant 2 : index
    %c1_246 = arith.constant 1 : index
    %c0_247 = arith.constant 0 : index
    %c0_248 = arith.constant 0 : index
    %219 = vector.load %arg6[%c2_245, %c1_246, %c0_247, %c0_248] : memref<7x7x1x16xf32, #tpu.memory_space<vmem>>, vector<1x1x1x16xf32>
    %220 = vector.shape_cast %219 : vector<1x1x1x16xf32> to vector<1x16xf32>
    %221 = vector.shape_cast %220 : vector<1x16xf32> to vector<1x1x1x16xf32>
    %222 = vector.broadcast %221 : vector<1x1x1x16xf32> to vector<1x16x16x16xf32>
    %223 = arith.mulf %218, %222 : vector<1x16x16x16xf32>
    %224 = arith.addf %217, %223 : vector<1x16x16x16xf32>
    %c0_249 = arith.constant 0 : index
    %c2_250 = arith.constant 2 : index
    %c2_251 = arith.constant 2 : index
    %c0_252 = arith.constant 0 : index
    %225 = vector.load %arg1[%c0_249, %c2_250, %c2_251, %c0_252] : memref<1x22x22x16xf32, #tpu.memory_space<vmem>>, vector<1x16x16x16xf32>
    %c2_253 = arith.constant 2 : index
    %c2_254 = arith.constant 2 : index
    %c0_255 = arith.constant 0 : index
    %c0_256 = arith.constant 0 : index
    %226 = vector.load %arg5[%c2_253, %c2_254, %c0_255, %c0_256] : memref<7x7x1x16xf32, #tpu.memory_space<vmem>>, vector<1x1x1x16xf32>
    %227 = vector.shape_cast %226 : vector<1x1x1x16xf32> to vector<1x16xf32>
    %228 = vector.shape_cast %227 : vector<1x16xf32> to vector<1x1x1x16xf32>
    %229 = vector.broadcast %228 : vector<1x1x1x16xf32> to vector<1x16x16x16xf32>
    %230 = arith.mulf %225, %229 : vector<1x16x16x16xf32>
    %231 = arith.addf %224, %230 : vector<1x16x16x16xf32>
    %c0_257 = arith.constant 0 : index
    %c2_258 = arith.constant 2 : index
    %c2_259 = arith.constant 2 : index
    %c0_260 = arith.constant 0 : index
    %232 = vector.load %arg2[%c0_257, %c2_258, %c2_259, %c0_260] : memref<1x22x22x16xf32, #tpu.memory_space<vmem>>, vector<1x16x16x16xf32>
    %c2_261 = arith.constant 2 : index
    %c2_262 = arith.constant 2 : index
    %c0_263 = arith.constant 0 : index
    %c0_264 = arith.constant 0 : index
    %233 = vector.load %arg6[%c2_261, %c2_262, %c0_263, %c0_264] : memref<7x7x1x16xf32, #tpu.memory_space<vmem>>, vector<1x1x1x16xf32>
    %234 = vector.shape_cast %233 : vector<1x1x1x16xf32> to vector<1x16xf32>
    %235 = vector.shape_cast %234 : vector<1x16xf32> to vector<1x1x1x16xf32>
    %236 = vector.broadcast %235 : vector<1x1x1x16xf32> to vector<1x16x16x16xf32>
    %237 = arith.mulf %232, %236 : vector<1x16x16x16xf32>
    %238 = arith.addf %231, %237 : vector<1x16x16x16xf32>
    %c0_265 = arith.constant 0 : index
    %c2_266 = arith.constant 2 : index
    %c3_267 = arith.constant 3 : index
    %c0_268 = arith.constant 0 : index
    %239 = vector.load %arg1[%c0_265, %c2_266, %c3_267, %c0_268] : memref<1x22x22x16xf32, #tpu.memory_space<vmem>>, vector<1x16x16x16xf32>
    %c2_269 = arith.constant 2 : index
    %c3_270 = arith.constant 3 : index
    %c0_271 = arith.constant 0 : index
    %c0_272 = arith.constant 0 : index
    %240 = vector.load %arg5[%c2_269, %c3_270, %c0_271, %c0_272] : memref<7x7x1x16xf32, #tpu.memory_space<vmem>>, vector<1x1x1x16xf32>
    %241 = vector.shape_cast %240 : vector<1x1x1x16xf32> to vector<1x16xf32>
    %242 = vector.shape_cast %241 : vector<1x16xf32> to vector<1x1x1x16xf32>
    %243 = vector.broadcast %242 : vector<1x1x1x16xf32> to vector<1x16x16x16xf32>
    %244 = arith.mulf %239, %243 : vector<1x16x16x16xf32>
    %245 = arith.addf %238, %244 : vector<1x16x16x16xf32>
    %c0_273 = arith.constant 0 : index
    %c2_274 = arith.constant 2 : index
    %c3_275 = arith.constant 3 : index
    %c0_276 = arith.constant 0 : index
    %246 = vector.load %arg2[%c0_273, %c2_274, %c3_275, %c0_276] : memref<1x22x22x16xf32, #tpu.memory_space<vmem>>, vector<1x16x16x16xf32>
    %c2_277 = arith.constant 2 : index
    %c3_278 = arith.constant 3 : index
    %c0_279 = arith.constant 0 : index
    %c0_280 = arith.constant 0 : index
    %247 = vector.load %arg6[%c2_277, %c3_278, %c0_279, %c0_280] : memref<7x7x1x16xf32, #tpu.memory_space<vmem>>, vector<1x1x1x16xf32>
    %248 = vector.shape_cast %247 : vector<1x1x1x16xf32> to vector<1x16xf32>
    %249 = vector.shape_cast %248 : vector<1x16xf32> to vector<1x1x1x16xf32>
    %250 = vector.broadcast %249 : vector<1x1x1x16xf32> to vector<1x16x16x16xf32>
    %251 = arith.mulf %246, %250 : vector<1x16x16x16xf32>
    %252 = arith.addf %245, %251 : vector<1x16x16x16xf32>
    %c0_281 = arith.constant 0 : index
    %c2_282 = arith.constant 2 : index
    %c4_283 = arith.constant 4 : index
    %c0_284 = arith.constant 0 : index
    %253 = vector.load %arg1[%c0_281, %c2_282, %c4_283, %c0_284] : memref<1x22x22x16xf32, #tpu.memory_space<vmem>>, vector<1x16x16x16xf32>
    %c2_285 = arith.constant 2 : index
    %c4_286 = arith.constant 4 : index
    %c0_287 = arith.constant 0 : index
    %c0_288 = arith.constant 0 : index
    %254 = vector.load %arg5[%c2_285, %c4_286, %c0_287, %c0_288] : memref<7x7x1x16xf32, #tpu.memory_space<vmem>>, vector<1x1x1x16xf32>
    %255 = vector.shape_cast %254 : vector<1x1x1x16xf32> to vector<1x16xf32>
    %256 = vector.shape_cast %255 : vector<1x16xf32> to vector<1x1x1x16xf32>
    %257 = vector.broadcast %256 : vector<1x1x1x16xf32> to vector<1x16x16x16xf32>
    %258 = arith.mulf %253, %257 : vector<1x16x16x16xf32>
    %259 = arith.addf %252, %258 : vector<1x16x16x16xf32>
    %c0_289 = arith.constant 0 : index
    %c2_290 = arith.constant 2 : index
    %c4_291 = arith.constant 4 : index
    %c0_292 = arith.constant 0 : index
    %260 = vector.load %arg2[%c0_289, %c2_290, %c4_291, %c0_292] : memref<1x22x22x16xf32, #tpu.memory_space<vmem>>, vector<1x16x16x16xf32>
    %c2_293 = arith.constant 2 : index
    %c4_294 = arith.constant 4 : index
    %c0_295 = arith.constant 0 : index
    %c0_296 = arith.constant 0 : index
    %261 = vector.load %arg6[%c2_293, %c4_294, %c0_295, %c0_296] : memref<7x7x1x16xf32, #tpu.memory_space<vmem>>, vector<1x1x1x16xf32>
    %262 = vector.shape_cast %261 : vector<1x1x1x16xf32> to vector<1x16xf32>
    %263 = vector.shape_cast %262 : vector<1x16xf32> to vector<1x1x1x16xf32>
    %264 = vector.broadcast %263 : vector<1x1x1x16xf32> to vector<1x16x16x16xf32>
    %265 = arith.mulf %260, %264 : vector<1x16x16x16xf32>
    %266 = arith.addf %259, %265 : vector<1x16x16x16xf32>
    %c0_297 = arith.constant 0 : index
    %c2_298 = arith.constant 2 : index
    %c5_299 = arith.constant 5 : index
    %c0_300 = arith.constant 0 : index
    %267 = vector.load %arg1[%c0_297, %c2_298, %c5_299, %c0_300] : memref<1x22x22x16xf32, #tpu.memory_space<vmem>>, vector<1x16x16x16xf32>
    %c2_301 = arith.constant 2 : index
    %c5_302 = arith.constant 5 : index
    %c0_303 = arith.constant 0 : index
    %c0_304 = arith.constant 0 : index
    %268 = vector.load %arg5[%c2_301, %c5_302, %c0_303, %c0_304] : memref<7x7x1x16xf32, #tpu.memory_space<vmem>>, vector<1x1x1x16xf32>
    %269 = vector.shape_cast %268 : vector<1x1x1x16xf32> to vector<1x16xf32>
    %270 = vector.shape_cast %269 : vector<1x16xf32> to vector<1x1x1x16xf32>
    %271 = vector.broadcast %270 : vector<1x1x1x16xf32> to vector<1x16x16x16xf32>
    %272 = arith.mulf %267, %271 : vector<1x16x16x16xf32>
    %273 = arith.addf %266, %272 : vector<1x16x16x16xf32>
    %c0_305 = arith.constant 0 : index
    %c2_306 = arith.constant 2 : index
    %c5_307 = arith.constant 5 : index
    %c0_308 = arith.constant 0 : index
    %274 = vector.load %arg2[%c0_305, %c2_306, %c5_307, %c0_308] : memref<1x22x22x16xf32, #tpu.memory_space<vmem>>, vector<1x16x16x16xf32>
    %c2_309 = arith.constant 2 : index
    %c5_310 = arith.constant 5 : index
    %c0_311 = arith.constant 0 : index
    %c0_312 = arith.constant 0 : index
    %275 = vector.load %arg6[%c2_309, %c5_310, %c0_311, %c0_312] : memref<7x7x1x16xf32, #tpu.memory_space<vmem>>, vector<1x1x1x16xf32>
    %276 = vector.shape_cast %275 : vector<1x1x1x16xf32> to vector<1x16xf32>
    %277 = vector.shape_cast %276 : vector<1x16xf32> to vector<1x1x1x16xf32>
    %278 = vector.broadcast %277 : vector<1x1x1x16xf32> to vector<1x16x16x16xf32>
    %279 = arith.mulf %274, %278 : vector<1x16x16x16xf32>
    %280 = arith.addf %273, %279 : vector<1x16x16x16xf32>
    %c0_313 = arith.constant 0 : index
    %c2_314 = arith.constant 2 : index
    %c6_315 = arith.constant 6 : index
    %c0_316 = arith.constant 0 : index
    %281 = vector.load %arg1[%c0_313, %c2_314, %c6_315, %c0_316] : memref<1x22x22x16xf32, #tpu.memory_space<vmem>>, vector<1x16x16x16xf32>
    %c2_317 = arith.constant 2 : index
    %c6_318 = arith.constant 6 : index
    %c0_319 = arith.constant 0 : index
    %c0_320 = arith.constant 0 : index
    %282 = vector.load %arg5[%c2_317, %c6_318, %c0_319, %c0_320] : memref<7x7x1x16xf32, #tpu.memory_space<vmem>>, vector<1x1x1x16xf32>
    %283 = vector.shape_cast %282 : vector<1x1x1x16xf32> to vector<1x16xf32>
    %284 = vector.shape_cast %283 : vector<1x16xf32> to vector<1x1x1x16xf32>
    %285 = vector.broadcast %284 : vector<1x1x1x16xf32> to vector<1x16x16x16xf32>
    %286 = arith.mulf %281, %285 : vector<1x16x16x16xf32>
    %287 = arith.addf %280, %286 : vector<1x16x16x16xf32>
    %c0_321 = arith.constant 0 : index
    %c2_322 = arith.constant 2 : index
    %c6_323 = arith.constant 6 : index
    %c0_324 = arith.constant 0 : index
    %288 = vector.load %arg2[%c0_321, %c2_322, %c6_323, %c0_324] : memref<1x22x22x16xf32, #tpu.memory_space<vmem>>, vector<1x16x16x16xf32>
    %c2_325 = arith.constant 2 : index
    %c6_326 = arith.constant 6 : index
    %c0_327 = arith.constant 0 : index
    %c0_328 = arith.constant 0 : index
    %289 = vector.load %arg6[%c2_325, %c6_326, %c0_327, %c0_328] : memref<7x7x1x16xf32, #tpu.memory_space<vmem>>, vector<1x1x1x16xf32>
    %290 = vector.shape_cast %289 : vector<1x1x1x16xf32> to vector<1x16xf32>
    %291 = vector.shape_cast %290 : vector<1x16xf32> to vector<1x1x1x16xf32>
    %292 = vector.broadcast %291 : vector<1x1x1x16xf32> to vector<1x16x16x16xf32>
    %293 = arith.mulf %288, %292 : vector<1x16x16x16xf32>
    %294 = arith.addf %287, %293 : vector<1x16x16x16xf32>
    %c0_329 = arith.constant 0 : index
    %c3_330 = arith.constant 3 : index
    %c0_331 = arith.constant 0 : index
    %c0_332 = arith.constant 0 : index
    %295 = vector.load %arg1[%c0_329, %c3_330, %c0_331, %c0_332] : memref<1x22x22x16xf32, #tpu.memory_space<vmem>>, vector<1x16x16x16xf32>
    %c3_333 = arith.constant 3 : index
    %c0_334 = arith.constant 0 : index
    %c0_335 = arith.constant 0 : index
    %c0_336 = arith.constant 0 : index
    %296 = vector.load %arg5[%c3_333, %c0_334, %c0_335, %c0_336] : memref<7x7x1x16xf32, #tpu.memory_space<vmem>>, vector<1x1x1x16xf32>
    %297 = vector.shape_cast %296 : vector<1x1x1x16xf32> to vector<1x16xf32>
    %298 = vector.shape_cast %297 : vector<1x16xf32> to vector<1x1x1x16xf32>
    %299 = vector.broadcast %298 : vector<1x1x1x16xf32> to vector<1x16x16x16xf32>
    %300 = arith.mulf %295, %299 : vector<1x16x16x16xf32>
    %301 = arith.addf %294, %300 : vector<1x16x16x16xf32>
    %c0_337 = arith.constant 0 : index
    %c3_338 = arith.constant 3 : index
    %c0_339 = arith.constant 0 : index
    %c0_340 = arith.constant 0 : index
    %302 = vector.load %arg2[%c0_337, %c3_338, %c0_339, %c0_340] : memref<1x22x22x16xf32, #tpu.memory_space<vmem>>, vector<1x16x16x16xf32>
    %c3_341 = arith.constant 3 : index
    %c0_342 = arith.constant 0 : index
    %c0_343 = arith.constant 0 : index
    %c0_344 = arith.constant 0 : index
    %303 = vector.load %arg6[%c3_341, %c0_342, %c0_343, %c0_344] : memref<7x7x1x16xf32, #tpu.memory_space<vmem>>, vector<1x1x1x16xf32>
    %304 = vector.shape_cast %303 : vector<1x1x1x16xf32> to vector<1x16xf32>
    %305 = vector.shape_cast %304 : vector<1x16xf32> to vector<1x1x1x16xf32>
    %306 = vector.broadcast %305 : vector<1x1x1x16xf32> to vector<1x16x16x16xf32>
    %307 = arith.mulf %302, %306 : vector<1x16x16x16xf32>
    %308 = arith.addf %301, %307 : vector<1x16x16x16xf32>
    %c0_345 = arith.constant 0 : index
    %c3_346 = arith.constant 3 : index
    %c1_347 = arith.constant 1 : index
    %c0_348 = arith.constant 0 : index
    %309 = vector.load %arg1[%c0_345, %c3_346, %c1_347, %c0_348] : memref<1x22x22x16xf32, #tpu.memory_space<vmem>>, vector<1x16x16x16xf32>
    %c3_349 = arith.constant 3 : index
    %c1_350 = arith.constant 1 : index
    %c0_351 = arith.constant 0 : index
    %c0_352 = arith.constant 0 : index
    %310 = vector.load %arg5[%c3_349, %c1_350, %c0_351, %c0_352] : memref<7x7x1x16xf32, #tpu.memory_space<vmem>>, vector<1x1x1x16xf32>
    %311 = vector.shape_cast %310 : vector<1x1x1x16xf32> to vector<1x16xf32>
    %312 = vector.shape_cast %311 : vector<1x16xf32> to vector<1x1x1x16xf32>
    %313 = vector.broadcast %312 : vector<1x1x1x16xf32> to vector<1x16x16x16xf32>
    %314 = arith.mulf %309, %313 : vector<1x16x16x16xf32>
    %315 = arith.addf %308, %314 : vector<1x16x16x16xf32>
    %c0_353 = arith.constant 0 : index
    %c3_354 = arith.constant 3 : index
    %c1_355 = arith.constant 1 : index
    %c0_356 = arith.constant 0 : index
    %316 = vector.load %arg2[%c0_353, %c3_354, %c1_355, %c0_356] : memref<1x22x22x16xf32, #tpu.memory_space<vmem>>, vector<1x16x16x16xf32>
    %c3_357 = arith.constant 3 : index
    %c1_358 = arith.constant 1 : index
    %c0_359 = arith.constant 0 : index
    %c0_360 = arith.constant 0 : index
    %317 = vector.load %arg6[%c3_357, %c1_358, %c0_359, %c0_360] : memref<7x7x1x16xf32, #tpu.memory_space<vmem>>, vector<1x1x1x16xf32>
    %318 = vector.shape_cast %317 : vector<1x1x1x16xf32> to vector<1x16xf32>
    %319 = vector.shape_cast %318 : vector<1x16xf32> to vector<1x1x1x16xf32>
    %320 = vector.broadcast %319 : vector<1x1x1x16xf32> to vector<1x16x16x16xf32>
    %321 = arith.mulf %316, %320 : vector<1x16x16x16xf32>
    %322 = arith.addf %315, %321 : vector<1x16x16x16xf32>
    %c0_361 = arith.constant 0 : index
    %c3_362 = arith.constant 3 : index
    %c2_363 = arith.constant 2 : index
    %c0_364 = arith.constant 0 : index
    %323 = vector.load %arg1[%c0_361, %c3_362, %c2_363, %c0_364] : memref<1x22x22x16xf32, #tpu.memory_space<vmem>>, vector<1x16x16x16xf32>
    %c3_365 = arith.constant 3 : index
    %c2_366 = arith.constant 2 : index
    %c0_367 = arith.constant 0 : index
    %c0_368 = arith.constant 0 : index
    %324 = vector.load %arg5[%c3_365, %c2_366, %c0_367, %c0_368] : memref<7x7x1x16xf32, #tpu.memory_space<vmem>>, vector<1x1x1x16xf32>
    %325 = vector.shape_cast %324 : vector<1x1x1x16xf32> to vector<1x16xf32>
    %326 = vector.shape_cast %325 : vector<1x16xf32> to vector<1x1x1x16xf32>
    %327 = vector.broadcast %326 : vector<1x1x1x16xf32> to vector<1x16x16x16xf32>
    %328 = arith.mulf %323, %327 : vector<1x16x16x16xf32>
    %329 = arith.addf %322, %328 : vector<1x16x16x16xf32>
    %c0_369 = arith.constant 0 : index
    %c3_370 = arith.constant 3 : index
    %c2_371 = arith.constant 2 : index
    %c0_372 = arith.constant 0 : index
    %330 = vector.load %arg2[%c0_369, %c3_370, %c2_371, %c0_372] : memref<1x22x22x16xf32, #tpu.memory_space<vmem>>, vector<1x16x16x16xf32>
    %c3_373 = arith.constant 3 : index
    %c2_374 = arith.constant 2 : index
    %c0_375 = arith.constant 0 : index
    %c0_376 = arith.constant 0 : index
    %331 = vector.load %arg6[%c3_373, %c2_374, %c0_375, %c0_376] : memref<7x7x1x16xf32, #tpu.memory_space<vmem>>, vector<1x1x1x16xf32>
    %332 = vector.shape_cast %331 : vector<1x1x1x16xf32> to vector<1x16xf32>
    %333 = vector.shape_cast %332 : vector<1x16xf32> to vector<1x1x1x16xf32>
    %334 = vector.broadcast %333 : vector<1x1x1x16xf32> to vector<1x16x16x16xf32>
    %335 = arith.mulf %330, %334 : vector<1x16x16x16xf32>
    %336 = arith.addf %329, %335 : vector<1x16x16x16xf32>
    %c0_377 = arith.constant 0 : index
    %c3_378 = arith.constant 3 : index
    %c3_379 = arith.constant 3 : index
    %c0_380 = arith.constant 0 : index
    %337 = vector.load %arg1[%c0_377, %c3_378, %c3_379, %c0_380] : memref<1x22x22x16xf32, #tpu.memory_space<vmem>>, vector<1x16x16x16xf32>
    %c3_381 = arith.constant 3 : index
    %c3_382 = arith.constant 3 : index
    %c0_383 = arith.constant 0 : index
    %c0_384 = arith.constant 0 : index
    %338 = vector.load %arg5[%c3_381, %c3_382, %c0_383, %c0_384] : memref<7x7x1x16xf32, #tpu.memory_space<vmem>>, vector<1x1x1x16xf32>
    %339 = vector.shape_cast %338 : vector<1x1x1x16xf32> to vector<1x16xf32>
    %340 = vector.shape_cast %339 : vector<1x16xf32> to vector<1x1x1x16xf32>
    %341 = vector.broadcast %340 : vector<1x1x1x16xf32> to vector<1x16x16x16xf32>
    %342 = arith.mulf %337, %341 : vector<1x16x16x16xf32>
    %343 = arith.addf %336, %342 : vector<1x16x16x16xf32>
    %c0_385 = arith.constant 0 : index
    %c3_386 = arith.constant 3 : index
    %c3_387 = arith.constant 3 : index
    %c0_388 = arith.constant 0 : index
    %344 = vector.load %arg2[%c0_385, %c3_386, %c3_387, %c0_388] : memref<1x22x22x16xf32, #tpu.memory_space<vmem>>, vector<1x16x16x16xf32>
    %c3_389 = arith.constant 3 : index
    %c3_390 = arith.constant 3 : index
    %c0_391 = arith.constant 0 : index
    %c0_392 = arith.constant 0 : index
    %345 = vector.load %arg6[%c3_389, %c3_390, %c0_391, %c0_392] : memref<7x7x1x16xf32, #tpu.memory_space<vmem>>, vector<1x1x1x16xf32>
    %346 = vector.shape_cast %345 : vector<1x1x1x16xf32> to vector<1x16xf32>
    %347 = vector.shape_cast %346 : vector<1x16xf32> to vector<1x1x1x16xf32>
    %348 = vector.broadcast %347 : vector<1x1x1x16xf32> to vector<1x16x16x16xf32>
    %349 = arith.mulf %344, %348 : vector<1x16x16x16xf32>
    %350 = arith.addf %343, %349 : vector<1x16x16x16xf32>
    %c0_393 = arith.constant 0 : index
    %c3_394 = arith.constant 3 : index
    %c4_395 = arith.constant 4 : index
    %c0_396 = arith.constant 0 : index
    %351 = vector.load %arg1[%c0_393, %c3_394, %c4_395, %c0_396] : memref<1x22x22x16xf32, #tpu.memory_space<vmem>>, vector<1x16x16x16xf32>
    %c3_397 = arith.constant 3 : index
    %c4_398 = arith.constant 4 : index
    %c0_399 = arith.constant 0 : index
    %c0_400 = arith.constant 0 : index
    %352 = vector.load %arg5[%c3_397, %c4_398, %c0_399, %c0_400] : memref<7x7x1x16xf32, #tpu.memory_space<vmem>>, vector<1x1x1x16xf32>
    %353 = vector.shape_cast %352 : vector<1x1x1x16xf32> to vector<1x16xf32>
    %354 = vector.shape_cast %353 : vector<1x16xf32> to vector<1x1x1x16xf32>
    %355 = vector.broadcast %354 : vector<1x1x1x16xf32> to vector<1x16x16x16xf32>
    %356 = arith.mulf %351, %355 : vector<1x16x16x16xf32>
    %357 = arith.addf %350, %356 : vector<1x16x16x16xf32>
    %c0_401 = arith.constant 0 : index
    %c3_402 = arith.constant 3 : index
    %c4_403 = arith.constant 4 : index
    %c0_404 = arith.constant 0 : index
    %358 = vector.load %arg2[%c0_401, %c3_402, %c4_403, %c0_404] : memref<1x22x22x16xf32, #tpu.memory_space<vmem>>, vector<1x16x16x16xf32>
    %c3_405 = arith.constant 3 : index
    %c4_406 = arith.constant 4 : index
    %c0_407 = arith.constant 0 : index
    %c0_408 = arith.constant 0 : index
    %359 = vector.load %arg6[%c3_405, %c4_406, %c0_407, %c0_408] : memref<7x7x1x16xf32, #tpu.memory_space<vmem>>, vector<1x1x1x16xf32>
    %360 = vector.shape_cast %359 : vector<1x1x1x16xf32> to vector<1x16xf32>
    %361 = vector.shape_cast %360 : vector<1x16xf32> to vector<1x1x1x16xf32>
    %362 = vector.broadcast %361 : vector<1x1x1x16xf32> to vector<1x16x16x16xf32>
    %363 = arith.mulf %358, %362 : vector<1x16x16x16xf32>
    %364 = arith.addf %357, %363 : vector<1x16x16x16xf32>
    %c0_409 = arith.constant 0 : index
    %c3_410 = arith.constant 3 : index
    %c5_411 = arith.constant 5 : index
    %c0_412 = arith.constant 0 : index
    %365 = vector.load %arg1[%c0_409, %c3_410, %c5_411, %c0_412] : memref<1x22x22x16xf32, #tpu.memory_space<vmem>>, vector<1x16x16x16xf32>
    %c3_413 = arith.constant 3 : index
    %c5_414 = arith.constant 5 : index
    %c0_415 = arith.constant 0 : index
    %c0_416 = arith.constant 0 : index
    %366 = vector.load %arg5[%c3_413, %c5_414, %c0_415, %c0_416] : memref<7x7x1x16xf32, #tpu.memory_space<vmem>>, vector<1x1x1x16xf32>
    %367 = vector.shape_cast %366 : vector<1x1x1x16xf32> to vector<1x16xf32>
    %368 = vector.shape_cast %367 : vector<1x16xf32> to vector<1x1x1x16xf32>
    %369 = vector.broadcast %368 : vector<1x1x1x16xf32> to vector<1x16x16x16xf32>
    %370 = arith.mulf %365, %369 : vector<1x16x16x16xf32>
    %371 = arith.addf %364, %370 : vector<1x16x16x16xf32>
    %c0_417 = arith.constant 0 : index
    %c3_418 = arith.constant 3 : index
    %c5_419 = arith.constant 5 : index
    %c0_420 = arith.constant 0 : index
    %372 = vector.load %arg2[%c0_417, %c3_418, %c5_419, %c0_420] : memref<1x22x22x16xf32, #tpu.memory_space<vmem>>, vector<1x16x16x16xf32>
    %c3_421 = arith.constant 3 : index
    %c5_422 = arith.constant 5 : index
    %c0_423 = arith.constant 0 : index
    %c0_424 = arith.constant 0 : index
    %373 = vector.load %arg6[%c3_421, %c5_422, %c0_423, %c0_424] : memref<7x7x1x16xf32, #tpu.memory_space<vmem>>, vector<1x1x1x16xf32>
    %374 = vector.shape_cast %373 : vector<1x1x1x16xf32> to vector<1x16xf32>
    %375 = vector.shape_cast %374 : vector<1x16xf32> to vector<1x1x1x16xf32>
    %376 = vector.broadcast %375 : vector<1x1x1x16xf32> to vector<1x16x16x16xf32>
    %377 = arith.mulf %372, %376 : vector<1x16x16x16xf32>
    %378 = arith.addf %371, %377 : vector<1x16x16x16xf32>
    %c0_425 = arith.constant 0 : index
    %c3_426 = arith.constant 3 : index
    %c6_427 = arith.constant 6 : index
    %c0_428 = arith.constant 0 : index
    %379 = vector.load %arg1[%c0_425, %c3_426, %c6_427, %c0_428] : memref<1x22x22x16xf32, #tpu.memory_space<vmem>>, vector<1x16x16x16xf32>
    %c3_429 = arith.constant 3 : index
    %c6_430 = arith.constant 6 : index
    %c0_431 = arith.constant 0 : index
    %c0_432 = arith.constant 0 : index
    %380 = vector.load %arg5[%c3_429, %c6_430, %c0_431, %c0_432] : memref<7x7x1x16xf32, #tpu.memory_space<vmem>>, vector<1x1x1x16xf32>
    %381 = vector.shape_cast %380 : vector<1x1x1x16xf32> to vector<1x16xf32>
    %382 = vector.shape_cast %381 : vector<1x16xf32> to vector<1x1x1x16xf32>
    %383 = vector.broadcast %382 : vector<1x1x1x16xf32> to vector<1x16x16x16xf32>
    %384 = arith.mulf %379, %383 : vector<1x16x16x16xf32>
    %385 = arith.addf %378, %384 : vector<1x16x16x16xf32>
    %c0_433 = arith.constant 0 : index
    %c3_434 = arith.constant 3 : index
    %c6_435 = arith.constant 6 : index
    %c0_436 = arith.constant 0 : index
    %386 = vector.load %arg2[%c0_433, %c3_434, %c6_435, %c0_436] : memref<1x22x22x16xf32, #tpu.memory_space<vmem>>, vector<1x16x16x16xf32>
    %c3_437 = arith.constant 3 : index
    %c6_438 = arith.constant 6 : index
    %c0_439 = arith.constant 0 : index
    %c0_440 = arith.constant 0 : index
    %387 = vector.load %arg6[%c3_437, %c6_438, %c0_439, %c0_440] : memref<7x7x1x16xf32, #tpu.memory_space<vmem>>, vector<1x1x1x16xf32>
    %388 = vector.shape_cast %387 : vector<1x1x1x16xf32> to vector<1x16xf32>
    %389 = vector.shape_cast %388 : vector<1x16xf32> to vector<1x1x1x16xf32>
    %390 = vector.broadcast %389 : vector<1x1x1x16xf32> to vector<1x16x16x16xf32>
    %391 = arith.mulf %386, %390 : vector<1x16x16x16xf32>
    %392 = arith.addf %385, %391 : vector<1x16x16x16xf32>
    %c0_441 = arith.constant 0 : index
    %c4_442 = arith.constant 4 : index
    %c0_443 = arith.constant 0 : index
    %c0_444 = arith.constant 0 : index
    %393 = vector.load %arg1[%c0_441, %c4_442, %c0_443, %c0_444] : memref<1x22x22x16xf32, #tpu.memory_space<vmem>>, vector<1x16x16x16xf32>
    %c4_445 = arith.constant 4 : index
    %c0_446 = arith.constant 0 : index
    %c0_447 = arith.constant 0 : index
    %c0_448 = arith.constant 0 : index
    %394 = vector.load %arg5[%c4_445, %c0_446, %c0_447, %c0_448] : memref<7x7x1x16xf32, #tpu.memory_space<vmem>>, vector<1x1x1x16xf32>
    %395 = vector.shape_cast %394 : vector<1x1x1x16xf32> to vector<1x16xf32>
    %396 = vector.shape_cast %395 : vector<1x16xf32> to vector<1x1x1x16xf32>
    %397 = vector.broadcast %396 : vector<1x1x1x16xf32> to vector<1x16x16x16xf32>
    %398 = arith.mulf %393, %397 : vector<1x16x16x16xf32>
    %399 = arith.addf %392, %398 : vector<1x16x16x16xf32>
    %c0_449 = arith.constant 0 : index
    %c4_450 = arith.constant 4 : index
    %c0_451 = arith.constant 0 : index
    %c0_452 = arith.constant 0 : index
    %400 = vector.load %arg2[%c0_449, %c4_450, %c0_451, %c0_452] : memref<1x22x22x16xf32, #tpu.memory_space<vmem>>, vector<1x16x16x16xf32>
    %c4_453 = arith.constant 4 : index
    %c0_454 = arith.constant 0 : index
    %c0_455 = arith.constant 0 : index
    %c0_456 = arith.constant 0 : index
    %401 = vector.load %arg6[%c4_453, %c0_454, %c0_455, %c0_456] : memref<7x7x1x16xf32, #tpu.memory_space<vmem>>, vector<1x1x1x16xf32>
    %402 = vector.shape_cast %401 : vector<1x1x1x16xf32> to vector<1x16xf32>
    %403 = vector.shape_cast %402 : vector<1x16xf32> to vector<1x1x1x16xf32>
    %404 = vector.broadcast %403 : vector<1x1x1x16xf32> to vector<1x16x16x16xf32>
    %405 = arith.mulf %400, %404 : vector<1x16x16x16xf32>
    %406 = arith.addf %399, %405 : vector<1x16x16x16xf32>
    %c0_457 = arith.constant 0 : index
    %c4_458 = arith.constant 4 : index
    %c1_459 = arith.constant 1 : index
    %c0_460 = arith.constant 0 : index
    %407 = vector.load %arg1[%c0_457, %c4_458, %c1_459, %c0_460] : memref<1x22x22x16xf32, #tpu.memory_space<vmem>>, vector<1x16x16x16xf32>
    %c4_461 = arith.constant 4 : index
    %c1_462 = arith.constant 1 : index
    %c0_463 = arith.constant 0 : index
    %c0_464 = arith.constant 0 : index
    %408 = vector.load %arg5[%c4_461, %c1_462, %c0_463, %c0_464] : memref<7x7x1x16xf32, #tpu.memory_space<vmem>>, vector<1x1x1x16xf32>
    %409 = vector.shape_cast %408 : vector<1x1x1x16xf32> to vector<1x16xf32>
    %410 = vector.shape_cast %409 : vector<1x16xf32> to vector<1x1x1x16xf32>
    %411 = vector.broadcast %410 : vector<1x1x1x16xf32> to vector<1x16x16x16xf32>
    %412 = arith.mulf %407, %411 : vector<1x16x16x16xf32>
    %413 = arith.addf %406, %412 : vector<1x16x16x16xf32>
    %c0_465 = arith.constant 0 : index
    %c4_466 = arith.constant 4 : index
    %c1_467 = arith.constant 1 : index
    %c0_468 = arith.constant 0 : index
    %414 = vector.load %arg2[%c0_465, %c4_466, %c1_467, %c0_468] : memref<1x22x22x16xf32, #tpu.memory_space<vmem>>, vector<1x16x16x16xf32>
    %c4_469 = arith.constant 4 : index
    %c1_470 = arith.constant 1 : index
    %c0_471 = arith.constant 0 : index
    %c0_472 = arith.constant 0 : index
    %415 = vector.load %arg6[%c4_469, %c1_470, %c0_471, %c0_472] : memref<7x7x1x16xf32, #tpu.memory_space<vmem>>, vector<1x1x1x16xf32>
    %416 = vector.shape_cast %415 : vector<1x1x1x16xf32> to vector<1x16xf32>
    %417 = vector.shape_cast %416 : vector<1x16xf32> to vector<1x1x1x16xf32>
    %418 = vector.broadcast %417 : vector<1x1x1x16xf32> to vector<1x16x16x16xf32>
    %419 = arith.mulf %414, %418 : vector<1x16x16x16xf32>
    %420 = arith.addf %413, %419 : vector<1x16x16x16xf32>
    %c0_473 = arith.constant 0 : index
    %c4_474 = arith.constant 4 : index
    %c2_475 = arith.constant 2 : index
    %c0_476 = arith.constant 0 : index
    %421 = vector.load %arg1[%c0_473, %c4_474, %c2_475, %c0_476] : memref<1x22x22x16xf32, #tpu.memory_space<vmem>>, vector<1x16x16x16xf32>
    %c4_477 = arith.constant 4 : index
    %c2_478 = arith.constant 2 : index
    %c0_479 = arith.constant 0 : index
    %c0_480 = arith.constant 0 : index
    %422 = vector.load %arg5[%c4_477, %c2_478, %c0_479, %c0_480] : memref<7x7x1x16xf32, #tpu.memory_space<vmem>>, vector<1x1x1x16xf32>
    %423 = vector.shape_cast %422 : vector<1x1x1x16xf32> to vector<1x16xf32>
    %424 = vector.shape_cast %423 : vector<1x16xf32> to vector<1x1x1x16xf32>
    %425 = vector.broadcast %424 : vector<1x1x1x16xf32> to vector<1x16x16x16xf32>
    %426 = arith.mulf %421, %425 : vector<1x16x16x16xf32>
    %427 = arith.addf %420, %426 : vector<1x16x16x16xf32>
    %c0_481 = arith.constant 0 : index
    %c4_482 = arith.constant 4 : index
    %c2_483 = arith.constant 2 : index
    %c0_484 = arith.constant 0 : index
    %428 = vector.load %arg2[%c0_481, %c4_482, %c2_483, %c0_484] : memref<1x22x22x16xf32, #tpu.memory_space<vmem>>, vector<1x16x16x16xf32>
    %c4_485 = arith.constant 4 : index
    %c2_486 = arith.constant 2 : index
    %c0_487 = arith.constant 0 : index
    %c0_488 = arith.constant 0 : index
    %429 = vector.load %arg6[%c4_485, %c2_486, %c0_487, %c0_488] : memref<7x7x1x16xf32, #tpu.memory_space<vmem>>, vector<1x1x1x16xf32>
    %430 = vector.shape_cast %429 : vector<1x1x1x16xf32> to vector<1x16xf32>
    %431 = vector.shape_cast %430 : vector<1x16xf32> to vector<1x1x1x16xf32>
    %432 = vector.broadcast %431 : vector<1x1x1x16xf32> to vector<1x16x16x16xf32>
    %433 = arith.mulf %428, %432 : vector<1x16x16x16xf32>
    %434 = arith.addf %427, %433 : vector<1x16x16x16xf32>
    %c0_489 = arith.constant 0 : index
    %c4_490 = arith.constant 4 : index
    %c3_491 = arith.constant 3 : index
    %c0_492 = arith.constant 0 : index
    %435 = vector.load %arg1[%c0_489, %c4_490, %c3_491, %c0_492] : memref<1x22x22x16xf32, #tpu.memory_space<vmem>>, vector<1x16x16x16xf32>
    %c4_493 = arith.constant 4 : index
    %c3_494 = arith.constant 3 : index
    %c0_495 = arith.constant 0 : index
    %c0_496 = arith.constant 0 : index
    %436 = vector.load %arg5[%c4_493, %c3_494, %c0_495, %c0_496] : memref<7x7x1x16xf32, #tpu.memory_space<vmem>>, vector<1x1x1x16xf32>
    %437 = vector.shape_cast %436 : vector<1x1x1x16xf32> to vector<1x16xf32>
    %438 = vector.shape_cast %437 : vector<1x16xf32> to vector<1x1x1x16xf32>
    %439 = vector.broadcast %438 : vector<1x1x1x16xf32> to vector<1x16x16x16xf32>
    %440 = arith.mulf %435, %439 : vector<1x16x16x16xf32>
    %441 = arith.addf %434, %440 : vector<1x16x16x16xf32>
    %c0_497 = arith.constant 0 : index
    %c4_498 = arith.constant 4 : index
    %c3_499 = arith.constant 3 : index
    %c0_500 = arith.constant 0 : index
    %442 = vector.load %arg2[%c0_497, %c4_498, %c3_499, %c0_500] : memref<1x22x22x16xf32, #tpu.memory_space<vmem>>, vector<1x16x16x16xf32>
    %c4_501 = arith.constant 4 : index
    %c3_502 = arith.constant 3 : index
    %c0_503 = arith.constant 0 : index
    %c0_504 = arith.constant 0 : index
    %443 = vector.load %arg6[%c4_501, %c3_502, %c0_503, %c0_504] : memref<7x7x1x16xf32, #tpu.memory_space<vmem>>, vector<1x1x1x16xf32>
    %444 = vector.shape_cast %443 : vector<1x1x1x16xf32> to vector<1x16xf32>
    %445 = vector.shape_cast %444 : vector<1x16xf32> to vector<1x1x1x16xf32>
    %446 = vector.broadcast %445 : vector<1x1x1x16xf32> to vector<1x16x16x16xf32>
    %447 = arith.mulf %442, %446 : vector<1x16x16x16xf32>
    %448 = arith.addf %441, %447 : vector<1x16x16x16xf32>
    %c0_505 = arith.constant 0 : index
    %c4_506 = arith.constant 4 : index
    %c4_507 = arith.constant 4 : index
    %c0_508 = arith.constant 0 : index
    %449 = vector.load %arg1[%c0_505, %c4_506, %c4_507, %c0_508] : memref<1x22x22x16xf32, #tpu.memory_space<vmem>>, vector<1x16x16x16xf32>
    %c4_509 = arith.constant 4 : index
    %c4_510 = arith.constant 4 : index
    %c0_511 = arith.constant 0 : index
    %c0_512 = arith.constant 0 : index
    %450 = vector.load %arg5[%c4_509, %c4_510, %c0_511, %c0_512] : memref<7x7x1x16xf32, #tpu.memory_space<vmem>>, vector<1x1x1x16xf32>
    %451 = vector.shape_cast %450 : vector<1x1x1x16xf32> to vector<1x16xf32>
    %452 = vector.shape_cast %451 : vector<1x16xf32> to vector<1x1x1x16xf32>
    %453 = vector.broadcast %452 : vector<1x1x1x16xf32> to vector<1x16x16x16xf32>
    %454 = arith.mulf %449, %453 : vector<1x16x16x16xf32>
    %455 = arith.addf %448, %454 : vector<1x16x16x16xf32>
    %c0_513 = arith.constant 0 : index
    %c4_514 = arith.constant 4 : index
    %c4_515 = arith.constant 4 : index
    %c0_516 = arith.constant 0 : index
    %456 = vector.load %arg2[%c0_513, %c4_514, %c4_515, %c0_516] : memref<1x22x22x16xf32, #tpu.memory_space<vmem>>, vector<1x16x16x16xf32>
    %c4_517 = arith.constant 4 : index
    %c4_518 = arith.constant 4 : index
    %c0_519 = arith.constant 0 : index
    %c0_520 = arith.constant 0 : index
    %457 = vector.load %arg6[%c4_517, %c4_518, %c0_519, %c0_520] : memref<7x7x1x16xf32, #tpu.memory_space<vmem>>, vector<1x1x1x16xf32>
    %458 = vector.shape_cast %457 : vector<1x1x1x16xf32> to vector<1x16xf32>
    %459 = vector.shape_cast %458 : vector<1x16xf32> to vector<1x1x1x16xf32>
    %460 = vector.broadcast %459 : vector<1x1x1x16xf32> to vector<1x16x16x16xf32>
    %461 = arith.mulf %456, %460 : vector<1x16x16x16xf32>
    %462 = arith.addf %455, %461 : vector<1x16x16x16xf32>
    %c0_521 = arith.constant 0 : index
    %c4_522 = arith.constant 4 : index
    %c5_523 = arith.constant 5 : index
    %c0_524 = arith.constant 0 : index
    %463 = vector.load %arg1[%c0_521, %c4_522, %c5_523, %c0_524] : memref<1x22x22x16xf32, #tpu.memory_space<vmem>>, vector<1x16x16x16xf32>
    %c4_525 = arith.constant 4 : index
    %c5_526 = arith.constant 5 : index
    %c0_527 = arith.constant 0 : index
    %c0_528 = arith.constant 0 : index
    %464 = vector.load %arg5[%c4_525, %c5_526, %c0_527, %c0_528] : memref<7x7x1x16xf32, #tpu.memory_space<vmem>>, vector<1x1x1x16xf32>
    %465 = vector.shape_cast %464 : vector<1x1x1x16xf32> to vector<1x16xf32>
    %466 = vector.shape_cast %465 : vector<1x16xf32> to vector<1x1x1x16xf32>
    %467 = vector.broadcast %466 : vector<1x1x1x16xf32> to vector<1x16x16x16xf32>
    %468 = arith.mulf %463, %467 : vector<1x16x16x16xf32>
    %469 = arith.addf %462, %468 : vector<1x16x16x16xf32>
    %c0_529 = arith.constant 0 : index
    %c4_530 = arith.constant 4 : index
    %c5_531 = arith.constant 5 : index
    %c0_532 = arith.constant 0 : index
    %470 = vector.load %arg2[%c0_529, %c4_530, %c5_531, %c0_532] : memref<1x22x22x16xf32, #tpu.memory_space<vmem>>, vector<1x16x16x16xf32>
    %c4_533 = arith.constant 4 : index
    %c5_534 = arith.constant 5 : index
    %c0_535 = arith.constant 0 : index
    %c0_536 = arith.constant 0 : index
    %471 = vector.load %arg6[%c4_533, %c5_534, %c0_535, %c0_536] : memref<7x7x1x16xf32, #tpu.memory_space<vmem>>, vector<1x1x1x16xf32>
    %472 = vector.shape_cast %471 : vector<1x1x1x16xf32> to vector<1x16xf32>
    %473 = vector.shape_cast %472 : vector<1x16xf32> to vector<1x1x1x16xf32>
    %474 = vector.broadcast %473 : vector<1x1x1x16xf32> to vector<1x16x16x16xf32>
    %475 = arith.mulf %470, %474 : vector<1x16x16x16xf32>
    %476 = arith.addf %469, %475 : vector<1x16x16x16xf32>
    %c0_537 = arith.constant 0 : index
    %c4_538 = arith.constant 4 : index
    %c6_539 = arith.constant 6 : index
    %c0_540 = arith.constant 0 : index
    %477 = vector.load %arg1[%c0_537, %c4_538, %c6_539, %c0_540] : memref<1x22x22x16xf32, #tpu.memory_space<vmem>>, vector<1x16x16x16xf32>
    %c4_541 = arith.constant 4 : index
    %c6_542 = arith.constant 6 : index
    %c0_543 = arith.constant 0 : index
    %c0_544 = arith.constant 0 : index
    %478 = vector.load %arg5[%c4_541, %c6_542, %c0_543, %c0_544] : memref<7x7x1x16xf32, #tpu.memory_space<vmem>>, vector<1x1x1x16xf32>
    %479 = vector.shape_cast %478 : vector<1x1x1x16xf32> to vector<1x16xf32>
    %480 = vector.shape_cast %479 : vector<1x16xf32> to vector<1x1x1x16xf32>
    %481 = vector.broadcast %480 : vector<1x1x1x16xf32> to vector<1x16x16x16xf32>
    %482 = arith.mulf %477, %481 : vector<1x16x16x16xf32>
    %483 = arith.addf %476, %482 : vector<1x16x16x16xf32>
    %c0_545 = arith.constant 0 : index
    %c4_546 = arith.constant 4 : index
    %c6_547 = arith.constant 6 : index
    %c0_548 = arith.constant 0 : index
    %484 = vector.load %arg2[%c0_545, %c4_546, %c6_547, %c0_548] : memref<1x22x22x16xf32, #tpu.memory_space<vmem>>, vector<1x16x16x16xf32>
    %c4_549 = arith.constant 4 : index
    %c6_550 = arith.constant 6 : index
    %c0_551 = arith.constant 0 : index
    %c0_552 = arith.constant 0 : index
    %485 = vector.load %arg6[%c4_549, %c6_550, %c0_551, %c0_552] : memref<7x7x1x16xf32, #tpu.memory_space<vmem>>, vector<1x1x1x16xf32>
    %486 = vector.shape_cast %485 : vector<1x1x1x16xf32> to vector<1x16xf32>
    %487 = vector.shape_cast %486 : vector<1x16xf32> to vector<1x1x1x16xf32>
    %488 = vector.broadcast %487 : vector<1x1x1x16xf32> to vector<1x16x16x16xf32>
    %489 = arith.mulf %484, %488 : vector<1x16x16x16xf32>
    %490 = arith.addf %483, %489 : vector<1x16x16x16xf32>
    %c0_553 = arith.constant 0 : index
    %c5_554 = arith.constant 5 : index
    %c0_555 = arith.constant 0 : index
    %c0_556 = arith.constant 0 : index
    %491 = vector.load %arg1[%c0_553, %c5_554, %c0_555, %c0_556] : memref<1x22x22x16xf32, #tpu.memory_space<vmem>>, vector<1x16x16x16xf32>
    %c5_557 = arith.constant 5 : index
    %c0_558 = arith.constant 0 : index
    %c0_559 = arith.constant 0 : index
    %c0_560 = arith.constant 0 : index
    %492 = vector.load %arg5[%c5_557, %c0_558, %c0_559, %c0_560] : memref<7x7x1x16xf32, #tpu.memory_space<vmem>>, vector<1x1x1x16xf32>
    %493 = vector.shape_cast %492 : vector<1x1x1x16xf32> to vector<1x16xf32>
    %494 = vector.shape_cast %493 : vector<1x16xf32> to vector<1x1x1x16xf32>
    %495 = vector.broadcast %494 : vector<1x1x1x16xf32> to vector<1x16x16x16xf32>
    %496 = arith.mulf %491, %495 : vector<1x16x16x16xf32>
    %497 = arith.addf %490, %496 : vector<1x16x16x16xf32>
    %c0_561 = arith.constant 0 : index
    %c5_562 = arith.constant 5 : index
    %c0_563 = arith.constant 0 : index
    %c0_564 = arith.constant 0 : index
    %498 = vector.load %arg2[%c0_561, %c5_562, %c0_563, %c0_564] : memref<1x22x22x16xf32, #tpu.memory_space<vmem>>, vector<1x16x16x16xf32>
    %c5_565 = arith.constant 5 : index
    %c0_566 = arith.constant 0 : index
    %c0_567 = arith.constant 0 : index
    %c0_568 = arith.constant 0 : index
    %499 = vector.load %arg6[%c5_565, %c0_566, %c0_567, %c0_568] : memref<7x7x1x16xf32, #tpu.memory_space<vmem>>, vector<1x1x1x16xf32>
    %500 = vector.shape_cast %499 : vector<1x1x1x16xf32> to vector<1x16xf32>
    %501 = vector.shape_cast %500 : vector<1x16xf32> to vector<1x1x1x16xf32>
    %502 = vector.broadcast %501 : vector<1x1x1x16xf32> to vector<1x16x16x16xf32>
    %503 = arith.mulf %498, %502 : vector<1x16x16x16xf32>
    %504 = arith.addf %497, %503 : vector<1x16x16x16xf32>
    %c0_569 = arith.constant 0 : index
    %c5_570 = arith.constant 5 : index
    %c1_571 = arith.constant 1 : index
    %c0_572 = arith.constant 0 : index
    %505 = vector.load %arg1[%c0_569, %c5_570, %c1_571, %c0_572] : memref<1x22x22x16xf32, #tpu.memory_space<vmem>>, vector<1x16x16x16xf32>
    %c5_573 = arith.constant 5 : index
    %c1_574 = arith.constant 1 : index
    %c0_575 = arith.constant 0 : index
    %c0_576 = arith.constant 0 : index
    %506 = vector.load %arg5[%c5_573, %c1_574, %c0_575, %c0_576] : memref<7x7x1x16xf32, #tpu.memory_space<vmem>>, vector<1x1x1x16xf32>
    %507 = vector.shape_cast %506 : vector<1x1x1x16xf32> to vector<1x16xf32>
    %508 = vector.shape_cast %507 : vector<1x16xf32> to vector<1x1x1x16xf32>
    %509 = vector.broadcast %508 : vector<1x1x1x16xf32> to vector<1x16x16x16xf32>
    %510 = arith.mulf %505, %509 : vector<1x16x16x16xf32>
    %511 = arith.addf %504, %510 : vector<1x16x16x16xf32>
    %c0_577 = arith.constant 0 : index
    %c5_578 = arith.constant 5 : index
    %c1_579 = arith.constant 1 : index
    %c0_580 = arith.constant 0 : index
    %512 = vector.load %arg2[%c0_577, %c5_578, %c1_579, %c0_580] : memref<1x22x22x16xf32, #tpu.memory_space<vmem>>, vector<1x16x16x16xf32>
    %c5_581 = arith.constant 5 : index
    %c1_582 = arith.constant 1 : index
    %c0_583 = arith.constant 0 : index
    %c0_584 = arith.constant 0 : index
    %513 = vector.load %arg6[%c5_581, %c1_582, %c0_583, %c0_584] : memref<7x7x1x16xf32, #tpu.memory_space<vmem>>, vector<1x1x1x16xf32>
    %514 = vector.shape_cast %513 : vector<1x1x1x16xf32> to vector<1x16xf32>
    %515 = vector.shape_cast %514 : vector<1x16xf32> to vector<1x1x1x16xf32>
    %516 = vector.broadcast %515 : vector<1x1x1x16xf32> to vector<1x16x16x16xf32>
    %517 = arith.mulf %512, %516 : vector<1x16x16x16xf32>
    %518 = arith.addf %511, %517 : vector<1x16x16x16xf32>
    %c0_585 = arith.constant 0 : index
    %c5_586 = arith.constant 5 : index
    %c2_587 = arith.constant 2 : index
    %c0_588 = arith.constant 0 : index
    %519 = vector.load %arg1[%c0_585, %c5_586, %c2_587, %c0_588] : memref<1x22x22x16xf32, #tpu.memory_space<vmem>>, vector<1x16x16x16xf32>
    %c5_589 = arith.constant 5 : index
    %c2_590 = arith.constant 2 : index
    %c0_591 = arith.constant 0 : index
    %c0_592 = arith.constant 0 : index
    %520 = vector.load %arg5[%c5_589, %c2_590, %c0_591, %c0_592] : memref<7x7x1x16xf32, #tpu.memory_space<vmem>>, vector<1x1x1x16xf32>
    %521 = vector.shape_cast %520 : vector<1x1x1x16xf32> to vector<1x16xf32>
    %522 = vector.shape_cast %521 : vector<1x16xf32> to vector<1x1x1x16xf32>
    %523 = vector.broadcast %522 : vector<1x1x1x16xf32> to vector<1x16x16x16xf32>
    %524 = arith.mulf %519, %523 : vector<1x16x16x16xf32>
    %525 = arith.addf %518, %524 : vector<1x16x16x16xf32>
    %c0_593 = arith.constant 0 : index
    %c5_594 = arith.constant 5 : index
    %c2_595 = arith.constant 2 : index
    %c0_596 = arith.constant 0 : index
    %526 = vector.load %arg2[%c0_593, %c5_594, %c2_595, %c0_596] : memref<1x22x22x16xf32, #tpu.memory_space<vmem>>, vector<1x16x16x16xf32>
    %c5_597 = arith.constant 5 : index
    %c2_598 = arith.constant 2 : index
    %c0_599 = arith.constant 0 : index
    %c0_600 = arith.constant 0 : index
    %527 = vector.load %arg6[%c5_597, %c2_598, %c0_599, %c0_600] : memref<7x7x1x16xf32, #tpu.memory_space<vmem>>, vector<1x1x1x16xf32>
    %528 = vector.shape_cast %527 : vector<1x1x1x16xf32> to vector<1x16xf32>
    %529 = vector.shape_cast %528 : vector<1x16xf32> to vector<1x1x1x16xf32>
    %530 = vector.broadcast %529 : vector<1x1x1x16xf32> to vector<1x16x16x16xf32>
    %531 = arith.mulf %526, %530 : vector<1x16x16x16xf32>
    %532 = arith.addf %525, %531 : vector<1x16x16x16xf32>
    %c0_601 = arith.constant 0 : index
    %c5_602 = arith.constant 5 : index
    %c3_603 = arith.constant 3 : index
    %c0_604 = arith.constant 0 : index
    %533 = vector.load %arg1[%c0_601, %c5_602, %c3_603, %c0_604] : memref<1x22x22x16xf32, #tpu.memory_space<vmem>>, vector<1x16x16x16xf32>
    %c5_605 = arith.constant 5 : index
    %c3_606 = arith.constant 3 : index
    %c0_607 = arith.constant 0 : index
    %c0_608 = arith.constant 0 : index
    %534 = vector.load %arg5[%c5_605, %c3_606, %c0_607, %c0_608] : memref<7x7x1x16xf32, #tpu.memory_space<vmem>>, vector<1x1x1x16xf32>
    %535 = vector.shape_cast %534 : vector<1x1x1x16xf32> to vector<1x16xf32>
    %536 = vector.shape_cast %535 : vector<1x16xf32> to vector<1x1x1x16xf32>
    %537 = vector.broadcast %536 : vector<1x1x1x16xf32> to vector<1x16x16x16xf32>
    %538 = arith.mulf %533, %537 : vector<1x16x16x16xf32>
    %539 = arith.addf %532, %538 : vector<1x16x16x16xf32>
    %c0_609 = arith.constant 0 : index
    %c5_610 = arith.constant 5 : index
    %c3_611 = arith.constant 3 : index
    %c0_612 = arith.constant 0 : index
    %540 = vector.load %arg2[%c0_609, %c5_610, %c3_611, %c0_612] : memref<1x22x22x16xf32, #tpu.memory_space<vmem>>, vector<1x16x16x16xf32>
    %c5_613 = arith.constant 5 : index
    %c3_614 = arith.constant 3 : index
    %c0_615 = arith.constant 0 : index
    %c0_616 = arith.constant 0 : index
    %541 = vector.load %arg6[%c5_613, %c3_614, %c0_615, %c0_616] : memref<7x7x1x16xf32, #tpu.memory_space<vmem>>, vector<1x1x1x16xf32>
    %542 = vector.shape_cast %541 : vector<1x1x1x16xf32> to vector<1x16xf32>
    %543 = vector.shape_cast %542 : vector<1x16xf32> to vector<1x1x1x16xf32>
    %544 = vector.broadcast %543 : vector<1x1x1x16xf32> to vector<1x16x16x16xf32>
    %545 = arith.mulf %540, %544 : vector<1x16x16x16xf32>
    %546 = arith.addf %539, %545 : vector<1x16x16x16xf32>
    %c0_617 = arith.constant 0 : index
    %c5_618 = arith.constant 5 : index
    %c4_619 = arith.constant 4 : index
    %c0_620 = arith.constant 0 : index
    %547 = vector.load %arg1[%c0_617, %c5_618, %c4_619, %c0_620] : memref<1x22x22x16xf32, #tpu.memory_space<vmem>>, vector<1x16x16x16xf32>
    %c5_621 = arith.constant 5 : index
    %c4_622 = arith.constant 4 : index
    %c0_623 = arith.constant 0 : index
    %c0_624 = arith.constant 0 : index
    %548 = vector.load %arg5[%c5_621, %c4_622, %c0_623, %c0_624] : memref<7x7x1x16xf32, #tpu.memory_space<vmem>>, vector<1x1x1x16xf32>
    %549 = vector.shape_cast %548 : vector<1x1x1x16xf32> to vector<1x16xf32>
    %550 = vector.shape_cast %549 : vector<1x16xf32> to vector<1x1x1x16xf32>
    %551 = vector.broadcast %550 : vector<1x1x1x16xf32> to vector<1x16x16x16xf32>
    %552 = arith.mulf %547, %551 : vector<1x16x16x16xf32>
    %553 = arith.addf %546, %552 : vector<1x16x16x16xf32>
    %c0_625 = arith.constant 0 : index
    %c5_626 = arith.constant 5 : index
    %c4_627 = arith.constant 4 : index
    %c0_628 = arith.constant 0 : index
    %554 = vector.load %arg2[%c0_625, %c5_626, %c4_627, %c0_628] : memref<1x22x22x16xf32, #tpu.memory_space<vmem>>, vector<1x16x16x16xf32>
    %c5_629 = arith.constant 5 : index
    %c4_630 = arith.constant 4 : index
    %c0_631 = arith.constant 0 : index
    %c0_632 = arith.constant 0 : index
    %555 = vector.load %arg6[%c5_629, %c4_630, %c0_631, %c0_632] : memref<7x7x1x16xf32, #tpu.memory_space<vmem>>, vector<1x1x1x16xf32>
    %556 = vector.shape_cast %555 : vector<1x1x1x16xf32> to vector<1x16xf32>
    %557 = vector.shape_cast %556 : vector<1x16xf32> to vector<1x1x1x16xf32>
    %558 = vector.broadcast %557 : vector<1x1x1x16xf32> to vector<1x16x16x16xf32>
    %559 = arith.mulf %554, %558 : vector<1x16x16x16xf32>
    %560 = arith.addf %553, %559 : vector<1x16x16x16xf32>
    %c0_633 = arith.constant 0 : index
    %c5_634 = arith.constant 5 : index
    %c5_635 = arith.constant 5 : index
    %c0_636 = arith.constant 0 : index
    %561 = vector.load %arg1[%c0_633, %c5_634, %c5_635, %c0_636] : memref<1x22x22x16xf32, #tpu.memory_space<vmem>>, vector<1x16x16x16xf32>
    %c5_637 = arith.constant 5 : index
    %c5_638 = arith.constant 5 : index
    %c0_639 = arith.constant 0 : index
    %c0_640 = arith.constant 0 : index
    %562 = vector.load %arg5[%c5_637, %c5_638, %c0_639, %c0_640] : memref<7x7x1x16xf32, #tpu.memory_space<vmem>>, vector<1x1x1x16xf32>
    %563 = vector.shape_cast %562 : vector<1x1x1x16xf32> to vector<1x16xf32>
    %564 = vector.shape_cast %563 : vector<1x16xf32> to vector<1x1x1x16xf32>
    %565 = vector.broadcast %564 : vector<1x1x1x16xf32> to vector<1x16x16x16xf32>
    %566 = arith.mulf %561, %565 : vector<1x16x16x16xf32>
    %567 = arith.addf %560, %566 : vector<1x16x16x16xf32>
    %c0_641 = arith.constant 0 : index
    %c5_642 = arith.constant 5 : index
    %c5_643 = arith.constant 5 : index
    %c0_644 = arith.constant 0 : index
    %568 = vector.load %arg2[%c0_641, %c5_642, %c5_643, %c0_644] : memref<1x22x22x16xf32, #tpu.memory_space<vmem>>, vector<1x16x16x16xf32>
    %c5_645 = arith.constant 5 : index
    %c5_646 = arith.constant 5 : index
    %c0_647 = arith.constant 0 : index
    %c0_648 = arith.constant 0 : index
    %569 = vector.load %arg6[%c5_645, %c5_646, %c0_647, %c0_648] : memref<7x7x1x16xf32, #tpu.memory_space<vmem>>, vector<1x1x1x16xf32>
    %570 = vector.shape_cast %569 : vector<1x1x1x16xf32> to vector<1x16xf32>
    %571 = vector.shape_cast %570 : vector<1x16xf32> to vector<1x1x1x16xf32>
    %572 = vector.broadcast %571 : vector<1x1x1x16xf32> to vector<1x16x16x16xf32>
    %573 = arith.mulf %568, %572 : vector<1x16x16x16xf32>
    %574 = arith.addf %567, %573 : vector<1x16x16x16xf32>
    %c0_649 = arith.constant 0 : index
    %c5_650 = arith.constant 5 : index
    %c6_651 = arith.constant 6 : index
    %c0_652 = arith.constant 0 : index
    %575 = vector.load %arg1[%c0_649, %c5_650, %c6_651, %c0_652] : memref<1x22x22x16xf32, #tpu.memory_space<vmem>>, vector<1x16x16x16xf32>
    %c5_653 = arith.constant 5 : index
    %c6_654 = arith.constant 6 : index
    %c0_655 = arith.constant 0 : index
    %c0_656 = arith.constant 0 : index
    %576 = vector.load %arg5[%c5_653, %c6_654, %c0_655, %c0_656] : memref<7x7x1x16xf32, #tpu.memory_space<vmem>>, vector<1x1x1x16xf32>
    %577 = vector.shape_cast %576 : vector<1x1x1x16xf32> to vector<1x16xf32>
    %578 = vector.shape_cast %577 : vector<1x16xf32> to vector<1x1x1x16xf32>
    %579 = vector.broadcast %578 : vector<1x1x1x16xf32> to vector<1x16x16x16xf32>
    %580 = arith.mulf %575, %579 : vector<1x16x16x16xf32>
    %581 = arith.addf %574, %580 : vector<1x16x16x16xf32>
    %c0_657 = arith.constant 0 : index
    %c5_658 = arith.constant 5 : index
    %c6_659 = arith.constant 6 : index
    %c0_660 = arith.constant 0 : index
    %582 = vector.load %arg2[%c0_657, %c5_658, %c6_659, %c0_660] : memref<1x22x22x16xf32, #tpu.memory_space<vmem>>, vector<1x16x16x16xf32>
    %c5_661 = arith.constant 5 : index
    %c6_662 = arith.constant 6 : index
    %c0_663 = arith.constant 0 : index
    %c0_664 = arith.constant 0 : index
    %583 = vector.load %arg6[%c5_661, %c6_662, %c0_663, %c0_664] : memref<7x7x1x16xf32, #tpu.memory_space<vmem>>, vector<1x1x1x16xf32>
    %584 = vector.shape_cast %583 : vector<1x1x1x16xf32> to vector<1x16xf32>
    %585 = vector.shape_cast %584 : vector<1x16xf32> to vector<1x1x1x16xf32>
    %586 = vector.broadcast %585 : vector<1x1x1x16xf32> to vector<1x16x16x16xf32>
    %587 = arith.mulf %582, %586 : vector<1x16x16x16xf32>
    %588 = arith.addf %581, %587 : vector<1x16x16x16xf32>
    %c0_665 = arith.constant 0 : index
    %c6_666 = arith.constant 6 : index
    %c0_667 = arith.constant 0 : index
    %c0_668 = arith.constant 0 : index
    %589 = vector.load %arg1[%c0_665, %c6_666, %c0_667, %c0_668] : memref<1x22x22x16xf32, #tpu.memory_space<vmem>>, vector<1x16x16x16xf32>
    %c6_669 = arith.constant 6 : index
    %c0_670 = arith.constant 0 : index
    %c0_671 = arith.constant 0 : index
    %c0_672 = arith.constant 0 : index
    %590 = vector.load %arg5[%c6_669, %c0_670, %c0_671, %c0_672] : memref<7x7x1x16xf32, #tpu.memory_space<vmem>>, vector<1x1x1x16xf32>
    %591 = vector.shape_cast %590 : vector<1x1x1x16xf32> to vector<1x16xf32>
    %592 = vector.shape_cast %591 : vector<1x16xf32> to vector<1x1x1x16xf32>
    %593 = vector.broadcast %592 : vector<1x1x1x16xf32> to vector<1x16x16x16xf32>
    %594 = arith.mulf %589, %593 : vector<1x16x16x16xf32>
    %595 = arith.addf %588, %594 : vector<1x16x16x16xf32>
    %c0_673 = arith.constant 0 : index
    %c6_674 = arith.constant 6 : index
    %c0_675 = arith.constant 0 : index
    %c0_676 = arith.constant 0 : index
    %596 = vector.load %arg2[%c0_673, %c6_674, %c0_675, %c0_676] : memref<1x22x22x16xf32, #tpu.memory_space<vmem>>, vector<1x16x16x16xf32>
    %c6_677 = arith.constant 6 : index
    %c0_678 = arith.constant 0 : index
    %c0_679 = arith.constant 0 : index
    %c0_680 = arith.constant 0 : index
    %597 = vector.load %arg6[%c6_677, %c0_678, %c0_679, %c0_680] : memref<7x7x1x16xf32, #tpu.memory_space<vmem>>, vector<1x1x1x16xf32>
    %598 = vector.shape_cast %597 : vector<1x1x1x16xf32> to vector<1x16xf32>
    %599 = vector.shape_cast %598 : vector<1x16xf32> to vector<1x1x1x16xf32>
    %600 = vector.broadcast %599 : vector<1x1x1x16xf32> to vector<1x16x16x16xf32>
    %601 = arith.mulf %596, %600 : vector<1x16x16x16xf32>
    %602 = arith.addf %595, %601 : vector<1x16x16x16xf32>
    %c0_681 = arith.constant 0 : index
    %c6_682 = arith.constant 6 : index
    %c1_683 = arith.constant 1 : index
    %c0_684 = arith.constant 0 : index
    %603 = vector.load %arg1[%c0_681, %c6_682, %c1_683, %c0_684] : memref<1x22x22x16xf32, #tpu.memory_space<vmem>>, vector<1x16x16x16xf32>
    %c6_685 = arith.constant 6 : index
    %c1_686 = arith.constant 1 : index
    %c0_687 = arith.constant 0 : index
    %c0_688 = arith.constant 0 : index
    %604 = vector.load %arg5[%c6_685, %c1_686, %c0_687, %c0_688] : memref<7x7x1x16xf32, #tpu.memory_space<vmem>>, vector<1x1x1x16xf32>
    %605 = vector.shape_cast %604 : vector<1x1x1x16xf32> to vector<1x16xf32>
    %606 = vector.shape_cast %605 : vector<1x16xf32> to vector<1x1x1x16xf32>
    %607 = vector.broadcast %606 : vector<1x1x1x16xf32> to vector<1x16x16x16xf32>
    %608 = arith.mulf %603, %607 : vector<1x16x16x16xf32>
    %609 = arith.addf %602, %608 : vector<1x16x16x16xf32>
    %c0_689 = arith.constant 0 : index
    %c6_690 = arith.constant 6 : index
    %c1_691 = arith.constant 1 : index
    %c0_692 = arith.constant 0 : index
    %610 = vector.load %arg2[%c0_689, %c6_690, %c1_691, %c0_692] : memref<1x22x22x16xf32, #tpu.memory_space<vmem>>, vector<1x16x16x16xf32>
    %c6_693 = arith.constant 6 : index
    %c1_694 = arith.constant 1 : index
    %c0_695 = arith.constant 0 : index
    %c0_696 = arith.constant 0 : index
    %611 = vector.load %arg6[%c6_693, %c1_694, %c0_695, %c0_696] : memref<7x7x1x16xf32, #tpu.memory_space<vmem>>, vector<1x1x1x16xf32>
    %612 = vector.shape_cast %611 : vector<1x1x1x16xf32> to vector<1x16xf32>
    %613 = vector.shape_cast %612 : vector<1x16xf32> to vector<1x1x1x16xf32>
    %614 = vector.broadcast %613 : vector<1x1x1x16xf32> to vector<1x16x16x16xf32>
    %615 = arith.mulf %610, %614 : vector<1x16x16x16xf32>
    %616 = arith.addf %609, %615 : vector<1x16x16x16xf32>
    %c0_697 = arith.constant 0 : index
    %c6_698 = arith.constant 6 : index
    %c2_699 = arith.constant 2 : index
    %c0_700 = arith.constant 0 : index
    %617 = vector.load %arg1[%c0_697, %c6_698, %c2_699, %c0_700] : memref<1x22x22x16xf32, #tpu.memory_space<vmem>>, vector<1x16x16x16xf32>
    %c6_701 = arith.constant 6 : index
    %c2_702 = arith.constant 2 : index
    %c0_703 = arith.constant 0 : index
    %c0_704 = arith.constant 0 : index
    %618 = vector.load %arg5[%c6_701, %c2_702, %c0_703, %c0_704] : memref<7x7x1x16xf32, #tpu.memory_space<vmem>>, vector<1x1x1x16xf32>
    %619 = vector.shape_cast %618 : vector<1x1x1x16xf32> to vector<1x16xf32>
    %620 = vector.shape_cast %619 : vector<1x16xf32> to vector<1x1x1x16xf32>
    %621 = vector.broadcast %620 : vector<1x1x1x16xf32> to vector<1x16x16x16xf32>
    %622 = arith.mulf %617, %621 : vector<1x16x16x16xf32>
    %623 = arith.addf %616, %622 : vector<1x16x16x16xf32>
    %c0_705 = arith.constant 0 : index
    %c6_706 = arith.constant 6 : index
    %c2_707 = arith.constant 2 : index
    %c0_708 = arith.constant 0 : index
    %624 = vector.load %arg2[%c0_705, %c6_706, %c2_707, %c0_708] : memref<1x22x22x16xf32, #tpu.memory_space<vmem>>, vector<1x16x16x16xf32>
    %c6_709 = arith.constant 6 : index
    %c2_710 = arith.constant 2 : index
    %c0_711 = arith.constant 0 : index
    %c0_712 = arith.constant 0 : index
    %625 = vector.load %arg6[%c6_709, %c2_710, %c0_711, %c0_712] : memref<7x7x1x16xf32, #tpu.memory_space<vmem>>, vector<1x1x1x16xf32>
    %626 = vector.shape_cast %625 : vector<1x1x1x16xf32> to vector<1x16xf32>
    %627 = vector.shape_cast %626 : vector<1x16xf32> to vector<1x1x1x16xf32>
    %628 = vector.broadcast %627 : vector<1x1x1x16xf32> to vector<1x16x16x16xf32>
    %629 = arith.mulf %624, %628 : vector<1x16x16x16xf32>
    %630 = arith.addf %623, %629 : vector<1x16x16x16xf32>
    %c0_713 = arith.constant 0 : index
    %c6_714 = arith.constant 6 : index
    %c3_715 = arith.constant 3 : index
    %c0_716 = arith.constant 0 : index
    %631 = vector.load %arg1[%c0_713, %c6_714, %c3_715, %c0_716] : memref<1x22x22x16xf32, #tpu.memory_space<vmem>>, vector<1x16x16x16xf32>
    %c6_717 = arith.constant 6 : index
    %c3_718 = arith.constant 3 : index
    %c0_719 = arith.constant 0 : index
    %c0_720 = arith.constant 0 : index
    %632 = vector.load %arg5[%c6_717, %c3_718, %c0_719, %c0_720] : memref<7x7x1x16xf32, #tpu.memory_space<vmem>>, vector<1x1x1x16xf32>
    %633 = vector.shape_cast %632 : vector<1x1x1x16xf32> to vector<1x16xf32>
    %634 = vector.shape_cast %633 : vector<1x16xf32> to vector<1x1x1x16xf32>
    %635 = vector.broadcast %634 : vector<1x1x1x16xf32> to vector<1x16x16x16xf32>
    %636 = arith.mulf %631, %635 : vector<1x16x16x16xf32>
    %637 = arith.addf %630, %636 : vector<1x16x16x16xf32>
    %c0_721 = arith.constant 0 : index
    %c6_722 = arith.constant 6 : index
    %c3_723 = arith.constant 3 : index
    %c0_724 = arith.constant 0 : index
    %638 = vector.load %arg2[%c0_721, %c6_722, %c3_723, %c0_724] : memref<1x22x22x16xf32, #tpu.memory_space<vmem>>, vector<1x16x16x16xf32>
    %c6_725 = arith.constant 6 : index
    %c3_726 = arith.constant 3 : index
    %c0_727 = arith.constant 0 : index
    %c0_728 = arith.constant 0 : index
    %639 = vector.load %arg6[%c6_725, %c3_726, %c0_727, %c0_728] : memref<7x7x1x16xf32, #tpu.memory_space<vmem>>, vector<1x1x1x16xf32>
    %640 = vector.shape_cast %639 : vector<1x1x1x16xf32> to vector<1x16xf32>
    %641 = vector.shape_cast %640 : vector<1x16xf32> to vector<1x1x1x16xf32>
    %642 = vector.broadcast %641 : vector<1x1x1x16xf32> to vector<1x16x16x16xf32>
    %643 = arith.mulf %638, %642 : vector<1x16x16x16xf32>
    %644 = arith.addf %637, %643 : vector<1x16x16x16xf32>
    %c0_729 = arith.constant 0 : index
    %c6_730 = arith.constant 6 : index
    %c4_731 = arith.constant 4 : index
    %c0_732 = arith.constant 0 : index
    %645 = vector.load %arg1[%c0_729, %c6_730, %c4_731, %c0_732] : memref<1x22x22x16xf32, #tpu.memory_space<vmem>>, vector<1x16x16x16xf32>
    %c6_733 = arith.constant 6 : index
    %c4_734 = arith.constant 4 : index
    %c0_735 = arith.constant 0 : index
    %c0_736 = arith.constant 0 : index
    %646 = vector.load %arg5[%c6_733, %c4_734, %c0_735, %c0_736] : memref<7x7x1x16xf32, #tpu.memory_space<vmem>>, vector<1x1x1x16xf32>
    %647 = vector.shape_cast %646 : vector<1x1x1x16xf32> to vector<1x16xf32>
    %648 = vector.shape_cast %647 : vector<1x16xf32> to vector<1x1x1x16xf32>
    %649 = vector.broadcast %648 : vector<1x1x1x16xf32> to vector<1x16x16x16xf32>
    %650 = arith.mulf %645, %649 : vector<1x16x16x16xf32>
    %651 = arith.addf %644, %650 : vector<1x16x16x16xf32>
    %c0_737 = arith.constant 0 : index
    %c6_738 = arith.constant 6 : index
    %c4_739 = arith.constant 4 : index
    %c0_740 = arith.constant 0 : index
    %652 = vector.load %arg2[%c0_737, %c6_738, %c4_739, %c0_740] : memref<1x22x22x16xf32, #tpu.memory_space<vmem>>, vector<1x16x16x16xf32>
    %c6_741 = arith.constant 6 : index
    %c4_742 = arith.constant 4 : index
    %c0_743 = arith.constant 0 : index
    %c0_744 = arith.constant 0 : index
    %653 = vector.load %arg6[%c6_741, %c4_742, %c0_743, %c0_744] : memref<7x7x1x16xf32, #tpu.memory_space<vmem>>, vector<1x1x1x16xf32>
    %654 = vector.shape_cast %653 : vector<1x1x1x16xf32> to vector<1x16xf32>
    %655 = vector.shape_cast %654 : vector<1x16xf32> to vector<1x1x1x16xf32>
    %656 = vector.broadcast %655 : vector<1x1x1x16xf32> to vector<1x16x16x16xf32>
    %657 = arith.mulf %652, %656 : vector<1x16x16x16xf32>
    %658 = arith.addf %651, %657 : vector<1x16x16x16xf32>
    %c0_745 = arith.constant 0 : index
    %c6_746 = arith.constant 6 : index
    %c5_747 = arith.constant 5 : index
    %c0_748 = arith.constant 0 : index
    %659 = vector.load %arg1[%c0_745, %c6_746, %c5_747, %c0_748] : memref<1x22x22x16xf32, #tpu.memory_space<vmem>>, vector<1x16x16x16xf32>
    %c6_749 = arith.constant 6 : index
    %c5_750 = arith.constant 5 : index
    %c0_751 = arith.constant 0 : index
    %c0_752 = arith.constant 0 : index
    %660 = vector.load %arg5[%c6_749, %c5_750, %c0_751, %c0_752] : memref<7x7x1x16xf32, #tpu.memory_space<vmem>>, vector<1x1x1x16xf32>
    %661 = vector.shape_cast %660 : vector<1x1x1x16xf32> to vector<1x16xf32>
    %662 = vector.shape_cast %661 : vector<1x16xf32> to vector<1x1x1x16xf32>
    %663 = vector.broadcast %662 : vector<1x1x1x16xf32> to vector<1x16x16x16xf32>
    %664 = arith.mulf %659, %663 : vector<1x16x16x16xf32>
    %665 = arith.addf %658, %664 : vector<1x16x16x16xf32>
    %c0_753 = arith.constant 0 : index
    %c6_754 = arith.constant 6 : index
    %c5_755 = arith.constant 5 : index
    %c0_756 = arith.constant 0 : index
    %666 = vector.load %arg2[%c0_753, %c6_754, %c5_755, %c0_756] : memref<1x22x22x16xf32, #tpu.memory_space<vmem>>, vector<1x16x16x16xf32>
    %c6_757 = arith.constant 6 : index
    %c5_758 = arith.constant 5 : index
    %c0_759 = arith.constant 0 : index
    %c0_760 = arith.constant 0 : index
    %667 = vector.load %arg6[%c6_757, %c5_758, %c0_759, %c0_760] : memref<7x7x1x16xf32, #tpu.memory_space<vmem>>, vector<1x1x1x16xf32>
    %668 = vector.shape_cast %667 : vector<1x1x1x16xf32> to vector<1x16xf32>
    %669 = vector.shape_cast %668 : vector<1x16xf32> to vector<1x1x1x16xf32>
    %670 = vector.broadcast %669 : vector<1x1x1x16xf32> to vector<1x16x16x16xf32>
    %671 = arith.mulf %666, %670 : vector<1x16x16x16xf32>
    %672 = arith.addf %665, %671 : vector<1x16x16x16xf32>
    %c0_761 = arith.constant 0 : index
    %c6_762 = arith.constant 6 : index
    %c6_763 = arith.constant 6 : index
    %c0_764 = arith.constant 0 : index
    %673 = vector.load %arg1[%c0_761, %c6_762, %c6_763, %c0_764] : memref<1x22x22x16xf32, #tpu.memory_space<vmem>>, vector<1x16x16x16xf32>
    %c6_765 = arith.constant 6 : index
    %c6_766 = arith.constant 6 : index
    %c0_767 = arith.constant 0 : index
    %c0_768 = arith.constant 0 : index
    %674 = vector.load %arg5[%c6_765, %c6_766, %c0_767, %c0_768] : memref<7x7x1x16xf32, #tpu.memory_space<vmem>>, vector<1x1x1x16xf32>
    %675 = vector.shape_cast %674 : vector<1x1x1x16xf32> to vector<1x16xf32>
    %676 = vector.shape_cast %675 : vector<1x16xf32> to vector<1x1x1x16xf32>
    %677 = vector.broadcast %676 : vector<1x1x1x16xf32> to vector<1x16x16x16xf32>
    %678 = arith.mulf %673, %677 : vector<1x16x16x16xf32>
    %679 = arith.addf %672, %678 : vector<1x16x16x16xf32>
    %c0_769 = arith.constant 0 : index
    %c6_770 = arith.constant 6 : index
    %c6_771 = arith.constant 6 : index
    %c0_772 = arith.constant 0 : index
    %680 = vector.load %arg2[%c0_769, %c6_770, %c6_771, %c0_772] : memref<1x22x22x16xf32, #tpu.memory_space<vmem>>, vector<1x16x16x16xf32>
    %c6_773 = arith.constant 6 : index
    %c6_774 = arith.constant 6 : index
    %c0_775 = arith.constant 0 : index
    %c0_776 = arith.constant 0 : index
    %681 = vector.load %arg6[%c6_773, %c6_774, %c0_775, %c0_776] : memref<7x7x1x16xf32, #tpu.memory_space<vmem>>, vector<1x1x1x16xf32>
    %682 = vector.shape_cast %681 : vector<1x1x1x16xf32> to vector<1x16xf32>
    %683 = vector.shape_cast %682 : vector<1x16xf32> to vector<1x1x1x16xf32>
    %684 = vector.broadcast %683 : vector<1x1x1x16xf32> to vector<1x16x16x16xf32>
    %685 = arith.mulf %680, %684 : vector<1x16x16x16xf32>
    %686 = arith.addf %679, %685 : vector<1x16x16x16xf32>
    %c0_777 = arith.constant 0 : index
    %c0_778 = arith.constant 0 : index
    %c0_779 = arith.constant 0 : index
    %c0_780 = arith.constant 0 : index
    %687 = vector.load %arg7[%c0_777, %c0_778, %c0_779, %c0_780] : memref<1x1x1x16xf32, #tpu.memory_space<vmem>>, vector<1x1x1x16xf32>
    %688 = vector.broadcast %687 : vector<1x1x1x16xf32> to vector<1x16x16x16xf32>
    %689 = arith.addf %686, %688 : vector<1x16x16x16xf32>
    %690 = arith.negf %689 : vector<1x16x16x16xf32>
    %691 = math.exp %690 : vector<1x16x16x16xf32>
    %cst_781 = arith.constant 1.000000e+00 : f32
    %692 = vector.broadcast %cst_781 : f32 to vector<1x16x16x16xf32>
    %693 = arith.addf %692, %691 : vector<1x16x16x16xf32>
    %694 = arith.divf %692, %693 : vector<1x16x16x16xf32>
    %695 = arith.negf %694 : vector<1x16x16x16xf32>
    %696 = math.exp %695 : vector<1x16x16x16xf32>
    %cst_782 = arith.constant 1.000000e+00 : f32
    %697 = vector.broadcast %cst_782 : f32 to vector<1x16x16x16xf32>
    %698 = arith.addf %697, %696 : vector<1x16x16x16xf32>
    %699 = arith.divf %697, %698 : vector<1x16x16x16xf32>
    %c0_783 = arith.constant 0 : index
    %c3_784 = arith.constant 3 : index
    %c3_785 = arith.constant 3 : index
    %c0_786 = arith.constant 0 : index
    %700 = vector.load %arg1[%c0_783, %c3_784, %c3_785, %c0_786] : memref<1x22x22x16xf32, #tpu.memory_space<vmem>>, vector<1x16x16x16xf32>
    %c0_787 = arith.constant 0 : index
    %c0_788 = arith.constant 0 : index
    %c0_789 = arith.constant 0 : index
    %c0_790 = arith.constant 0 : index
    %701 = vector.load %arg3[%c0_787, %c0_788, %c0_789, %c0_790] : memref<1x16x16x16xf32, #tpu.memory_space<vmem>>, vector<1x16x16x16xf32>
    %702 = arith.mulf %699, %701 : vector<1x16x16x16xf32>
    %703 = arith.addf %700, %702 : vector<1x16x16x16xf32>
    %cst_791 = arith.constant 1.000000e+00 : f32
    %704 = vector.broadcast %cst_791 : f32 to vector<1x16x16x16xf32>
    %705 = arith.subf %704, %699 : vector<1x16x16x16xf32>
    %c0_792 = arith.constant 0 : index
    %c0_793 = arith.constant 0 : index
    %c0_794 = arith.constant 0 : index
    %c0_795 = arith.constant 0 : index
    %706 = vector.load %arg4[%c0_792, %c0_793, %c0_794, %c0_795] : memref<1x16x16x16xf32, #tpu.memory_space<vmem>>, vector<1x16x16x16xf32>
    %707 = arith.mulf %705, %706 : vector<1x16x16x16xf32>
    %708 = arith.addf %703, %707 : vector<1x16x16x16xf32>
    %c0_796 = arith.constant 0 : index
    %c0_797 = arith.constant 0 : index
    %c0_798 = arith.constant 0 : index
    %c0_799 = arith.constant 0 : index
    %709 = vector.load %arg8[%c0_796, %c0_797, %c0_798, %c0_799] : memref<1x16x16x16xf32, #tpu.memory_space<vmem>>, vector<1x16x16x16xf32>
    tpu.vector_store %arg8[%c0_796, %c0_797, %c0_798, %c0_799], %708 {strides = array<i32>} : memref<1x16x16x16xf32, #tpu.memory_space<vmem>>, vector<1x16x16x16xf32>,
    return
  }
  func.func @transform_0(%arg0: i32) -> (i32, i32, i32, i32) {
    %c0_i32 = arith.constant 0 : i32
    %c0_i32_0 = arith.constant 0 : i32
    %c0_i32_1 = arith.constant 0 : i32
    %c0_i32_2 = arith.constant 0 : i32
    return %arg0, %c0_i32, %c0_i32_0, %c0_i32_1 : i32, i32, i32, i32
  }
  func.func @transform_1(%arg0: i32) -> (i32, i32, i32, i32) {
    %c0_i32 = arith.constant 0 : i32
    %c0_i32_0 = arith.constant 0 : i32
    %c0_i32_1 = arith.constant 0 : i32
    %c0_i32_2 = arith.constant 0 : i32
    return %arg0, %c0_i32, %c0_i32_0, %c0_i32_1 : i32, i32, i32, i32
  }
  func.func @transform_2(%arg0: i32) -> (i32, i32, i32, i32) {
    %c0_i32 = arith.constant 0 : i32
    %c0_i32_0 = arith.constant 0 : i32
    %c0_i32_1 = arith.constant 0 : i32
    %c0_i32_2 = arith.constant 0 : i32
    return %arg0, %c0_i32, %c0_i32_0, %c0_i32_1 : i32, i32, i32, i32
  }
  func.func @transform_3(%arg0: i32) -> (i32, i32, i32, i32) {
    %c0_i32 = arith.constant 0 : i32
    %c0_i32_0 = arith.constant 0 : i32
    %c0_i32_1 = arith.constant 0 : i32
    %c0_i32_2 = arith.constant 0 : i32
    return %arg0, %c0_i32, %c0_i32_0, %c0_i32_1 : i32, i32, i32, i32
  }
  func.func @transform_4(%arg0: i32) -> (i32, i32, i32, i32) {
    %c0_i32 = arith.constant 0 : i32
    %c0_i32_0 = arith.constant 0 : i32
    %c0_i32_1 = arith.constant 0 : i32
    %c0_i32_2 = arith.constant 0 : i32
    %c0_i32_3 = arith.constant 0 : i32
    return %c0_i32, %c0_i32_0, %c0_i32_1, %c0_i32_2 : i32, i32, i32, i32
  }
  func.func @transform_5(%arg0: i32) -> (i32, i32, i32, i32) {
    %c0_i32 = arith.constant 0 : i32
    %c0_i32_0 = arith.constant 0 : i32
    %c0_i32_1 = arith.constant 0 : i32
    %c0_i32_2 = arith.constant 0 : i32
    %c0_i32_3 = arith.constant 0 : i32
    return %c0_i32, %c0_i32_0, %c0_i32_1, %c0_i32_2 : i32, i32, i32, i32
  }
  func.func @transform_6(%arg0: i32) -> (i32, i32, i32, i32) {
    %c0_i32 = arith.constant 0 : i32
    %c0_i32_0 = arith.constant 0 : i32
    %c0_i32_1 = arith.constant 0 : i32
    %c0_i32_2 = arith.constant 0 : i32
    %c0_i32_3 = arith.constant 0 : i32
    return %c0_i32, %c0_i32_0, %c0_i32_1, %c0_i32_2 : i32, i32, i32, i32
  }
  func.func @transform_7(%arg0: i32) -> (i32, i32, i32, i32) {
    %c0_i32 = arith.constant 0 : i32
    %c0_i32_0 = arith.constant 0 : i32
    %c0_i32_1 = arith.constant 0 : i32
    %c0_i32_2 = arith.constant 0 : i32
    return %arg0, %c0_i32, %c0_i32_0, %c0_i32_1 : i32, i32, i32, i32
  }
}

</mosaic_0001>

<llo_original>
// kernel: tile.8
$region0: #{tile.8}
  #allocation0 [shape = 's32[1]{0}', space=sflag, size = 0x4, scoped, tag = 'scoped memory for tile.8']
  %s0 = inlined_call_operand.vmem [shape: f32[9], index: 0, kind: input, shape index: {}]
  %s1 = inlined_call_operand.vmem [shape: f32[4,9], index: 1, kind: output, shape index: {}]
  // Predicated region
  $region2: #{tile.8} parent=0 // pred_check
    _
  $region3: #{tile.8} parent=0 // pred_check_branch
    %3 = sbr.rel (0) target = $region5
  $region4: #{tile.8} parent=0 // pred_region
    _
  $region5: #{tile.8} parent=0 // pred_fallthru
    _
  %v4 = vld [vmem:[%s0] ss:$0 sm:$0xff]
  %5 = vst [vmem:[%s1] sm:$0xf] %v4

// kernel: tile.9
$region0: #{tile.9}
  %s0 = inlined_call_operand.vmem [shape: f32[4,9], index: 0, kind: input, shape index: {}]
  %s1 = inlined_call_operand.vmem [shape: f32[1,36], index: 1, kind: output, shape index: {}]
  $region1: #{tile.9} parent=0
    #allocation0 [shape = 'u8[4096]{0}', space=vmem, size = 0x1000, scoped, tag = 'scoped mem for output reshape']
    #allocation1 [shape = 'u8[4096]{0}', space=vmem, size = 0x1000, scoped, tag = 'scoped mem for input reshape']
    %s3 = sshllo.u32 0, 4
    %v4 = vld [vmem:[%s0] sm:%s3]
    %5 = vst [vmem:[#allocation1] sm:%s3] %v4
    %v6 = vld [vmem:[#allocation1] sm:$0x1]
    %vm7 = vcmask 72704
    %8 = vst.msk [vmem:[#allocation0] sm:$0x1] %vm7, %v6
    %s9 = scalar_lea.vmem [#allocation1], 3
    %v10 = vld [vmem:[%s9] sm:$0x1]
    %11 = vrot.lane.b32.xlu0 %v10, 27
    %v12 = vpop.permute.xlu0 %11
    %vm13 = vcmask 294104
    %14 = vst.msk [vmem:[#allocation0] sm:$0x1] %vm13, %v12
    %s15 = scalar_lea.vmem [#allocation1], 2
    %v16 = vld [vmem:[%s15] sm:$0x1]
    %17 = vrot.lane.b32.xlu0 %v16, 18
    %v18 = vpop.permute.xlu0 %17
    %vm19 = vcmask 220304
    %20 = vst.msk [vmem:[#allocation0] sm:$0x1] %vm19, %v18
    %s21 = scalar_lea.vmem [#allocation1], 1
    %v22 = vld [vmem:[%s21] sm:$0x1]
    %23 = vrot.lane.b32.xlu0 %v22, 9
    %v24 = vpop.permute.xlu0 %23
    %vm25 = vcmask 146504
    %26 = vst.msk [vmem:[#allocation0] sm:$0x1] %vm25, %v24
    %s28 = sshllo.u32 0, 1
    %v30 = vld [vmem:[#allocation0] sm:%s28]
    %s31 = sshllo.u32 0, 1
    %32 = vst [vmem:[%s1] sm:%s31] %v30

</llo_original>
